<compile_context>
chip_gen: v7x
topology: tpu7x:2x2x1
jax: 0.10.0
libtpu: 0.0.40
codegen_flags: <defaults>
</compile_context>

<pallas_src>
import functools
import math

import jax
import jax.numpy as jnp
from jax.experimental import pallas as pl
from jax.experimental.pallas import tpu as pltpu

NUM_GATES = 4  # PyTorch LSTM gate order: i, f, g, o


# ----------------------------- helpers ---------------------------------------
@functools.lru_cache(maxsize=1)
def _vmem_limit_bytes():
    """Raise the scoped-VMEM limit, capped below physical VMEM (v7x = 64 MiB)."""
    try:
        info = pltpu.get_tpu_info()
        cap = getattr(info, "vmem_capacity_bytes", None)
        if cap:
            return int(cap * 3 // 4)
    except Exception:
        pass
    return None  # fall back to compiler default


def _pick_n_tile(n, target=512, lane=128):
    """Largest N-tile <= target that divides n and is lane-aligned (or n itself)."""
    if n <= target:
        return n
    for t in range(target, 0, -lane):
        if t > 0 and n % t == 0:
            return t
    return n


# ----------------------- GEMM (+bias) kernel: x @ W^T + b ---------------------
def _matmul_bias_kernel(x_ref, w_ref, b_ref, o_ref):
    # bf16 operands -> MXU, f32 accumulation; bias added in f32.
    o_ref[...] = (
        jnp.dot(x_ref[...].astype(jnp.bfloat16), w_ref[...],
                preferred_element_type=jnp.float32)
        + b_ref[...]
    )


def matmul_bias(x, w_t, b, *, tn=512):
    """x: (M, K) f32; w_t: (K, N) bf16; b: (1, N) f32 -> (M, N) f32. Tiled over N."""
    M, K = x.shape
    N = w_t.shape[1]
    tn = _pick_n_tile(N, target=tn)
    return pl.pallas_call(
        _matmul_bias_kernel,
        out_shape=jax.ShapeDtypeStruct((M, N), jnp.float32),
        grid_spec=pltpu.PrefetchScalarGridSpec(
            num_scalar_prefetch=0,
            grid=(N // tn,),
            in_specs=[
                pl.BlockSpec((M, K), lambda j: (0, 0)),   # activations, resident
                pl.BlockSpec((K, tn), lambda j: (0, j)),  # weight column tile
                pl.BlockSpec((1, tn), lambda j: (0, j)),  # bias column tile
            ],
            out_specs=pl.BlockSpec((M, tn), lambda j: (0, j)),
        ),
        compiler_params=pltpu.CompilerParams(
            dimension_semantics=("parallel",),
            vmem_limit_bytes=_vmem_limit_bytes(),
        ),
    )(x, w_t, b)


# ----------------------------- recurrent LSTM kernel --------------------------
def _lstm_recurrent_kernel(gx_ref, whh_ref, out_ref, h_ref, c_ref):
    t = pl.program_id(0)
    H = h_ref.shape[-1]

    @pl.when(t == 0)
    def _():
        h_ref[...] = jnp.zeros_like(h_ref)
        c_ref[...] = jnp.zeros_like(c_ref)

    h_prev = h_ref[...]  # (B, H) f32
    # All 4 gate pre-activations in one MXU matmul; input projection was hoisted.
    gates = gx_ref[0] + jnp.dot(
        h_prev.astype(jnp.bfloat16), whh_ref[...],
        preferred_element_type=jnp.float32)          # (B, 4H) f32

    i_g = jax.nn.sigmoid(gates[:, 0 * H:1 * H])      # f32 elementwise (v5e-safe)
    f_g = jax.nn.sigmoid(gates[:, 1 * H:2 * H])
    g_g = jnp.tanh(gates[:, 2 * H:3 * H])
    o_g = jax.nn.sigmoid(gates[:, 3 * H:4 * H])

    c_new = f_g * c_ref[...] + i_g * g_g
    h_new = o_g * jnp.tanh(c_new)
    c_ref[...] = c_new
    h_ref[...] = h_new
    out_ref[0] = h_new.astype(out_ref.dtype)


def lstm_layer(x_tmajor, w_ih_t, w_hh_t, b, *, hidden):
    """x_tmajor: (T, B, D) f32; w_ih_t: (D, 4H) bf16; w_hh_t: (H, 4H) bf16; b: (1, 4H) f32
    -> (T, B, H) f32."""
    T, B, D = x_tmajor.shape
    H = hidden

    # (1) Hoisted input projection over the whole sequence: one GEMM per layer.
    gx = matmul_bias(x_tmajor.reshape(T * B, D), w_ih_t, b)       # (T*B, 4H) f32
    gx = gx.reshape(T, B, NUM_GATES * H)

    cost = pl.CostEstimate(
        flops=2 * T * B * H * NUM_GATES * H,
        transcendentals=5 * T * B * H,
        bytes_accessed=gx.size * 4 + w_hh_t.size * 2 + T * B * H * 4,
    )

    # (2) Sequential recurrence; W_hh stays VMEM-resident (constant block index).
    return pl.pallas_call(
        _lstm_recurrent_kernel,
        out_shape=jax.ShapeDtypeStruct((T, B, H), jnp.float32),
        grid_spec=pltpu.PrefetchScalarGridSpec(
            num_scalar_prefetch=0,
            grid=(T,),
            in_specs=[
                pl.BlockSpec((1, B, NUM_GATES * H), lambda t: (t, 0, 0)),  # G_x[t]
                pl.BlockSpec((H, NUM_GATES * H), lambda t: (0, 0)),        # W_hh^T, resident
            ],
            out_specs=pl.BlockSpec((1, B, H), lambda t: (t, 0, 0)),
            scratch_shapes=[
                pltpu.VMEM((B, H), jnp.float32),   # h state
                pltpu.VMEM((B, H), jnp.float32),   # c state
            ],
        ),
        compiler_params=pltpu.CompilerParams(
            dimension_semantics=("arbitrary",),    # recurrence: must stay sequential
            vmem_limit_bytes=_vmem_limit_bytes(),
        ),
        cost_estimate=cost,
    )(gx, w_hh_t)


# ------------------------------ Linear head -----------------------------------
def linear_head(x2d, w_t, b):
    """x2d: (M, H) f32; w_t: (H, O) bf16; b: (1, O) f32 -> (M, O) f32."""
    O = w_t.shape[1]
    O_pad = max(128, ((O + 127) // 128) * 128)     # lane-dense output stores
    if O_pad != O:
        w_t = jnp.pad(w_t, ((0, 0), (0, O_pad - O)))
        b = jnp.pad(b, ((0, 0), (0, O_pad - O)))
    out = matmul_bias(x2d, w_t, b, tn=min(512, O_pad))
    return out[:, :O]


# ------------------------------ Model wrapper ----------------------------------
def init_params(key, input_dim, hidden, output_dim, num_layers=3):
    """Init mirroring PyTorch defaults U(-1/sqrt(H), 1/sqrt(H)); weights stored bf16."""
    params = {"lstm": [], "linear": None}
    bound = 1.0 / math.sqrt(hidden)
    in_dim = input_dim
    for _ in range(num_layers):
        key, k1, k2, k3, k4 = jax.random.split(key, 5)
        w_ih = jax.random.uniform(k1, (NUM_GATES * hidden, in_dim),
                                  minval=-bound, maxval=bound, dtype=jnp.float32)
        w_hh = jax.random.uniform(k2, (NUM_GATES * hidden, hidden),
                                  minval=-bound, maxval=bound, dtype=jnp.float32)
        b_ih = jax.random.uniform(k3, (NUM_GATES * hidden,),
                                  minval=-bound, maxval=bound, dtype=jnp.float32)
        b_hh = jax.random.uniform(k4, (NUM_GATES * hidden,),
                                  minval=-bound, maxval=bound, dtype=jnp.float32)
        params["lstm"].append({
            "w_ih_t": jnp.asarray(w_ih.T, dtype=jnp.bfloat16),          # (in_dim, 4H)
            "w_hh_t": jnp.asarray(w_hh.T, dtype=jnp.bfloat16),          # (H, 4H)
            "b": jnp.asarray((b_ih + b_hh)[None, :], dtype=jnp.float32),  # (1, 4H)
        })
        in_dim = hidden
    key, k1, k2 = jax.random.split(key, 3)
    w = jax.random.uniform(k1, (output_dim, hidden),
                           minval=-bound, maxval=bound, dtype=jnp.float32)
    b = jax.random.uniform(k2, (output_dim,),
                           minval=-bound, maxval=bound, dtype=jnp.float32)
    params["linear"] = {"w_t": jnp.asarray(w.T, dtype=jnp.bfloat16),    # (H, O)
                        "b": jnp.asarray(b[None, :], dtype=jnp.float32)}
    return params


def rnn_modelv2_forward(params, x, *, hidden):
    """x: (B, T, input_dim) batch_first, like PyTorch. Returns (B, T, output_dim)."""
    B, T, _ = x.shape
    # Pad batch to a sublane multiple (>=8) for full sublane / MXU-row utilization.
    B_pad = max(8, ((B + 7) // 8) * 8)
    if B_pad != B:
        x = jnp.pad(x, ((0, B_pad - B), (0, 0), (0, 0)))
    h_seq = jnp.transpose(x, (1, 0, 2))               # time-major (T, B_pad, D)
    for lp in params["lstm"]:
        h_seq = lstm_layer(h_seq, lp["w_ih_t"], lp["w_hh_t"], lp["b"], hidden=hidden)
    flat = h_seq.reshape(T * B_pad, hidden)
    out = linear_head(flat, params["linear"]["w_t"], params["linear"]["b"])
    out = out.reshape(T, B_pad, -1)
    out = jnp.transpose(out, (1, 0, 2))               # back to batch_first
    return out[:B]


# ------------------------------ Pure-JAX reference ------------------------------
def _reference_forward(params, x, *, hidden):
    B, T, _ = x.shape
    h_seq = x
    for lp in params["lstm"]:
        w_ih, w_hh, b = lp["w_ih_t"], lp["w_hh_t"], lp["b"][0]

        def step(carry, x_t, w_ih=w_ih, w_hh=w_hh, b=b):
            h, c = carry
            gates = (jnp.dot(x_t.astype(jnp.bfloat16), w_ih,
                             preferred_element_type=jnp.float32)
                     + jnp.dot(h.astype(jnp.bfloat16), w_hh,
                               preferred_element_type=jnp.float32)
                     + b)
            i = jax.nn.sigmoid(gates[:, :hidden])
            f = jax.nn.sigmoid(gates[:, hidden:2 * hidden])
            g = jnp.tanh(gates[:, 2 * hidden:3 * hidden])
            o = jax.nn.sigmoid(gates[:, 3 * hidden:])
            c = f * c + i * g
            h = o * jnp.tanh(c)
            return (h, c), h

        init = (jnp.zeros((B, hidden), jnp.float32),
                jnp.zeros((B, hidden), jnp.float32))
        _, hs = jax.lax.scan(step, init, jnp.transpose(h_seq, (1, 0, 2)))
        h_seq = jnp.transpose(hs, (1, 0, 2))
    out = (jnp.dot(h_seq.reshape(-1, hidden).astype(jnp.bfloat16),
                   params["linear"]["w_t"], preferred_element_type=jnp.float32)
           + params["linear"]["b"])
    return out.reshape(B, T, -1)


# ------------------------------------ main --------------------------------------
if __name__ == "__main__":
    BATCH = 2
    SEQ = 8
    INPUT_DIM = 32
    OUTPUT_DIM = 10
    HIDDEN = 256  # module uses 2048; reduced for the small-shape demo (kernels are size-generic)

    key = jax.random.PRNGKey(0)
    key, pkey, xkey = jax.random.split(key, 3)
    params = init_params(pkey, INPUT_DIM, HIDDEN, OUTPUT_DIM, num_layers=3)
    x = jax.random.normal(xkey, (BATCH, SEQ, INPUT_DIM), dtype=jnp.float32)

    fwd = jax.jit(functools.partial(rnn_modelv2_forward, hidden=HIDDEN))
    out = jax.block_until_ready(fwd(params, x))
    assert out.shape == (BATCH, SEQ, OUTPUT_DIM), out.shape

    ref = jax.block_until_ready(_reference_forward(params, x, hidden=HIDDEN))
    max_err = float(jnp.max(jnp.abs(out - ref)))
    assert max_err < 2e-2, f"mismatch vs reference: {max_err}"

    print("KERNEL_OK")
</pallas_src>

<mosaic_0001>
module attributes {stable_mosaic.version = 11 : i64} {
  func.func @_lstm_recurrent_kernel(%arg0: i32, %arg1: memref<1x8x1024xf32, #tpu.memory_space<vmem>>, %arg2: memref<256x1024xbf16, #tpu.memory_space<vmem>>, %arg3: memref<1x8x256xf32, #tpu.memory_space<vmem>>, %arg4: memref<8x256xf32, #tpu.memory_space<vmem>>, %arg5: memref<8x256xf32, #tpu.memory_space<vmem>>) attributes {dimension_semantics = [#tpu.dimension_semantics<arbitrary>], iteration_bounds = array<i64: 8>, scalar_prefetch = 0 : i64, scratch_operands = 2 : i64, tpu.core_type = #tpu.core_type<tc>, window_params = [{transform_indices = @transform_0, window_bounds = array<i64: 1, 8, 1024>}, {pipeline_mode = #tpu.pipeline_mode<synchronous>, transform_indices = @transform_1, window_bounds = array<i64: 256, 1024>}, {transform_indices = @transform_2, window_bounds = array<i64: 1, 8, 256>}]} {
    %c0_i32 = arith.constant 0 : i32
    %0 = arith.cmpi eq, %arg0, %c0_i32 : i32
    %1 = arith.extui %0 : i1 to i32
    %c0_i32_0 = arith.constant 0 : i32
    %2 = arith.cmpi ne, %1, %c0_i32_0 : i32
    scf.if %2 {
      %cst_19 = arith.constant 0.000000e+00 : f32
      %41 = vector.broadcast %cst_19 : f32 to vector<8x256xf32>
      %c0_20 = arith.constant 0 : index
      %c0_21 = arith.constant 0 : index
      %42 = vector.load %arg4[%c0_20, %c0_21] : memref<8x256xf32, #tpu.memory_space<vmem>>, vector<8x256xf32>
      tpu.vector_store %arg4[%c0_20, %c0_21], %41 {strides = array<i32>} : memref<8x256xf32, #tpu.memory_space<vmem>>, vector<8x256xf32>,
      %cst_22 = arith.constant 0.000000e+00 : f32
      %43 = vector.broadcast %cst_22 : f32 to vector<8x256xf32>
      %c0_23 = arith.constant 0 : index
      %c0_24 = arith.constant 0 : index
      %44 = vector.load %arg5[%c0_23, %c0_24] : memref<8x256xf32, #tpu.memory_space<vmem>>, vector<8x256xf32>
      tpu.vector_store %arg5[%c0_23, %c0_24], %43 {strides = array<i32>} : memref<8x256xf32, #tpu.memory_space<vmem>>, vector<8x256xf32>,
    } else {
    }
    %c0 = arith.constant 0 : index
    %c0_1 = arith.constant 0 : index
    %3 = vector.load %arg4[%c0, %c0_1] : memref<8x256xf32, #tpu.memory_space<vmem>>, vector<8x256xf32>
    %c0_2 = arith.constant 0 : index
    %c0_3 = arith.constant 0 : index
    %c0_4 = arith.constant 0 : index
    %4 = vector.load %arg1[%c0_2, %c0_3, %c0_4] : memref<1x8x1024xf32, #tpu.memory_space<vmem>>, vector<1x8x1024xf32>
    %5 = vector.shape_cast %4 : vector<1x8x1024xf32> to vector<8x1024xf32>
    %6 = arith.truncf %3 : vector<8x256xf32> to vector<8x256xbf16>
    %c0_5 = arith.constant 0 : index
    %c0_6 = arith.constant 0 : index
    %7 = vector.load %arg2[%c0_5, %c0_6] : memref<256x1024xbf16, #tpu.memory_space<vmem>>, vector<256x1024xbf16>
    %cst = arith.constant dense<0.000000e+00> : vector<8x1024xf32>
    %8 = tpu.matmul %6, %7, %cst {dimension_numbers = #tpu.dot_dimension_numbers<[1], [0], [0], [1], [0, 0, 1, 1], [], []>} : vector<8x256xbf16>, vector<256x1024xbf16>, vector<8x1024xf32> -> vector<8x1024xf32>
    %9 = arith.addf %5, %8 : vector<8x1024xf32>
    %10 = vector.extract_strided_slice %9 {offsets = [0, 0], sizes = [8, 256], strides = [1, 1]} : vector<8x1024xf32> to vector<8x256xf32>
    %11 = arith.negf %10 : vector<8x256xf32>
    %12 = math.exp %11 : vector<8x256xf32>
    %cst_7 = arith.constant 1.000000e+00 : f32
    %13 = vector.broadcast %cst_7 : f32 to vector<8x256xf32>
    %14 = arith.addf %13, %12 : vector<8x256xf32>
    %15 = arith.divf %13, %14 : vector<8x256xf32>
    %16 = vector.extract_strided_slice %9 {offsets = [0, 256], sizes = [8, 256], strides = [1, 1]} : vector<8x1024xf32> to vector<8x256xf32>
    %17 = arith.negf %16 : vector<8x256xf32>
    %18 = math.exp %17 : vector<8x256xf32>
    %cst_8 = arith.constant 1.000000e+00 : f32
    %19 = vector.broadcast %cst_8 : f32 to vector<8x256xf32>
    %20 = arith.addf %19, %18 : vector<8x256xf32>
    %21 = arith.divf %19, %20 : vector<8x256xf32>
    %22 = vector.extract_strided_slice %9 {offsets = [0, 512], sizes = [8, 256], strides = [1, 1]} : vector<8x1024xf32> to vector<8x256xf32>
    %23 = math.tanh %22 : vector<8x256xf32>
    %24 = vector.extract_strided_slice %9 {offsets = [0, 768], sizes = [8, 256], strides = [1, 1]} : vector<8x1024xf32> to vector<8x256xf32>
    %25 = arith.negf %24 : vector<8x256xf32>
    %26 = math.exp %25 : vector<8x256xf32>
    %cst_9 = arith.constant 1.000000e+00 : f32
    %27 = vector.broadcast %cst_9 : f32 to vector<8x256xf32>
    %28 = arith.addf %27, %26 : vector<8x256xf32>
    %29 = arith.divf %27, %28 : vector<8x256xf32>
    %c0_10 = arith.constant 0 : index
    %c0_11 = arith.constant 0 : index
    %30 = vector.load %arg5[%c0_10, %c0_11] : memref<8x256xf32, #tpu.memory_space<vmem>>, vector<8x256xf32>
    %31 = arith.mulf %21, %30 : vector<8x256xf32>
    %32 = arith.mulf %15, %23 : vector<8x256xf32>
    %33 = arith.addf %31, %32 : vector<8x256xf32>
    %34 = math.tanh %33 : vector<8x256xf32>
    %35 = arith.mulf %29, %34 : vector<8x256xf32>
    %c0_12 = arith.constant 0 : index
    %c0_13 = arith.constant 0 : index
    %36 = vector.load %arg5[%c0_12, %c0_13] : memref<8x256xf32, #tpu.memory_space<vmem>>, vector<8x256xf32>
    tpu.vector_store %arg5[%c0_12, %c0_13], %33 {strides = array<i32>} : memref<8x256xf32, #tpu.memory_space<vmem>>, vector<8x256xf32>,
    %c0_14 = arith.constant 0 : index
    %c0_15 = arith.constant 0 : index
    %37 = vector.load %arg4[%c0_14, %c0_15] : memref<8x256xf32, #tpu.memory_space<vmem>>, vector<8x256xf32>
    tpu.vector_store %arg4[%c0_14, %c0_15], %35 {strides = array<i32>} : memref<8x256xf32, #tpu.memory_space<vmem>>, vector<8x256xf32>,
    %c0_16 = arith.constant 0 : index
    %c0_17 = arith.constant 0 : index
    %c0_18 = arith.constant 0 : index
    %38 = vector.load %arg3[%c0_16, %c0_17, %c0_18] : memref<1x8x256xf32, #tpu.memory_space<vmem>>, vector<1x8x256xf32>
    %39 = vector.shape_cast %38 : vector<1x8x256xf32> to vector<8x256xf32>
    %40 = vector.shape_cast %35 : vector<8x256xf32> to vector<1x8x256xf32>
    tpu.vector_store %arg3[%c0_16, %c0_17, %c0_18], %40 {strides = array<i32>} : memref<1x8x256xf32, #tpu.memory_space<vmem>>, vector<1x8x256xf32>,
    return
  }
  func.func @transform_0(%arg0: i32) -> (i32, i32, i32) {
    %c0_i32 = arith.constant 0 : i32
    %c0_i32_0 = arith.constant 0 : i32
    %c0_i32_1 = arith.constant 0 : i32
    return %arg0, %c0_i32, %c0_i32_0 : i32, i32, i32
  }
  func.func @transform_1(%arg0: i32) -> (i32, i32) {
    %c0_i32 = arith.constant 0 : i32
    %c0_i32_0 = arith.constant 0 : i32
    %c0_i32_1 = arith.constant 0 : i32
    return %c0_i32, %c0_i32_0 : i32, i32
  }
  func.func @transform_2(%arg0: i32) -> (i32, i32, i32) {
    %c0_i32 = arith.constant 0 : i32
    %c0_i32_0 = arith.constant 0 : i32
    %c0_i32_1 = arith.constant 0 : i32
    return %arg0, %c0_i32, %c0_i32_0 : i32, i32, i32
  }
}

module attributes {stable_mosaic.version = 11 : i64} {
  func.func @_matmul_bias_kernel(%arg0: i32, %arg1: memref<64x32xf32, #tpu.memory_space<vmem>>, %arg2: memref<32x512xbf16, #tpu.memory_space<vmem>>, %arg3: memref<1x512xf32, #tpu.memory_space<vmem>>, %arg4: memref<64x512xf32, #tpu.memory_space<vmem>>) attributes {dimension_semantics = [#tpu.dimension_semantics<parallel>], iteration_bounds = array<i64: 2>, scalar_prefetch = 0 : i64, scratch_operands = 0 : i64, tpu.core_type = #tpu.core_type<tc>, window_params = [{pipeline_mode = #tpu.pipeline_mode<synchronous>, transform_indices = @transform_0, window_bounds = array<i64: 64, 32>}, {transform_indices = @transform_1, window_bounds = array<i64: 32, 512>}, {transform_indices = @transform_2, window_bounds = array<i64: 1, 512>}, {transform_indices = @transform_3, window_bounds = array<i64: 64, 512>}]} {
    %c0 = arith.constant 0 : index
    %c0_0 = arith.constant 0 : index
    %0 = vector.load %arg1[%c0, %c0_0] : memref<64x32xf32, #tpu.memory_space<vmem>>, vector<64x32xf32>
    %1 = arith.truncf %0 : vector<64x32xf32> to vector<64x32xbf16>
    %c0_1 = arith.constant 0 : index
    %c0_2 = arith.constant 0 : index
    %2 = vector.load %arg2[%c0_1, %c0_2] : memref<32x512xbf16, #tpu.memory_space<vmem>>, vector<32x512xbf16>
    %cst = arith.constant dense<0.000000e+00> : vector<64x512xf32>
    %3 = tpu.matmul %1, %2, %cst {dimension_numbers = #tpu.dot_dimension_numbers<[1], [0], [0], [1], [0, 0, 1, 1], [], []>} : vector<64x32xbf16>, vector<32x512xbf16>, vector<64x512xf32> -> vector<64x512xf32>
    %c0_3 = arith.constant 0 : index
    %c0_4 = arith.constant 0 : index
    %4 = vector.load %arg3[%c0_3, %c0_4] : memref<1x512xf32, #tpu.memory_space<vmem>>, vector<1x512xf32>
    %5 = vector.broadcast %4 : vector<1x512xf32> to vector<64x512xf32>
    %6 = arith.addf %3, %5 : vector<64x512xf32>
    %c0_5 = arith.constant 0 : index
    %c0_6 = arith.constant 0 : index
    %7 = vector.load %arg4[%c0_5, %c0_6] : memref<64x512xf32, #tpu.memory_space<vmem>>, vector<64x512xf32>
    tpu.vector_store %arg4[%c0_5, %c0_6], %6 {strides = array<i32>} : memref<64x512xf32, #tpu.memory_space<vmem>>, vector<64x512xf32>,
    return
  }
  func.func @transform_0(%arg0: i32) -> (i32, i32) {
    %c0_i32 = arith.constant 0 : i32
    %c0_i32_0 = arith.constant 0 : i32
    %c0_i32_1 = arith.constant 0 : i32
    return %c0_i32, %c0_i32_0 : i32, i32
  }
  func.func @transform_1(%arg0: i32) -> (i32, i32) {
    %c0_i32 = arith.constant 0 : i32
    %c0_i32_0 = arith.constant 0 : i32
    return %c0_i32, %arg0 : i32, i32
  }
  func.func @transform_2(%arg0: i32) -> (i32, i32) {
    %c0_i32 = arith.constant 0 : i32
    %c0_i32_0 = arith.constant 0 : i32
    return %c0_i32, %arg0 : i32, i32
  }
  func.func @transform_3(%arg0: i32) -> (i32, i32) {
    %c0_i32 = arith.constant 0 : i32
    %c0_i32_0 = arith.constant 0 : i32
    return %c0_i32, %arg0 : i32, i32
  }
}

module attributes {stable_mosaic.version = 11 : i64} {
  func.func @_lstm_recurrent_kernel(%arg0: i32, %arg1: memref<1x8x1024xf32, #tpu.memory_space<vmem>>, %arg2: memref<256x1024xbf16, #tpu.memory_space<vmem>>, %arg3: memref<1x8x256xf32, #tpu.memory_space<vmem>>, %arg4: memref<8x256xf32, #tpu.memory_space<vmem>>, %arg5: memref<8x256xf32, #tpu.memory_space<vmem>>) attributes {dimension_semantics = [#tpu.dimension_semantics<arbitrary>], iteration_bounds = array<i64: 8>, scalar_prefetch = 0 : i64, scratch_operands = 2 : i64, tpu.core_type = #tpu.core_type<tc>, window_params = [{transform_indices = @transform_0, window_bounds = array<i64: 1, 8, 1024>}, {pipeline_mode = #tpu.pipeline_mode<synchronous>, transform_indices = @transform_1, window_bounds = array<i64: 256, 1024>}, {transform_indices = @transform_2, window_bounds = array<i64: 1, 8, 256>}]} {
    %c0_i32 = arith.constant 0 : i32
    %0 = arith.cmpi eq, %arg0, %c0_i32 : i32
    %1 = arith.extui %0 : i1 to i32
    %c0_i32_0 = arith.constant 0 : i32
    %2 = arith.cmpi ne, %1, %c0_i32_0 : i32
    scf.if %2 {
      %cst_19 = arith.constant 0.000000e+00 : f32
      %41 = vector.broadcast %cst_19 : f32 to vector<8x256xf32>
      %c0_20 = arith.constant 0 : index
      %c0_21 = arith.constant 0 : index
      %42 = vector.load %arg4[%c0_20, %c0_21] : memref<8x256xf32, #tpu.memory_space<vmem>>, vector<8x256xf32>
      tpu.vector_store %arg4[%c0_20, %c0_21], %41 {strides = array<i32>} : memref<8x256xf32, #tpu.memory_space<vmem>>, vector<8x256xf32>,
      %cst_22 = arith.constant 0.000000e+00 : f32
      %43 = vector.broadcast %cst_22 : f32 to vector<8x256xf32>
      %c0_23 = arith.constant 0 : index
      %c0_24 = arith.constant 0 : index
      %44 = vector.load %arg5[%c0_23, %c0_24] : memref<8x256xf32, #tpu.memory_space<vmem>>, vector<8x256xf32>
      tpu.vector_store %arg5[%c0_23, %c0_24], %43 {strides = array<i32>} : memref<8x256xf32, #tpu.memory_space<vmem>>, vector<8x256xf32>,
    } else {
    }
    %c0 = arith.constant 0 : index
    %c0_1 = arith.constant 0 : index
    %3 = vector.load %arg4[%c0, %c0_1] : memref<8x256xf32, #tpu.memory_space<vmem>>, vector<8x256xf32>
    %c0_2 = arith.constant 0 : index
    %c0_3 = arith.constant 0 : index
    %c0_4 = arith.constant 0 : index
    %4 = vector.load %arg1[%c0_2, %c0_3, %c0_4] : memref<1x8x1024xf32, #tpu.memory_space<vmem>>, vector<1x8x1024xf32>
    %5 = vector.shape_cast %4 : vector<1x8x1024xf32> to vector<8x1024xf32>
    %6 = arith.truncf %3 : vector<8x256xf32> to vector<8x256xbf16>
    %c0_5 = arith.constant 0 : index
    %c0_6 = arith.constant 0 : index
    %7 = vector.load %arg2[%c0_5, %c0_6] : memref<256x1024xbf16, #tpu.memory_space<vmem>>, vector<256x1024xbf16>
    %cst = arith.constant dense<0.000000e+00> : vector<8x1024xf32>
    %8 = tpu.matmul %6, %7, %cst {dimension_numbers = #tpu.dot_dimension_numbers<[1], [0], [0], [1], [0, 0, 1, 1], [], []>} : vector<8x256xbf16>, vector<256x1024xbf16>, vector<8x1024xf32> -> vector<8x1024xf32>
    %9 = arith.addf %5, %8 : vector<8x1024xf32>
    %10 = vector.extract_strided_slice %9 {offsets = [0, 0], sizes = [8, 256], strides = [1, 1]} : vector<8x1024xf32> to vector<8x256xf32>
    %11 = arith.negf %10 : vector<8x256xf32>
    %12 = math.exp %11 : vector<8x256xf32>
    %cst_7 = arith.constant 1.000000e+00 : f32
    %13 = vector.broadcast %cst_7 : f32 to vector<8x256xf32>
    %14 = arith.addf %13, %12 : vector<8x256xf32>
    %15 = arith.divf %13, %14 : vector<8x256xf32>
    %16 = vector.extract_strided_slice %9 {offsets = [0, 256], sizes = [8, 256], strides = [1, 1]} : vector<8x1024xf32> to vector<8x256xf32>
    %17 = arith.negf %16 : vector<8x256xf32>
    %18 = math.exp %17 : vector<8x256xf32>
    %cst_8 = arith.constant 1.000000e+00 : f32
    %19 = vector.broadcast %cst_8 : f32 to vector<8x256xf32>
    %20 = arith.addf %19, %18 : vector<8x256xf32>
    %21 = arith.divf %19, %20 : vector<8x256xf32>
    %22 = vector.extract_strided_slice %9 {offsets = [0, 512], sizes = [8, 256], strides = [1, 1]} : vector<8x1024xf32> to vector<8x256xf32>
    %23 = math.tanh %22 : vector<8x256xf32>
    %24 = vector.extract_strided_slice %9 {offsets = [0, 768], sizes = [8, 256], strides = [1, 1]} : vector<8x1024xf32> to vector<8x256xf32>
    %25 = arith.negf %24 : vector<8x256xf32>
    %26 = math.exp %25 : vector<8x256xf32>
    %cst_9 = arith.constant 1.000000e+00 : f32
    %27 = vector.broadcast %cst_9 : f32 to vector<8x256xf32>
    %28 = arith.addf %27, %26 : vector<8x256xf32>
    %29 = arith.divf %27, %28 : vector<8x256xf32>
    %c0_10 = arith.constant 0 : index
    %c0_11 = arith.constant 0 : index
    %30 = vector.load %arg5[%c0_10, %c0_11] : memref<8x256xf32, #tpu.memory_space<vmem>>, vector<8x256xf32>
    %31 = arith.mulf %21, %30 : vector<8x256xf32>
    %32 = arith.mulf %15, %23 : vector<8x256xf32>
    %33 = arith.addf %31, %32 : vector<8x256xf32>
    %34 = math.tanh %33 : vector<8x256xf32>
    %35 = arith.mulf %29, %34 : vector<8x256xf32>
    %c0_12 = arith.constant 0 : index
    %c0_13 = arith.constant 0 : index
    %36 = vector.load %arg5[%c0_12, %c0_13] : memref<8x256xf32, #tpu.memory_space<vmem>>, vector<8x256xf32>
    tpu.vector_store %arg5[%c0_12, %c0_13], %33 {strides = array<i32>} : memref<8x256xf32, #tpu.memory_space<vmem>>, vector<8x256xf32>,
    %c0_14 = arith.constant 0 : index
    %c0_15 = arith.constant 0 : index
    %37 = vector.load %arg4[%c0_14, %c0_15] : memref<8x256xf32, #tpu.memory_space<vmem>>, vector<8x256xf32>
    tpu.vector_store %arg4[%c0_14, %c0_15], %35 {strides = array<i32>} : memref<8x256xf32, #tpu.memory_space<vmem>>, vector<8x256xf32>,
    %c0_16 = arith.constant 0 : index
    %c0_17 = arith.constant 0 : index
    %c0_18 = arith.constant 0 : index
    %38 = vector.load %arg3[%c0_16, %c0_17, %c0_18] : memref<1x8x256xf32, #tpu.memory_space<vmem>>, vector<1x8x256xf32>
    %39 = vector.shape_cast %38 : vector<1x8x256xf32> to vector<8x256xf32>
    %40 = vector.shape_cast %35 : vector<8x256xf32> to vector<1x8x256xf32>
    tpu.vector_store %arg3[%c0_16, %c0_17, %c0_18], %40 {strides = array<i32>} : memref<1x8x256xf32, #tpu.memory_space<vmem>>, vector<1x8x256xf32>,
    return
  }
  func.func @transform_0(%arg0: i32) -> (i32, i32, i32) {
    %c0_i32 = arith.constant 0 : i32
    %c0_i32_0 = arith.constant 0 : i32
    %c0_i32_1 = arith.constant 0 : i32
    return %arg0, %c0_i32, %c0_i32_0 : i32, i32, i32
  }
  func.func @transform_1(%arg0: i32) -> (i32, i32) {
    %c0_i32 = arith.constant 0 : i32
    %c0_i32_0 = arith.constant 0 : i32
    %c0_i32_1 = arith.constant 0 : i32
    return %c0_i32, %c0_i32_0 : i32, i32
  }
  func.func @transform_2(%arg0: i32) -> (i32, i32, i32) {
    %c0_i32 = arith.constant 0 : i32
    %c0_i32_0 = arith.constant 0 : i32
    %c0_i32_1 = arith.constant 0 : i32
    return %arg0, %c0_i32, %c0_i32_0 : i32, i32, i32
  }
}

module attributes {stable_mosaic.version = 11 : i64} {
  func.func @_matmul_bias_kernel(%arg0: i32, %arg1: memref<64x256xf32, #tpu.memory_space<vmem>>, %arg2: memref<256x512xbf16, #tpu.memory_space<vmem>>, %arg3: memref<1x512xf32, #tpu.memory_space<vmem>>, %arg4: memref<64x512xf32, #tpu.memory_space<vmem>>) attributes {dimension_semantics = [#tpu.dimension_semantics<parallel>], iteration_bounds = array<i64: 2>, scalar_prefetch = 0 : i64, scratch_operands = 0 : i64, tpu.core_type = #tpu.core_type<tc>, window_params = [{pipeline_mode = #tpu.pipeline_mode<synchronous>, transform_indices = @transform_0, window_bounds = array<i64: 64, 256>}, {transform_indices = @transform_1, window_bounds = array<i64: 256, 512>}, {transform_indices = @transform_2, window_bounds = array<i64: 1, 512>}, {transform_indices = @transform_3, window_bounds = array<i64: 64, 512>}]} {
    %c0 = arith.constant 0 : index
    %c0_0 = arith.constant 0 : index
    %0 = vector.load %arg1[%c0, %c0_0] : memref<64x256xf32, #tpu.memory_space<vmem>>, vector<64x256xf32>
    %1 = arith.truncf %0 : vector<64x256xf32> to vector<64x256xbf16>
    %c0_1 = arith.constant 0 : index
    %c0_2 = arith.constant 0 : index
    %2 = vector.load %arg2[%c0_1, %c0_2] : memref<256x512xbf16, #tpu.memory_space<vmem>>, vector<256x512xbf16>
    %cst = arith.constant dense<0.000000e+00> : vector<64x512xf32>
    %3 = tpu.matmul %1, %2, %cst {dimension_numbers = #tpu.dot_dimension_numbers<[1], [0], [0], [1], [0, 0, 1, 1], [], []>} : vector<64x256xbf16>, vector<256x512xbf16>, vector<64x512xf32> -> vector<64x512xf32>
    %c0_3 = arith.constant 0 : index
    %c0_4 = arith.constant 0 : index
    %4 = vector.load %arg3[%c0_3, %c0_4] : memref<1x512xf32, #tpu.memory_space<vmem>>, vector<1x512xf32>
    %5 = vector.broadcast %4 : vector<1x512xf32> to vector<64x512xf32>
    %6 = arith.addf %3, %5 : vector<64x512xf32>
    %c0_5 = arith.constant 0 : index
    %c0_6 = arith.constant 0 : index
    %7 = vector.load %arg4[%c0_5, %c0_6] : memref<64x512xf32, #tpu.memory_space<vmem>>, vector<64x512xf32>
    tpu.vector_store %arg4[%c0_5, %c0_6], %6 {strides = array<i32>} : memref<64x512xf32, #tpu.memory_space<vmem>>, vector<64x512xf32>,
    return
  }
  func.func @transform_0(%arg0: i32) -> (i32, i32) {
    %c0_i32 = arith.constant 0 : i32
    %c0_i32_0 = arith.constant 0 : i32
    %c0_i32_1 = arith.constant 0 : i32
    return %c0_i32, %c0_i32_0 : i32, i32
  }
  func.func @transform_1(%arg0: i32) -> (i32, i32) {
    %c0_i32 = arith.constant 0 : i32
    %c0_i32_0 = arith.constant 0 : i32
    return %c0_i32, %arg0 : i32, i32
  }
  func.func @transform_2(%arg0: i32) -> (i32, i32) {
    %c0_i32 = arith.constant 0 : i32
    %c0_i32_0 = arith.constant 0 : i32
    return %c0_i32, %arg0 : i32, i32
  }
  func.func @transform_3(%arg0: i32) -> (i32, i32) {
    %c0_i32 = arith.constant 0 : i32
    %c0_i32_0 = arith.constant 0 : i32
    return %c0_i32, %arg0 : i32, i32
  }
}

module attributes {stable_mosaic.version = 11 : i64} {
  func.func @_matmul_bias_kernel(%arg0: i32, %arg1: memref<64x256xf32, #tpu.memory_space<vmem>>, %arg2: memref<256x128xbf16, #tpu.memory_space<vmem>>, %arg3: memref<1x128xf32, #tpu.memory_space<vmem>>, %arg4: memref<64x128xf32, #tpu.memory_space<vmem>>) attributes {dimension_semantics = [#tpu.dimension_semantics<parallel>], iteration_bounds = array<i64: 1>, scalar_prefetch = 0 : i64, scratch_operands = 0 : i64, tpu.core_type = #tpu.core_type<tc>, window_params = [{pipeline_mode = #tpu.pipeline_mode<synchronous>, transform_indices = @transform_0, window_bounds = array<i64: 64, 256>}, {transform_indices = @transform_1, window_bounds = array<i64: 256, 128>}, {transform_indices = @transform_2, window_bounds = array<i64: 1, 128>}, {transform_indices = @transform_3, window_bounds = array<i64: 64, 128>}]} {
    %c0 = arith.constant 0 : index
    %c0_0 = arith.constant 0 : index
    %0 = vector.load %arg1[%c0, %c0_0] : memref<64x256xf32, #tpu.memory_space<vmem>>, vector<64x256xf32>
    %1 = arith.truncf %0 : vector<64x256xf32> to vector<64x256xbf16>
    %c0_1 = arith.constant 0 : index
    %c0_2 = arith.constant 0 : index
    %2 = vector.load %arg2[%c0_1, %c0_2] : memref<256x128xbf16, #tpu.memory_space<vmem>>, vector<256x128xbf16>
    %cst = arith.constant dense<0.000000e+00> : vector<64x128xf32>
    %3 = tpu.matmul %1, %2, %cst {dimension_numbers = #tpu.dot_dimension_numbers<[1], [0], [0], [1], [0, 0, 1, 1], [], []>} : vector<64x256xbf16>, vector<256x128xbf16>, vector<64x128xf32> -> vector<64x128xf32>
    %c0_3 = arith.constant 0 : index
    %c0_4 = arith.constant 0 : index
    %4 = vector.load %arg3[%c0_3, %c0_4] : memref<1x128xf32, #tpu.memory_space<vmem>>, vector<1x128xf32>
    %5 = vector.broadcast %4 : vector<1x128xf32> to vector<64x128xf32>
    %6 = arith.addf %3, %5 : vector<64x128xf32>
    %c0_5 = arith.constant 0 : index
    %c0_6 = arith.constant 0 : index
    %7 = vector.load %arg4[%c0_5, %c0_6] : memref<64x128xf32, #tpu.memory_space<vmem>>, vector<64x128xf32>
    tpu.vector_store %arg4[%c0_5, %c0_6], %6 {strides = array<i32>} : memref<64x128xf32, #tpu.memory_space<vmem>>, vector<64x128xf32>,
    return
  }
  func.func @transform_0(%arg0: i32) -> (i32, i32) {
    %c0_i32 = arith.constant 0 : i32
    %c0_i32_0 = arith.constant 0 : i32
    %c0_i32_1 = arith.constant 0 : i32
    return %c0_i32, %c0_i32_0 : i32, i32
  }
  func.func @transform_1(%arg0: i32) -> (i32, i32) {
    %c0_i32 = arith.constant 0 : i32
    %c0_i32_0 = arith.constant 0 : i32
    return %c0_i32, %arg0 : i32, i32
  }
  func.func @transform_2(%arg0: i32) -> (i32, i32) {
    %c0_i32 = arith.constant 0 : i32
    %c0_i32_0 = arith.constant 0 : i32
    return %c0_i32, %arg0 : i32, i32
  }
  func.func @transform_3(%arg0: i32) -> (i32, i32) {
    %c0_i32 = arith.constant 0 : i32
    %c0_i32_0 = arith.constant 0 : i32
    return %c0_i32, %arg0 : i32, i32
  }
}

</mosaic_0001>

<llo_original>
// kernel: rnn_modelv2_forward.7
$region0: #{rnn_modelv2_forward.7}
  #allocation0 [shape = 'u32[]', space=smem, size = 0x4, offset = 0x4, fixed_abs, tag = 'smem constant byte address 0x4 - core index']
  #allocation1 [shape = 'u32[144,128]{1,0:T(1,128)}', space=vmem, size = 0x12000, scoped, tag = 'internal scratch']
  %s0 = inlined_call_operand.vmem [shape: f32[64,32], index: 0, kind: input, shape index: {}]
  %s1 = inlined_call_operand.vmem [shape: bf16[32,1024], index: 1, kind: input, shape index: {}]
  %s2 = inlined_call_operand.vmem [shape: f32[1,1024], index: 2, kind: input, shape index: {}]
  %s3 = inlined_call_operand.vmem [shape: f32[64,1024], index: 3, kind: output, shape index: {}]
  %s4 = sld [smem:[#allocation0]]
  $region87: #{rnn_modelv2_forward.7} parent=0
    _
  %s6 = ssub.s32 1, %s4
  %s7 = scalar_select 0, %s6, %s4
  $region1: #{rnn_modelv2_forward.7} parent=0
    #allocation2 [shape = 'u8[65536]{0}', space=vmem, size = 0x10000, scoped, tag = 'input window, operand 1']
    #allocation3 [shape = 'u8[262144]{0}', space=vmem, size = 0x40000, scoped, tag = 'output window, operand 0']
    loop: start=0, step=1, limit=4
    $region2: #{rnn_modelv2_forward.7} parent=1 // loop_pre_header
      _
    $region3: #{rnn_modelv2_forward.7} parent=1 // loop_header
      %s9 = sphi 0, %s13
      %p10 = scmp.ge.s32.totalorder %s9, 4
      %s17 = sphi 0, %s17
      %s19 = sphi 0, %s17
      %s20 = sphi 0, %s19
      %s34 = sphi 0, %s20
      %s40 = sphi 0, %s42
      %s43 = sphi 0, %s40
      %s44 = sphi 0, %s43
      %s60 = sphi 0, %s44
      %s66 = sphi 0, %s68
      %s69 = sphi 0, %s66
      %s70 = sphi 0, %s69
      %s86 = sphi 0, %s70
      %s92 = sphi 0, %s94
      %s95 = sphi 0, %s92
      %s96 = sphi 0, %s95
      %s112 = sphi 0, %s96
    $region4: #{rnn_modelv2_forward.7} parent=1 // loop_header_branch
      %12 = sbr.rel (%p10) target = $region8
    $region5: #{rnn_modelv2_forward.7} parent=1 // loop_body
      %s14 = ssub.s32 %s9, 1
      %s15 = ssub.s32 %s9, 2
      %s16 = sadd.s32 %s9, 1
      %s18 = sadd.s32 %s17, 1
      %p21 = scmp.eq.s32.totalorder %s9, 1
      %p22 = scmp.ne.s32.totalorder %s17, %s19
      %p23 = scmp.eq.s32.totalorder %s9, 0
      %p24 = por %p22, %p23
      %p25 = scmp.ne.s32.totalorder %s17, %s19
      %p26 = scmp.eq.s32.totalorder %s14, 1
      %p27 = por %p25, %p26
      %p28 = scmp.ne.s32.totalorder %s19, %s20
      %p29 = scmp.eq.s32.totalorder %s14, 0
      %p30 = por %p28, %p29
      %p31 = scmp.ne.s32.totalorder %s19, %s20
      %p32 = scmp.eq.s32.totalorder %s15, 1
      %p33 = por %p31, %p32
      %p35 = scmp.ne.s32.totalorder %s20, %s34
      %p36 = scmp.eq.s32.totalorder %s15, 0
      %p37 = por %p35, %p36
      %s38 = ssub.s32 %s9, %s16
      %p39 = scmp.eq.s32.totalorder %s38, 0
      %s41 = sadd.s32 %s40, 1
      %s42 = scalar_select %p39, %s40, %s41
      %p45 = pneg %p39
      %p46 = scmp.eq.s32.totalorder %s9, 1
      %p47 = por %p45, %p46
      %p48 = scmp.ne.s32.totalorder %s40, %s43
      %p49 = scmp.eq.s32.totalorder %s9, 0
      %p50 = por %p48, %p49
      %p51 = scmp.ne.s32.totalorder %s40, %s43
      %p52 = scmp.eq.s32.totalorder %s14, 1
      %p53 = por %p51, %p52
      %p54 = scmp.ne.s32.totalorder %s43, %s44
      %p55 = scmp.eq.s32.totalorder %s14, 0
      %p56 = por %p54, %p55
      %p57 = scmp.ne.s32.totalorder %s43, %s44
      %p58 = scmp.eq.s32.totalorder %s15, 1
      %p59 = por %p57, %p58
      %p61 = scmp.ne.s32.totalorder %s44, %s60
      %p62 = scmp.eq.s32.totalorder %s15, 0
      %p63 = por %p61, %p62
      %s64 = ssub.s32 %s9, %s16
      %p65 = scmp.eq.s32.totalorder %s64, 0
      %s67 = sadd.s32 %s66, 1
      %s68 = scalar_select %p65, %s66, %s67
      %p71 = pneg %p65
      %p72 = scmp.eq.s32.totalorder %s9, 1
      %p73 = por %p71, %p72
      %p74 = scmp.ne.s32.totalorder %s66, %s69
      %p75 = scmp.eq.s32.totalorder %s9, 0
      %p76 = por %p74, %p75
      %p77 = scmp.ne.s32.totalorder %s66, %s69
      %p78 = scmp.eq.s32.totalorder %s14, 1
      %p79 = por %p77, %p78
      %p80 = scmp.ne.s32.totalorder %s69, %s70
      %p81 = scmp.eq.s32.totalorder %s14, 0
      %p82 = por %p80, %p81
      %p83 = scmp.ne.s32.totalorder %s69, %s70
      %p84 = scmp.eq.s32.totalorder %s15, 1
      %p85 = por %p83, %p84
      %p87 = scmp.ne.s32.totalorder %s70, %s86
      %p88 = scmp.eq.s32.totalorder %s15, 0
      %p89 = por %p87, %p88
      %s90 = ssub.s32 %s9, %s16
      %p91 = scmp.eq.s32.totalorder %s90, 0
      %s93 = sadd.s32 %s92, 1
      %s94 = scalar_select %p91, %s92, %s93
      %p97 = pneg %p91
      %p98 = scmp.eq.s32.totalorder %s9, 1
      %p99 = por %p97, %p98
      %p100 = scmp.ne.s32.totalorder %s92, %s95
      %p101 = scmp.eq.s32.totalorder %s9, 0
      %p102 = por %p100, %p101
      %p103 = scmp.ne.s32.totalorder %s92, %s95
      %p104 = scmp.eq.s32.totalorder %s14, 1
      %p105 = por %p103, %p104
      %p106 = scmp.ne.s32.totalorder %s95, %s96
      %p107 = scmp.eq.s32.totalorder %s14, 0
      %p108 = por %p106, %p107
      %p109 = scmp.ne.s32.totalorder %s95, %s96
      %p110 = scmp.eq.s32.totalorder %s15, 1
      %p111 = por %p109, %p110
      %p113 = scmp.ne.s32.totalorder %s96, %s112
      %p114 = scmp.eq.s32.totalorder %s15, 0
      %p115 = por %p113, %p114
      %p116 = scmp.le.s32.totalorder 1, %s9
      %p117 = scmp.lt.s32.totalorder %s9, 3
      %p118 = pnand %p116, %p117
      %p119 = pneg %p118
      // Predicated region
      $region9: #{rnn_modelv2_forward.7} parent=5 // pred_check
        _
      $region10: #{rnn_modelv2_forward.7} parent=5 // pred_check_branch
        %121 = sbr.rel (%p118) target = $region12
      $region11: #{rnn_modelv2_forward.7} parent=5 // pred_region
        %s122 = ssub.s32 %s9, 1
        // Predicated region
        $region13: #{rnn_modelv2_forward.7} parent=11 // pred_check
          %p123 = pneg %p30
        $region14: #{rnn_modelv2_forward.7} parent=11 // pred_check_branch
          %125 = sbr.rel (%p123) target = $region16
        $region15: #{rnn_modelv2_forward.7} parent=11 // pred_region
          _
        $region16: #{rnn_modelv2_forward.7} parent=11 // pred_fallthru
          _
      $region12: #{rnn_modelv2_forward.7} parent=5 // pred_fallthru
        _
      %p126 = scmp.lt.s32.totalorder %s9, 2
      // Predicated region
      $region17: #{rnn_modelv2_forward.7} parent=5 // pred_check
        %p127 = pneg %p126
      $region18: #{rnn_modelv2_forward.7} parent=5 // pred_check_branch
        %129 = sbr.rel (%p127) target = $region20
      $region19: #{rnn_modelv2_forward.7} parent=5 // pred_region
        // Predicated region
        $region21: #{rnn_modelv2_forward.7} parent=19 // pred_check
          %p130 = pneg %p50
        $region22: #{rnn_modelv2_forward.7} parent=19 // pred_check_branch
          %132 = sbr.rel (%p130) target = $region24
        $region23: #{rnn_modelv2_forward.7} parent=19 // pred_region
          %s133 = sand.u32 %s40, 1
          %s134 = sand.u32 %s40, 1
          %s135 = smul.addr %s134, 64
          %s136 = scalar_lea.vmem [#allocation2], %s135
          %s137 = smul.u32 4, %s9
          %s138 = smul.addr %s137, 4
          %s139 = scalar_lea.vmem %s1, %s138
          // Predicated region
          $region25: #{rnn_modelv2_forward.7} parent=23 // pred_check
            _
          $region26: #{rnn_modelv2_forward.7} parent=23 // pred_check_branch
            %141 = sbr.rel (0) target = $region28
          $region27: #{rnn_modelv2_forward.7} parent=23 // pred_region
            // Predicated region
            $region29: #{rnn_modelv2_forward.7} parent=27 // pred_check
              _
            $region30: #{rnn_modelv2_forward.7} parent=27 // pred_check_branch
              %143 = sbr.rel (0) target = $region32
            $region31: #{rnn_modelv2_forward.7} parent=27 // pred_region
              loop: start=0, step=1, limit=1
              $region33: #{rnn_modelv2_forward.7} parent=31 // loop_pre_header
                _
              $region34: #{rnn_modelv2_forward.7} parent=31 // loop_header
                %s145 = sphi 0, %s149
                %p146 = scmp.ge.s32.totalorder %s145, 1
                %s150 = sphi %s139, %s139
                %s151 = sphi %s136, %s136
              $region35: #{rnn_modelv2_forward.7} parent=31 // loop_header_branch
                %148 = sbr.rel (%p146) target = $region39
              $region36: #{rnn_modelv2_forward.7} parent=31 // loop_body
                %v152 = vld [vmem:[%s150] sm:$0xff]
                %153 = vst [vmem:[%s151] sm:$0xff] %v152
                %v154 = vld [vmem:[%s150 + $0x8] sm:$0xff]
                %155 = vst [vmem:[%s151 + $0x8] sm:$0xff] %v154
                %v156 = vld [vmem:[%s150 + $0x20] sm:$0xff]
                %157 = vst [vmem:[%s151 + $0x10] sm:$0xff] %v156
                %v158 = vld [vmem:[%s150 + $0x28] sm:$0xff]
                %159 = vst [vmem:[%s151 + $0x18] sm:$0xff] %v158
                %v160 = vld [vmem:[%s150 + $0x40] sm:$0xff]
                %161 = vst [vmem:[%s151 + $0x20] sm:$0xff] %v160
                %v162 = vld [vmem:[%s150 + $0x48] sm:$0xff]
                %163 = vst [vmem:[%s151 + $0x28] sm:$0xff] %v162
                %v164 = vld [vmem:[%s150 + $0x60] sm:$0xff]
                %165 = vst [vmem:[%s151 + $0x30] sm:$0xff] %v164
                %v166 = vld [vmem:[%s150 + $0x68] sm:$0xff]
                %167 = vst [vmem:[%s151 + $0x38] sm:$0xff] %v166
              $region37: #{rnn_modelv2_forward.7} parent=31 // loop_footer
                %s149 = sadd.s32 1, %s145
              $region38: #{rnn_modelv2_forward.7} parent=31 // loop_footer_branch
                %144 = sbr.rel target = $region34
              $region39: #{rnn_modelv2_forward.7} parent=31 // loop_exit
                _
            $region32: #{rnn_modelv2_forward.7} parent=27 // pred_fallthru
              _
            // Predicated region
            $region40: #{rnn_modelv2_forward.7} parent=27 // pred_check
              _
            $region41: #{rnn_modelv2_forward.7} parent=27 // pred_check_branch
              %169 = sbr.rel target = $region43
            $region42: #{rnn_modelv2_forward.7} parent=27 // pred_region
              _
            $region43: #{rnn_modelv2_forward.7} parent=27 // pred_fallthru
              _
          $region28: #{rnn_modelv2_forward.7} parent=23 // pred_fallthru
            _
          %170 = vnop
        $region24: #{rnn_modelv2_forward.7} parent=19 // pred_fallthru
          _
        // Predicated region
        $region44: #{rnn_modelv2_forward.7} parent=19 // pred_check
          %p171 = pneg %p76
        $region45: #{rnn_modelv2_forward.7} parent=19 // pred_check_branch
          %173 = sbr.rel (%p171) target = $region47
        $region46: #{rnn_modelv2_forward.7} parent=19 // pred_region
          %s174 = smul.u32 4, %s9
          %p175 = scmp.lt.s32.totalorder %s174, 7
          %s176 = scalar_select %p175, %s174, 7
          %s177 = scalar_lea.vmem %s2, %s176
          %s178 = smul.u32 4, %s9
        $region47: #{rnn_modelv2_forward.7} parent=19 // pred_fallthru
          _
      $region20: #{rnn_modelv2_forward.7} parent=5 // pred_fallthru
        _
      %p179 = scmp.le.s32.totalorder 1, %s9
      %p180 = scmp.lt.s32.totalorder %s9, 3
      %p181 = pnand %p179, %p180
      %p182 = pneg %p181
      // Predicated region
      $region48: #{rnn_modelv2_forward.7} parent=5 // pred_check
        _
      $region49: #{rnn_modelv2_forward.7} parent=5 // pred_check_branch
        %184 = sbr.rel (%p181) target = $region51
      $region50: #{rnn_modelv2_forward.7} parent=5 // pred_region
        %s185 = ssub.s32 %s9, 1
        %s186 = sand.u32 %s43, 1
        %s187 = sand.u32 %s43, 1
        %s188 = smul.addr %s187, 64
        %s189 = scalar_lea.vmem [#allocation2], %s188
        // Predicated region
        $region52: #{rnn_modelv2_forward.7} parent=50 // pred_check
          %p190 = pneg %p56
        $region53: #{rnn_modelv2_forward.7} parent=50 // pred_check_branch
          %192 = sbr.rel (%p190) target = $region55
        $region54: #{rnn_modelv2_forward.7} parent=50 // pred_region
          _
        $region55: #{rnn_modelv2_forward.7} parent=50 // pred_fallthru
          _
        %p193 = pneg %p30
        %p194 = pneg %p27
        %s195 = sand.u32 %s43, 1
        %s196 = sand.u32 %s43, 1
        %s197 = smul.addr %s196, 64
        %s198 = scalar_lea.vmem [#allocation2], %s197
        %p199 = pneg %p56
        %p200 = pneg %p53
        %s201 = smul.u32 4, %s14
        %p202 = scmp.lt.s32.totalorder %s201, 7
        %s203 = scalar_select %p202, %s201, 7
        %s204 = scalar_lea.vmem %s2, %s203
        %p205 = pneg %p82
        %p206 = pneg %p79
        %p207 = pneg %p108
        %p208 = pneg %p105
        %s209 = sand.u32 %s95, 1
        %s210 = sand.u32 %s95, 1
        %s211 = smul.addr %s210, 256
        %s212 = scalar_lea.vmem [#allocation3], %s211
        %s213 = smul.u32 4, %s14
        %s214 = smul.u32 4, %s14
        %p215 = scmp.lt.s32.totalorder %s214, 7
        %s216 = scalar_select %p215, %s214, 7
        %s217 = scalar_lea.vmem %s2, %s216
        %s218 = smul.u32 4, %s14
        %s219 = smul.u32 4, %s14
        %v221 = vld [vmem:[%s0] sm:$0xff]
        %v222 = vld [vmem:[%s0 + $0x8] sm:$0xff]
        %v223 = vld [vmem:[%s0 + $0x10] sm:$0xff]
        %v224 = vld [vmem:[%s0 + $0x18] sm:$0xff]
        %v225 = vld [vmem:[%s0 + $0x20] sm:$0xff]
        %v226 = vld [vmem:[%s0 + $0x28] sm:$0xff]
        %v227 = vld [vmem:[%s0 + $0x30] sm:$0xff]
        %v228 = vld [vmem:[%s0 + $0x38] sm:$0xff]
        %v229 = vpack.c.bf16 %v222, %v221
        %v230 = vpack.c.bf16 %v224, %v223
        %v231 = vpack.c.bf16 %v226, %v225
        %v232 = vpack.c.bf16 %v228, %v227
        %v233 = vld [vmem:[%s189] sm:$0xff]
        %v234 = vld [vmem:[%s189 + $0x8] sm:$0xff]
        %v235 = vld [vmem:[%s189 + $0x10] sm:$0xff]
        %v236 = vld [vmem:[%s189 + $0x18] sm:$0xff]
        %v237 = vld [vmem:[%s189 + $0x20] sm:$0xff]
        %v238 = vld [vmem:[%s189 + $0x28] sm:$0xff]
        %v239 = vld [vmem:[%s189 + $0x30] sm:$0xff]
        %v240 = vld [vmem:[%s189 + $0x38] sm:$0xff]
        %v241 = vld [vmem:[%s217] sm:$0xf]
        %v243 = vlaneseq
        %v244 = vshrl.u32 %v243, 7
        %v245 = vsub.s32 0, %v244
        %v246 = vrot.slane %v241, %v245
        %v247 = vlaneseq
        %v248 = vshrl.u32 %v247, 7
        %v249 = vsub.s32 1, %v248
        %v250 = vrot.slane %v241, %v249
        %v251 = vlaneseq
        %v252 = vshrl.u32 %v251, 7
        %v253 = vsub.s32 2, %v252
        %v254 = vrot.slane %v241, %v253
        %v255 = vlaneseq
        %v256 = vshrl.u32 %v255, 7
        %v257 = vsub.s32 3, %v256
        %v258 = vrot.slane %v241, %v257
        %v271 = vunpack.c.l.b16 %v233
        %v272 = vunpack.c.h.b16 %v233
        %v273 = vunpack.c.l.b16 %v234
        %v274 = vunpack.c.h.b16 %v234
        %v275 = vunpack.c.l.b16 %v235
        %v276 = vunpack.c.h.b16 %v235
        %v277 = vunpack.c.l.b16 %v236
        %v278 = vunpack.c.h.b16 %v236
        %v279 = vunpack.c.l.b16 %v237
        %v280 = vunpack.c.h.b16 %v237
        %v281 = vunpack.c.l.b16 %v238
        %v282 = vunpack.c.h.b16 %v238
        %v283 = vunpack.c.l.b16 %v239
        %v284 = vunpack.c.h.b16 %v239
        %v285 = vunpack.c.l.b16 %v240
        %v286 = vunpack.c.h.b16 %v240
        %v287 = vpack.c.b16 %v275, %v271
        %v288 = vpack.c.b16 %v276, %v272
        %v289 = vpack.c.b16 %v277, %v273
        %v290 = vpack.c.b16 %v278, %v274
        %v291 = vpack.c.b16 %v283, %v279
        %v292 = vpack.c.b16 %v284, %v280
        %v293 = vpack.c.b16 %v285, %v281
        %v294 = vpack.c.b16 %v286, %v282
        %vm303 = vcmask 261120
        %v305 = vsel %vm303, %v229, 0
        %v308 = vsel %vm303, %v230, 0
        %v311 = vsel %vm303, %v231, 0
        %v314 = vsel %vm303, %v232, 0
        %316 = vmatprep.subr.bf16.mxu0 %v288
        %317 = vmatpush1.bf16.msra.mxu0 %v287
        %318 = vmatprep.subr.bf16.mxu0 %v292
        %319 = vmatpush1.bf16.msra.mxu0 %v291
        %320 = vmatprep.subr.bf16.mxu0 0
        %321 = vmatpush1.bf16.msra.mxu0 0
        %322 = vmatprep.subr.bf16.mxu0 0
        %323 = vmatpush1.bf16.msra.mxu0 0
        %324 = vmatprep.subr.bf16.mxu0 0
        %325 = vmatpush1.bf16.msra.mxu0 0
        %326 = vmatprep.subr.bf16.mxu0 0
        %327 = vmatpush1.bf16.msra.mxu0 0
        %328 = vmatprep.subr.bf16.mxu0 0
        %329 = vmatpush1.bf16.msra.mxu0 0
        %330 = vmatprep.subr.bf16.mxu0 0
        %331 = vmatpush1.bf16.msra.mxu0 0
        %332 = vmatprep.subr.bf16.mxu0 0
        %333 = vmatpush1.bf16.msra.mxu0 0
        %334 = vmatprep.subr.bf16.mxu0 0
        %335 = vmatpush1.bf16.msra.mxu0 0
        %336 = vmatprep.subr.bf16.mxu0 0
        %337 = vmatpush1.bf16.msra.mxu0 0
        %338 = vmatprep.subr.bf16.mxu0 0
        %339 = vmatpush1.bf16.msra.mxu0 0
        %340 = vmatprep.subr.bf16.mxu0 0
        %341 = vmatpush1.bf16.msra.mxu0 0
        %342 = vmatprep.subr.bf16.mxu0 0
        %343 = vmatpush1.bf16.msra.mxu0 0
        %344 = vmatprep.subr.bf16.mxu0 0
        %345 = vmatpush1.bf16.msra.mxu0 0
        %346 = vmatprep.subr.bf16.mxu0 0
        %347 = vmatpush1.bf16.msra.mxu0 0
        %348 = vmatprep.mubr.bf16.mxu0 0
        %349 = vmatmul.mubr.bf16.gmra.mrb[0].mxu0 %v305
        %v350 = vpop.f32.mrb[0].mxu0
        %v351 = vadd.f32 %v246, %v350
        %v352 = vpop.f32.mrb[0].mxu0
        %v353 = vadd.f32 %v250, %v352
        %v354 = vpop.f32.mrb[0].mxu0
        %v355 = vadd.f32 %v246, %v354
        %v356 = vpop.f32.mrb[0].mxu0
        %v357 = vadd.f32 %v250, %v356
        %358 = vmatprep.mubr.bf16.mxu0 0
        %359 = vmatmul.mubr.bf16.gmra.mrb[0].mxu0 %v308
        %v360 = vpop.f32.mrb[0].mxu0
        %v361 = vadd.f32 %v246, %v360
        %v362 = vpop.f32.mrb[0].mxu0
        %v363 = vadd.f32 %v250, %v362
        %v364 = vpop.f32.mrb[0].mxu0
        %v365 = vadd.f32 %v246, %v364
        %v366 = vpop.f32.mrb[0].mxu0
        %v367 = vadd.f32 %v250, %v366
        %368 = vmatprep.mubr.bf16.mxu0 0
        %369 = vmatmul.mubr.bf16.gmra.mrb[0].mxu0 %v311
        %v370 = vpop.f32.mrb[0].mxu0
        %v371 = vadd.f32 %v246, %v370
        %v372 = vpop.f32.mrb[0].mxu0
        %v373 = vadd.f32 %v250, %v372
        %v374 = vpop.f32.mrb[0].mxu0
        %v375 = vadd.f32 %v246, %v374
        %v376 = vpop.f32.mrb[0].mxu0
        %v377 = vadd.f32 %v250, %v376
        %378 = vmatprep.mubr.bf16.mxu0 0
        %379 = vmatmul.mubr.bf16.gmra.mrb[0].mxu0 %v314
        %v380 = vpop.f32.mrb[0].mxu0
        %v381 = vadd.f32 %v246, %v380
        %v382 = vpop.f32.mrb[0].mxu0
        %v383 = vadd.f32 %v250, %v382
        %v384 = vpop.f32.mrb[0].mxu0
        %v385 = vadd.f32 %v246, %v384
        %v386 = vpop.f32.mrb[0].mxu0
        %v387 = vadd.f32 %v250, %v386
        %388 = vdwg.mxu0
        %389 = vmatprep.subr.bf16.mxu0 %v290
        %390 = vmatpush1.bf16.msra.mxu0 %v289
        %391 = vmatprep.subr.bf16.mxu0 %v294
        %392 = vmatpush1.bf16.msra.mxu0 %v293
        %393 = vmatprep.subr.bf16.mxu0 0
        %394 = vmatpush1.bf16.msra.mxu0 0
        %395 = vmatprep.subr.bf16.mxu0 0
        %396 = vmatpush1.bf16.msra.mxu0 0
        %397 = vmatprep.subr.bf16.mxu0 0
        %398 = vmatpush1.bf16.msra.mxu0 0
        %399 = vmatprep.subr.bf16.mxu0 0
        %400 = vmatpush1.bf16.msra.mxu0 0
        %401 = vmatprep.subr.bf16.mxu0 0
        %402 = vmatpush1.bf16.msra.mxu0 0
        %403 = vmatprep.subr.bf16.mxu0 0
        %404 = vmatpush1.bf16.msra.mxu0 0
        %405 = vmatprep.subr.bf16.mxu0 0
        %406 = vmatpush1.bf16.msra.mxu0 0
        %407 = vmatprep.subr.bf16.mxu0 0
        %408 = vmatpush1.bf16.msra.mxu0 0
        %409 = vmatprep.subr.bf16.mxu0 0
        %410 = vmatpush1.bf16.msra.mxu0 0
        %411 = vmatprep.subr.bf16.mxu0 0
        %412 = vmatpush1.bf16.msra.mxu0 0
        %413 = vmatprep.subr.bf16.mxu0 0
        %414 = vmatpush1.bf16.msra.mxu0 0
        %415 = vmatprep.subr.bf16.mxu0 0
        %416 = vmatpush1.bf16.msra.mxu0 0
        %417 = vmatprep.subr.bf16.mxu0 0
        %418 = vmatpush1.bf16.msra.mxu0 0
        %419 = vmatprep.subr.bf16.mxu0 0
        %420 = vmatpush1.bf16.msra.mxu0 0
        %421 = vmatprep.mubr.bf16.mxu0 0
        %422 = vmatmul.mubr.bf16.gmra.mrb[0].mxu0 %v305
        %v423 = vpop.f32.mrb[0].mxu0
        %v424 = vadd.f32 %v254, %v423
        %v425 = vpop.f32.mrb[0].mxu0
        %v426 = vadd.f32 %v258, %v425
        %v427 = vpop.f32.mrb[0].mxu0
        %v428 = vadd.f32 %v254, %v427
        %v429 = vpop.f32.mrb[0].mxu0
        %v430 = vadd.f32 %v258, %v429
        %431 = vmatprep.mubr.bf16.mxu0 0
        %432 = vmatmul.mubr.bf16.gmra.mrb[0].mxu0 %v308
        %v433 = vpop.f32.mrb[0].mxu0
        %v434 = vadd.f32 %v254, %v433
        %v435 = vpop.f32.mrb[0].mxu0
        %v436 = vadd.f32 %v258, %v435
        %v437 = vpop.f32.mrb[0].mxu0
        %v438 = vadd.f32 %v254, %v437
        %v439 = vpop.f32.mrb[0].mxu0
        %v440 = vadd.f32 %v258, %v439
        %441 = vmatprep.mubr.bf16.mxu0 0
        %442 = vmatmul.mubr.bf16.gmra.mrb[0].mxu0 %v311
        %v443 = vpop.f32.mrb[0].mxu0
        %v444 = vadd.f32 %v254, %v443
        %v445 = vpop.f32.mrb[0].mxu0
        %v446 = vadd.f32 %v258, %v445
        %v447 = vpop.f32.mrb[0].mxu0
        %v448 = vadd.f32 %v254, %v447
        %v449 = vpop.f32.mrb[0].mxu0
        %v450 = vadd.f32 %v258, %v449
        %451 = vmatprep.mubr.bf16.mxu0 0
        %452 = vmatmul.mubr.bf16.gmra.mrb[0].mxu0 %v314
        %v453 = vpop.f32.mrb[0].mxu0
        %v454 = vadd.f32 %v254, %v453
        %v455 = vpop.f32.mrb[0].mxu0
        %v456 = vadd.f32 %v258, %v455
        %v457 = vpop.f32.mrb[0].mxu0
        %v458 = vadd.f32 %v254, %v457
        %v459 = vpop.f32.mrb[0].mxu0
        %v460 = vadd.f32 %v258, %v459
        %461 = vdwg.mxu0
        %462 = vst [vmem:[%s212] sm:$0xff] %v351
        %463 = vst [vmem:[%s212 + $0x8] sm:$0xff] %v353
        %464 = vst [vmem:[%s212 + $0x10] sm:$0xff] %v424
        %465 = vst [vmem:[%s212 + $0x18] sm:$0xff] %v426
        %466 = vst [vmem:[%s212 + $0x20] sm:$0xff] %v355
        %467 = vst [vmem:[%s212 + $0x28] sm:$0xff] %v357
        %468 = vst [vmem:[%s212 + $0x30] sm:$0xff] %v428
        %469 = vst [vmem:[%s212 + $0x38] sm:$0xff] %v430
        %470 = vst [vmem:[%s212 + $0x40] sm:$0xff] %v361
        %471 = vst [vmem:[%s212 + $0x48] sm:$0xff] %v363
        %472 = vst [vmem:[%s212 + $0x50] sm:$0xff] %v434
        %473 = vst [vmem:[%s212 + $0x58] sm:$0xff] %v436
        %474 = vst [vmem:[%s212 + $0x60] sm:$0xff] %v365
        %475 = vst [vmem:[%s212 + $0x68] sm:$0xff] %v367
        %476 = vst [vmem:[%s212 + $0x70] sm:$0xff] %v438
        %477 = vst [vmem:[%s212 + $0x78] sm:$0xff] %v440
        %478 = vst [vmem:[%s212 + $0x80] sm:$0xff] %v371
        %479 = vst [vmem:[%s212 + $0x88] sm:$0xff] %v373
        %480 = vst [vmem:[%s212 + $0x90] sm:$0xff] %v444
        %481 = vst [vmem:[%s212 + $0x98] sm:$0xff] %v446
        %482 = vst [vmem:[%s212 + $0xa0] sm:$0xff] %v375
        %483 = vst [vmem:[%s212 + $0xa8] sm:$0xff] %v377
        %484 = vst [vmem:[%s212 + $0xb0] sm:$0xff] %v448
        %485 = vst [vmem:[%s212 + $0xb8] sm:$0xff] %v450
        %486 = vst [vmem:[%s212 + $0xc0] sm:$0xff] %v381
        %487 = vst [vmem:[%s212 + $0xc8] sm:$0xff] %v383
        %488 = vst [vmem:[%s212 + $0xd0] sm:$0xff] %v454
        %489 = vst [vmem:[%s212 + $0xd8] sm:$0xff] %v456
        %490 = vst [vmem:[%s212 + $0xe0] sm:$0xff] %v385
        %491 = vst [vmem:[%s212 + $0xe8] sm:$0xff] %v387
        %492 = vst [vmem:[%s212 + $0xf0] sm:$0xff] %v458
        %493 = vst [vmem:[%s212 + $0xf8] sm:$0xff] %v460
        %s494 = sand.u32 %s95, 1
        %s495 = sand.u32 %s95, 1
        %s496 = smul.addr %s495, 256
        %s497 = scalar_lea.vmem [#allocation3], %s496
        // Predicated region
        $region56: #{rnn_modelv2_forward.7} parent=50 // pred_check
          %p498 = pneg %p105
        $region57: #{rnn_modelv2_forward.7} parent=50 // pred_check_branch
          %500 = sbr.rel (%p498) target = $region59
        $region58: #{rnn_modelv2_forward.7} parent=50 // pred_region
          %s501 = smul.u32 4, %s14
          %s502 = smul.addr %s501, 8
          %s503 = scalar_lea.vmem %s3, %s502
          // Predicated region
          $region60: #{rnn_modelv2_forward.7} parent=58 // pred_check
            _
          $region61: #{rnn_modelv2_forward.7} parent=58 // pred_check_branch
            %505 = sbr.rel (0) target = $region63
          $region62: #{rnn_modelv2_forward.7} parent=58 // pred_region
            // Predicated region
            $region64: #{rnn_modelv2_forward.7} parent=62 // pred_check
              _
            $region65: #{rnn_modelv2_forward.7} parent=62 // pred_check_branch
              %507 = sbr.rel (0) target = $region67
            $region66: #{rnn_modelv2_forward.7} parent=62 // pred_region
              loop: start=0, step=1, limit=1
              $region68: #{rnn_modelv2_forward.7} parent=66 // loop_pre_header
                _
              $region69: #{rnn_modelv2_forward.7} parent=66 // loop_header
                %s509 = sphi 0, %s513
                %p510 = scmp.ge.s32.totalorder %s509, 1
                %s514 = sphi %s497, %s497
                %s515 = sphi %s503, %s503
              $region70: #{rnn_modelv2_forward.7} parent=66 // loop_header_branch
                %512 = sbr.rel (%p510) target = $region74
              $region71: #{rnn_modelv2_forward.7} parent=66 // loop_body
                %v516 = vld [vmem:[%s514] sm:$0xff]
                %517 = vst [vmem:[%s515] sm:$0xff] %v516
                %v518 = vld [vmem:[%s514 + $0x8] sm:$0xff]
                %519 = vst [vmem:[%s515 + $0x8] sm:$0xff] %v518
                %v520 = vld [vmem:[%s514 + $0x10] sm:$0xff]
                %521 = vst [vmem:[%s515 + $0x10] sm:$0xff] %v520
                %v522 = vld [vmem:[%s514 + $0x18] sm:$0xff]
                %523 = vst [vmem:[%s515 + $0x18] sm:$0xff] %v522
                %v524 = vld [vmem:[%s514 + $0x20] sm:$0xff]
                %525 = vst [vmem:[%s515 + $0x40] sm:$0xff] %v524
                %v526 = vld [vmem:[%s514 + $0x28] sm:$0xff]
                %527 = vst [vmem:[%s515 + $0x48] sm:$0xff] %v526
                %v528 = vld [vmem:[%s514 + $0x30] sm:$0xff]
                %529 = vst [vmem:[%s515 + $0x50] sm:$0xff] %v528
                %v530 = vld [vmem:[%s514 + $0x38] sm:$0xff]
                %531 = vst [vmem:[%s515 + $0x58] sm:$0xff] %v530
                %v532 = vld [vmem:[%s514 + $0x40] sm:$0xff]
                %533 = vst [vmem:[%s515 + $0x80] sm:$0xff] %v532
                %v534 = vld [vmem:[%s514 + $0x48] sm:$0xff]
                %535 = vst [vmem:[%s515 + $0x88] sm:$0xff] %v534
                %v536 = vld [vmem:[%s514 + $0x50] sm:$0xff]
                %537 = vst [vmem:[%s515 + $0x90] sm:$0xff] %v536
                %v538 = vld [vmem:[%s514 + $0x58] sm:$0xff]
                %539 = vst [vmem:[%s515 + $0x98] sm:$0xff] %v538
                %v540 = vld [vmem:[%s514 + $0x60] sm:$0xff]
                %541 = vst [vmem:[%s515 + $0xc0] sm:$0xff] %v540
                %v542 = vld [vmem:[%s514 + $0x68] sm:$0xff]
                %543 = vst [vmem:[%s515 + $0xc8] sm:$0xff] %v542
                %v544 = vld [vmem:[%s514 + $0x70] sm:$0xff]
                %545 = vst [vmem:[%s515 + $0xd0] sm:$0xff] %v544
                %v546 = vld [vmem:[%s514 + $0x78] sm:$0xff]
                %547 = vst [vmem:[%s515 + $0xd8] sm:$0xff] %v546
                %v548 = vld [vmem:[%s514 + $0x80] sm:$0xff]
                %549 = vst [vmem:[%s515 + $0x100] sm:$0xff] %v548
                %v550 = vld [vmem:[%s514 + $0x88] sm:$0xff]
                %551 = vst [vmem:[%s515 + $0x108] sm:$0xff] %v550
                %v552 = vld [vmem:[%s514 + $0x90] sm:$0xff]
                %553 = vst [vmem:[%s515 + $0x110] sm:$0xff] %v552
                %v554 = vld [vmem:[%s514 + $0x98] sm:$0xff]
                %555 = vst [vmem:[%s515 + $0x118] sm:$0xff] %v554
                %v556 = vld [vmem:[%s514 + $0xa0] sm:$0xff]
                %557 = vst [vmem:[%s515 + $0x140] sm:$0xff] %v556
                %v558 = vld [vmem:[%s514 + $0xa8] sm:$0xff]
                %559 = vst [vmem:[%s515 + $0x148] sm:$0xff] %v558
                %v560 = vld [vmem:[%s514 + $0xb0] sm:$0xff]
                %561 = vst [vmem:[%s515 + $0x150] sm:$0xff] %v560
                %v562 = vld [vmem:[%s514 + $0xb8] sm:$0xff]
                %563 = vst [vmem:[%s515 + $0x158] sm:$0xff] %v562
                %v564 = vld [vmem:[%s514 + $0xc0] sm:$0xff]
                %565 = vst [vmem:[%s515 + $0x180] sm:$0xff] %v564
                %v566 = vld [vmem:[%s514 + $0xc8] sm:$0xff]
                %567 = vst [vmem:[%s515 + $0x188] sm:$0xff] %v566
                %v568 = vld [vmem:[%s514 + $0xd0] sm:$0xff]
                %569 = vst [vmem:[%s515 + $0x190] sm:$0xff] %v568
                %v570 = vld [vmem:[%s514 + $0xd8] sm:$0xff]
                %571 = vst [vmem:[%s515 + $0x198] sm:$0xff] %v570
                %v572 = vld [vmem:[%s514 + $0xe0] sm:$0xff]
                %573 = vst [vmem:[%s515 + $0x1c0] sm:$0xff] %v572
                %v574 = vld [vmem:[%s514 + $0xe8] sm:$0xff]
                %575 = vst [vmem:[%s515 + $0x1c8] sm:$0xff] %v574
                %v576 = vld [vmem:[%s514 + $0xf0] sm:$0xff]
                %577 = vst [vmem:[%s515 + $0x1d0] sm:$0xff] %v576
                %v578 = vld [vmem:[%s514 + $0xf8] sm:$0xff]
                %579 = vst [vmem:[%s515 + $0x1d8] sm:$0xff] %v578
              $region72: #{rnn_modelv2_forward.7} parent=66 // loop_footer
                %s513 = sadd.s32 1, %s509
              $region73: #{rnn_modelv2_forward.7} parent=66 // loop_footer_branch
                %508 = sbr.rel target = $region69
              $region74: #{rnn_modelv2_forward.7} parent=66 // loop_exit
                _
            $region67: #{rnn_modelv2_forward.7} parent=62 // pred_fallthru
              _
            // Predicated region
            $region75: #{rnn_modelv2_forward.7} parent=62 // pred_check
              _
            $region76: #{rnn_modelv2_forward.7} parent=62 // pred_check_branch
              %581 = sbr.rel target = $region78
            $region77: #{rnn_modelv2_forward.7} parent=62 // pred_region
              _
            $region78: #{rnn_modelv2_forward.7} parent=62 // pred_fallthru
              _
          $region63: #{rnn_modelv2_forward.7} parent=58 // pred_fallthru
            _
          %582 = vnop
        $region59: #{rnn_modelv2_forward.7} parent=50 // pred_fallthru
          _
      $region51: #{rnn_modelv2_forward.7} parent=5 // pred_fallthru
        _
      %p583 = scmp.le.s32.totalorder 2, %s9
      // Predicated region
      $region79: #{rnn_modelv2_forward.7} parent=5 // pred_check
        %p584 = pneg %p583
      $region80: #{rnn_modelv2_forward.7} parent=5 // pred_check_branch
        %586 = sbr.rel (%p584) target = $region82
      $region81: #{rnn_modelv2_forward.7} parent=5 // pred_region
        %s587 = ssub.s32 %s9, 2
        // Predicated region
        $region83: #{rnn_modelv2_forward.7} parent=81 // pred_check
          %p588 = pneg %p111
        $region84: #{rnn_modelv2_forward.7} parent=81 // pred_check_branch
          %590 = sbr.rel (%p588) target = $region86
        $region85: #{rnn_modelv2_forward.7} parent=81 // pred_region
          %s591 = sand.u32 %s96, 1
          %s592 = sand.u32 %s96, 1
          %s593 = smul.addr %s592, 256
          %s594 = scalar_lea.vmem [#allocation3], %s593
        $region86: #{rnn_modelv2_forward.7} parent=81 // pred_fallthru
          _
      $region82: #{rnn_modelv2_forward.7} parent=5 // pred_fallthru
        _
    $region6: #{rnn_modelv2_forward.7} parent=1 // loop_footer
      %s13 = sadd.s32 1, %s9
    $region7: #{rnn_modelv2_forward.7} parent=1 // loop_footer_branch
      %8 = sbr.rel target = $region3
    $region8: #{rnn_modelv2_forward.7} parent=1 // loop_exit
      _

// kernel: rnn_modelv2_forward.8
$region0: #{rnn_modelv2_forward.8}
  #allocation0 [shape = 'u32[]', space=smem, size = 0x4, offset = 0x4, fixed_abs, tag = 'smem constant byte address 0x4 - core index']
  #allocation1 [shape = 'u32[144,128]{1,0:T(1,128)}', space=vmem, size = 0x12000, scoped, tag = 'internal scratch']
  #allocation2 [shape = 'f32[8,256]{1,0:T(8,128)}', space=vmem, size = 0x2000, scoped, tag = 'scratch operand']
  #allocation3 [shape = 'f32[8,256]{1,0:T(8,128)}', space=vmem, size = 0x2000, scoped, tag = 'scratch operand']
  %s0 = inlined_call_operand.vmem [shape: f32[8,8,1024], index: 0, kind: input, shape index: {}]
  %s1 = inlined_call_operand.hbm [shape: bf16[256,1024], index: 1, kind: input, shape index: {}]
  %s2 = inlined_call_operand.vmem [shape: f32[8,8,256], index: 2, kind: output, shape index: {}]
  %s3 = sld [smem:[#allocation0]]
  $region49: #{rnn_modelv2_forward.8} parent=0
    _
  %s5 = ssub.s32 1, %s3
  %s6 = scalar_select 0, %s5, %s3
  $region1: #{rnn_modelv2_forward.8} parent=0
    #allocation4 [shape = 'u8[524288]{0}', space=vmem, size = 0x80000, scoped, tag = 'input window, operand 1, single buffered']
    #allocation5 [shape = 's32[2]{0}', space=sflag, size = 0x8, scoped, tag = 'scoped memory for rnn_modelv2_forward.8']
    %7 = vsyncpa [#allocation5], 0
    loop: start=0, step=1, limit=10
    $region2: #{rnn_modelv2_forward.8} parent=1 // loop_pre_header
      _
    $region3: #{rnn_modelv2_forward.8} parent=1 // loop_header
      %s9 = sphi 0, %s13
      %p10 = scmp.ge.s32.totalorder %s9, 10
      %s19 = sphi 0, %s21
      %s22 = sphi 0, %s19
      %s23 = sphi 0, %s22
      %s39 = sphi 0, %s23
      %s43 = sphi 0, %s43
      %s45 = sphi 0, %s43
      %s46 = sphi 0, %s45
      %s60 = sphi 0, %s46
      %s66 = sphi 0, %s68
      %s69 = sphi 0, %s66
      %s70 = sphi 0, %s69
      %s86 = sphi 0, %s70
    $region4: #{rnn_modelv2_forward.8} parent=1 // loop_header_branch
      %12 = sbr.rel (%p10) target = $region8
    $region5: #{rnn_modelv2_forward.8} parent=1 // loop_body
      %s14 = ssub.s32 %s9, 1
      %s15 = ssub.s32 %s9, 2
      %s16 = sadd.s32 %s9, 1
      %s17 = ssub.s32 %s9, %s16
      %p18 = scmp.eq.s32.totalorder %s17, 0
      %s20 = sadd.s32 %s19, 1
      %s21 = scalar_select %p18, %s19, %s20
      %p24 = pneg %p18
      %p25 = scmp.eq.s32.totalorder %s9, 7
      %p26 = por %p24, %p25
      %p27 = scmp.ne.s32.totalorder %s19, %s22
      %p28 = scmp.eq.s32.totalorder %s9, 0
      %p29 = por %p27, %p28
      %p30 = scmp.ne.s32.totalorder %s19, %s22
      %p31 = scmp.eq.s32.totalorder %s14, 7
      %p32 = por %p30, %p31
      %p33 = scmp.ne.s32.totalorder %s22, %s23
      %p34 = scmp.eq.s32.totalorder %s14, 0
      %p35 = por %p33, %p34
      %p36 = scmp.ne.s32.totalorder %s22, %s23
      %p37 = scmp.eq.s32.totalorder %s15, 7
      %p38 = por %p36, %p37
      %p40 = scmp.ne.s32.totalorder %s23, %s39
      %p41 = scmp.eq.s32.totalorder %s15, 0
      %p42 = por %p40, %p41
      %s44 = sadd.s32 %s43, 1
      %p47 = scmp.eq.s32.totalorder %s9, 7
      %p48 = scmp.ne.s32.totalorder %s43, %s45
      %p49 = scmp.eq.s32.totalorder %s9, 0
      %p50 = por %p48, %p49
      %p51 = scmp.ne.s32.totalorder %s43, %s45
      %p52 = scmp.eq.s32.totalorder %s14, 7
      %p53 = por %p51, %p52
      %p54 = scmp.ne.s32.totalorder %s45, %s46
      %p55 = scmp.eq.s32.totalorder %s14, 0
      %p56 = por %p54, %p55
      %p57 = scmp.ne.s32.totalorder %s45, %s46
      %p58 = scmp.eq.s32.totalorder %s15, 7
      %p59 = por %p57, %p58
      %p61 = scmp.ne.s32.totalorder %s46, %s60
      %p62 = scmp.eq.s32.totalorder %s15, 0
      %p63 = por %p61, %p62
      %s64 = ssub.s32 %s9, %s16
      %p65 = scmp.eq.s32.totalorder %s64, 0
      %s67 = sadd.s32 %s66, 1
      %s68 = scalar_select %p65, %s66, %s67
      %p71 = pneg %p65
      %p72 = scmp.eq.s32.totalorder %s9, 7
      %p73 = por %p71, %p72
      %p74 = scmp.ne.s32.totalorder %s66, %s69
      %p75 = scmp.eq.s32.totalorder %s9, 0
      %p76 = por %p74, %p75
      %p77 = scmp.ne.s32.totalorder %s66, %s69
      %p78 = scmp.eq.s32.totalorder %s14, 7
      %p79 = por %p77, %p78
      %p80 = scmp.ne.s32.totalorder %s69, %s70
      %p81 = scmp.eq.s32.totalorder %s14, 0
      %p82 = por %p80, %p81
      %p83 = scmp.ne.s32.totalorder %s69, %s70
      %p84 = scmp.eq.s32.totalorder %s15, 7
      %p85 = por %p83, %p84
      %p87 = scmp.ne.s32.totalorder %s70, %s86
      %p88 = scmp.eq.s32.totalorder %s15, 0
      %p89 = por %p87, %p88
      %p90 = scmp.le.s32.totalorder 1, %s9
      %p91 = scmp.lt.s32.totalorder %s9, 9
      %p92 = pnand %p90, %p91
      %p93 = pneg %p92
      // Predicated region
      $region9: #{rnn_modelv2_forward.8} parent=5 // pred_check
        _
      $region10: #{rnn_modelv2_forward.8} parent=5 // pred_check_branch
        %95 = sbr.rel (%p92) target = $region12
      $region11: #{rnn_modelv2_forward.8} parent=5 // pred_region
        %s96 = ssub.s32 %s9, 1
        // Predicated region
        $region13: #{rnn_modelv2_forward.8} parent=11 // pred_check
          %p97 = pneg %p56
        $region14: #{rnn_modelv2_forward.8} parent=11 // pred_check_branch
          %99 = sbr.rel (%p97) target = $region16
        $region15: #{rnn_modelv2_forward.8} parent=11 // pred_region
          %s101 = ssub.s32 16384, 16384
          %102 = vsyncadd [#allocation5], %s101
          %s103 = sshll.u32 [#allocation4], 4
          %s104 = int_to_ptr.vmem [resolvable:$true] %s103
          %109 = dma.hbm_to_vmem [thread:$0]  %s1, 16384, %s104, [#allocation5], 512, 512, 32
        $region16: #{rnn_modelv2_forward.8} parent=11 // pred_fallthru
          _
      $region12: #{rnn_modelv2_forward.8} parent=5 // pred_fallthru
        _
      %p110 = scmp.lt.s32.totalorder %s9, 8
      // Predicated region
      $region17: #{rnn_modelv2_forward.8} parent=5 // pred_check
        %p111 = pneg %p110
      $region18: #{rnn_modelv2_forward.8} parent=5 // pred_check_branch
        %113 = sbr.rel (%p111) target = $region20
      $region19: #{rnn_modelv2_forward.8} parent=5 // pred_region
        // Predicated region
        $region21: #{rnn_modelv2_forward.8} parent=19 // pred_check
          %p114 = pneg %p29
        $region22: #{rnn_modelv2_forward.8} parent=19 // pred_check_branch
          %116 = sbr.rel (%p114) target = $region24
        $region23: #{rnn_modelv2_forward.8} parent=19 // pred_region
          %p117 = scmp.lt.s32.totalorder %s9, 7
          %s118 = scalar_select %p117, %s9, 7
          %s119 = smul.addr %s118, 8
          %s120 = smul.addr %s119, 8
          %s121 = scalar_lea.vmem %s0, %s120
        $region24: #{rnn_modelv2_forward.8} parent=19 // pred_fallthru
          _
      $region20: #{rnn_modelv2_forward.8} parent=5 // pred_fallthru
        _
      %p122 = scmp.le.s32.totalorder 1, %s9
      %p123 = scmp.lt.s32.totalorder %s9, 9
      %p124 = pnand %p122, %p123
      %p125 = pneg %p124
      // Predicated region
      $region25: #{rnn_modelv2_forward.8} parent=5 // pred_check
        _
      $region26: #{rnn_modelv2_forward.8} parent=5 // pred_check_branch
        %127 = sbr.rel (%p124) target = $region28
      $region27: #{rnn_modelv2_forward.8} parent=5 // pred_region
        %s128 = ssub.s32 %s9, 1
        // Predicated region
        $region29: #{rnn_modelv2_forward.8} parent=27 // pred_check
          %p129 = pneg %p56
        $region30: #{rnn_modelv2_forward.8} parent=27 // pred_check_branch
          %131 = sbr.rel (%p129) target = $region32
        $region31: #{rnn_modelv2_forward.8} parent=27 // pred_region
          %132 = dma.done [#allocation5], 16384
        $region32: #{rnn_modelv2_forward.8} parent=27 // pred_fallthru
          _
        %p133 = scmp.lt.s32.totalorder %s14, 7
        %s134 = scalar_select %p133, %s14, 7
        %s135 = smul.addr %s134, 8
        %s136 = smul.addr %s135, 8
        %s137 = scalar_lea.vmem %s0, %s136
        %p138 = pneg %p35
        %p139 = pneg %p32
        %p140 = pneg %p56
        %p141 = pneg %p53
        %p142 = pneg %p82
        %p143 = pneg %p79
        %p144 = scmp.lt.s32.totalorder %s14, 7
        %s145 = scalar_select %p144, %s14, 7
        %s146 = smul.addr %s145, 2
        %s147 = smul.addr %s146, 8
        %s148 = scalar_lea.vmem %s2, %s147
        %p149 = scmp.lt.s32.totalorder %s14, 7
        %s150 = scalar_select %p149, %s14, 7
        %s151 = smul.addr %s150, 8
        %s152 = smul.addr %s151, 8
        %s153 = scalar_lea.vmem %s0, %s152
        %p154 = scmp.lt.s32.totalorder %s14, 7
        %s155 = scalar_select %p154, %s14, 7
        %s156 = smul.addr %s155, 2
        %s157 = smul.addr %s156, 8
        %s158 = scalar_lea.vmem %s2, %s157
        %p159 = scmp.eq.s32.totalorder %s14, 0
        // Predicated region
        $region33: #{rnn_modelv2_forward.8} parent=27 // pred_check
          %p160 = pneg %p159
        $region34: #{rnn_modelv2_forward.8} parent=27 // pred_check_branch
          %162 = sbr.rel (%p160) target = $region36
        $region35: #{rnn_modelv2_forward.8} parent=27 // pred_region
          %163 = vst [vmem:[#allocation2] sm:$0xff] 0.0
          %164 = vst [vmem:[#allocation2 + $0x8] sm:$0xff] 0.0
          %165 = vst [vmem:[#allocation3] sm:$0xff] 0.0
          %166 = vst [vmem:[#allocation3 + $0x8] sm:$0xff] 0.0
        $region36: #{rnn_modelv2_forward.8} parent=27 // pred_fallthru
          _
        %v167 = vld [vmem:[#allocation2] sm:$0xff]
        %v168 = vld [vmem:[#allocation2 + $0x8] sm:$0xff]
        %v169 = vld [vmem:[%s153] sm:$0xff]
        %v170 = vld [vmem:[%s153 + $0x8] sm:$0xff]
        %v171 = vld [vmem:[%s153 + $0x10] sm:$0xff]
        %v172 = vld [vmem:[%s153 + $0x18] sm:$0xff]
        %v173 = vld [vmem:[%s153 + $0x20] sm:$0xff]
        %v174 = vld [vmem:[%s153 + $0x28] sm:$0xff]
        %v175 = vld [vmem:[%s153 + $0x30] sm:$0xff]
        %v176 = vld [vmem:[%s153 + $0x38] sm:$0xff]
        %v177 = vpack.c.bf16 %v167, %v167
        %v178 = vpack.c.bf16 %v168, %v168
        %v179 = vld [vmem:[#allocation4] sm:$0xff]
        %v180 = vld [vmem:[#allocation4 + $0x8] sm:$0xff]
        %v181 = vld [vmem:[#allocation4 + $0x10] sm:$0xff]
        %v182 = vld [vmem:[#allocation4 + $0x18] sm:$0xff]
        %v183 = vld [vmem:[#allocation4 + $0x20] sm:$0xff]
        %v184 = vld [vmem:[#allocation4 + $0x28] sm:$0xff]
        %v185 = vld [vmem:[#allocation4 + $0x30] sm:$0xff]
        %v186 = vld [vmem:[#allocation4 + $0x38] sm:$0xff]
        %v187 = vld [vmem:[#allocation4 + $0x40] sm:$0xff]
        %v188 = vld [vmem:[#allocation4 + $0x48] sm:$0xff]
        %v189 = vld [vmem:[#allocation4 + $0x50] sm:$0xff]
        %v190 = vld [vmem:[#allocation4 + $0x58] sm:$0xff]
        %v191 = vld [vmem:[#allocation4 + $0x60] sm:$0xff]
        %v192 = vld [vmem:[#allocation4 + $0x68] sm:$0xff]
        %v193 = vld [vmem:[#allocation4 + $0x70] sm:$0xff]
        %v194 = vld [vmem:[#allocation4 + $0x78] sm:$0xff]
        %v195 = vld [vmem:[#allocation4 + $0x80] sm:$0xff]
        %v196 = vld [vmem:[#allocation4 + $0x88] sm:$0xff]
        %v197 = vld [vmem:[#allocation4 + $0x90] sm:$0xff]
        %v198 = vld [vmem:[#allocation4 + $0x98] sm:$0xff]
        %v199 = vld [vmem:[#allocation4 + $0xa0] sm:$0xff]
        %v200 = vld [vmem:[#allocation4 + $0xa8] sm:$0xff]
        %v201 = vld [vmem:[#allocation4 + $0xb0] sm:$0xff]
        %v202 = vld [vmem:[#allocation4 + $0xb8] sm:$0xff]
        %v203 = vld [vmem:[#allocation4 + $0xc0] sm:$0xff]
        %v204 = vld [vmem:[#allocation4 + $0xc8] sm:$0xff]
        %v205 = vld [vmem:[#allocation4 + $0xd0] sm:$0xff]
        %v206 = vld [vmem:[#allocation4 + $0xd8] sm:$0xff]
        %v207 = vld [vmem:[#allocation4 + $0xe0] sm:$0xff]
        %v208 = vld [vmem:[#allocation4 + $0xe8] sm:$0xff]
        %v209 = vld [vmem:[#allocation4 + $0xf0] sm:$0xff]
        %v210 = vld [vmem:[#allocation4 + $0xf8] sm:$0xff]
        %v211 = vld [vmem:[#allocation4 + $0x100] sm:$0xff]
        %v212 = vld [vmem:[#allocation4 + $0x108] sm:$0xff]
        %v213 = vld [vmem:[#allocation4 + $0x110] sm:$0xff]
        %v214 = vld [vmem:[#allocation4 + $0x118] sm:$0xff]
        %v215 = vld [vmem:[#allocation4 + $0x120] sm:$0xff]
        %v216 = vld [vmem:[#allocation4 + $0x128] sm:$0xff]
        %v217 = vld [vmem:[#allocation4 + $0x130] sm:$0xff]
        %v218 = vld [vmem:[#allocation4 + $0x138] sm:$0xff]
        %v219 = vld [vmem:[#allocation4 + $0x140] sm:$0xff]
        %v220 = vld [vmem:[#allocation4 + $0x148] sm:$0xff]
        %v221 = vld [vmem:[#allocation4 + $0x150] sm:$0xff]
        %v222 = vld [vmem:[#allocation4 + $0x158] sm:$0xff]
        %v223 = vld [vmem:[#allocation4 + $0x160] sm:$0xff]
        %v224 = vld [vmem:[#allocation4 + $0x168] sm:$0xff]
        %v225 = vld [vmem:[#allocation4 + $0x170] sm:$0xff]
        %v226 = vld [vmem:[#allocation4 + $0x178] sm:$0xff]
        %v227 = vld [vmem:[#allocation4 + $0x180] sm:$0xff]
        %v228 = vld [vmem:[#allocation4 + $0x188] sm:$0xff]
        %v229 = vld [vmem:[#allocation4 + $0x190] sm:$0xff]
        %v230 = vld [vmem:[#allocation4 + $0x198] sm:$0xff]
        %v231 = vld [vmem:[#allocation4 + $0x1a0] sm:$0xff]
        %v232 = vld [vmem:[#allocation4 + $0x1a8] sm:$0xff]
        %v233 = vld [vmem:[#allocation4 + $0x1b0] sm:$0xff]
        %v234 = vld [vmem:[#allocation4 + $0x1b8] sm:$0xff]
        %v235 = vld [vmem:[#allocation4 + $0x1c0] sm:$0xff]
        %v236 = vld [vmem:[#allocation4 + $0x1c8] sm:$0xff]
        %v237 = vld [vmem:[#allocation4 + $0x1d0] sm:$0xff]
        %v238 = vld [vmem:[#allocation4 + $0x1d8] sm:$0xff]
        %v239 = vld [vmem:[#allocation4 + $0x1e0] sm:$0xff]
        %v240 = vld [vmem:[#allocation4 + $0x1e8] sm:$0xff]
        %v241 = vld [vmem:[#allocation4 + $0x1f0] sm:$0xff]
        %v242 = vld [vmem:[#allocation4 + $0x1f8] sm:$0xff]
        %v243 = vld [vmem:[#allocation4 + $0x200] sm:$0xff]
        %v244 = vld [vmem:[#allocation4 + $0x208] sm:$0xff]
        %v245 = vld [vmem:[#allocation4 + $0x210] sm:$0xff]
        %v246 = vld [vmem:[#allocation4 + $0x218] sm:$0xff]
        %v247 = vld [vmem:[#allocation4 + $0x220] sm:$0xff]
        %v248 = vld [vmem:[#allocation4 + $0x228] sm:$0xff]
        %v249 = vld [vmem:[#allocation4 + $0x230] sm:$0xff]
        %v250 = vld [vmem:[#allocation4 + $0x238] sm:$0xff]
        %v251 = vld [vmem:[#allocation4 + $0x240] sm:$0xff]
        %v252 = vld [vmem:[#allocation4 + $0x248] sm:$0xff]
        %v253 = vld [vmem:[#allocation4 + $0x250] sm:$0xff]
        %v254 = vld [vmem:[#allocation4 + $0x258] sm:$0xff]
        %v255 = vld [vmem:[#allocation4 + $0x260] sm:$0xff]
        %v256 = vld [vmem:[#allocation4 + $0x268] sm:$0xff]
        %v257 = vld [vmem:[#allocation4 + $0x270] sm:$0xff]
        %v258 = vld [vmem:[#allocation4 + $0x278] sm:$0xff]
        %v259 = vld [vmem:[#allocation4 + $0x280] sm:$0xff]
        %v260 = vld [vmem:[#allocation4 + $0x288] sm:$0xff]
        %v261 = vld [vmem:[#allocation4 + $0x290] sm:$0xff]
        %v262 = vld [vmem:[#allocation4 + $0x298] sm:$0xff]
        %v263 = vld [vmem:[#allocation4 + $0x2a0] sm:$0xff]
        %v264 = vld [vmem:[#allocation4 + $0x2a8] sm:$0xff]
        %v265 = vld [vmem:[#allocation4 + $0x2b0] sm:$0xff]
        %v266 = vld [vmem:[#allocation4 + $0x2b8] sm:$0xff]
        %v267 = vld [vmem:[#allocation4 + $0x2c0] sm:$0xff]
        %v268 = vld [vmem:[#allocation4 + $0x2c8] sm:$0xff]
        %v269 = vld [vmem:[#allocation4 + $0x2d0] sm:$0xff]
        %v270 = vld [vmem:[#allocation4 + $0x2d8] sm:$0xff]
        %v271 = vld [vmem:[#allocation4 + $0x2e0] sm:$0xff]
        %v272 = vld [vmem:[#allocation4 + $0x2e8] sm:$0xff]
        %v273 = vld [vmem:[#allocation4 + $0x2f0] sm:$0xff]
        %v274 = vld [vmem:[#allocation4 + $0x2f8] sm:$0xff]
        %v275 = vld [vmem:[#allocation4 + $0x300] sm:$0xff]
        %v276 = vld [vmem:[#allocation4 + $0x308] sm:$0xff]
        %v277 = vld [vmem:[#allocation4 + $0x310] sm:$0xff]
        %v278 = vld [vmem:[#allocation4 + $0x318] sm:$0xff]
        %v279 = vld [vmem:[#allocation4 + $0x320] sm:$0xff]
        %v280 = vld [vmem:[#allocation4 + $0x328] sm:$0xff]
        %v281 = vld [vmem:[#allocation4 + $0x330] sm:$0xff]
        %v282 = vld [vmem:[#allocation4 + $0x338] sm:$0xff]
        %v283 = vld [vmem:[#allocation4 + $0x340] sm:$0xff]
        %v284 = vld [vmem:[#allocation4 + $0x348] sm:$0xff]
        %v285 = vld [vmem:[#allocation4 + $0x350] sm:$0xff]
        %v286 = vld [vmem:[#allocation4 + $0x358] sm:$0xff]
        %v287 = vld [vmem:[#allocation4 + $0x360] sm:$0xff]
        %v288 = vld [vmem:[#allocation4 + $0x368] sm:$0xff]
        %v289 = vld [vmem:[#allocation4 + $0x370] sm:$0xff]
        %v290 = vld [vmem:[#allocation4 + $0x378] sm:$0xff]
        %v291 = vld [vmem:[#allocation4 + $0x380] sm:$0xff]
        %v292 = vld [vmem:[#allocation4 + $0x388] sm:$0xff]
        %v293 = vld [vmem:[#allocation4 + $0x390] sm:$0xff]
        %v294 = vld [vmem:[#allocation4 + $0x398] sm:$0xff]
        %v295 = vld [vmem:[#allocation4 + $0x3a0] sm:$0xff]
        %v296 = vld [vmem:[#allocation4 + $0x3a8] sm:$0xff]
        %v297 = vld [vmem:[#allocation4 + $0x3b0] sm:$0xff]
        %v298 = vld [vmem:[#allocation4 + $0x3b8] sm:$0xff]
        %v299 = vld [vmem:[#allocation4 + $0x3c0] sm:$0xff]
        %v300 = vld [vmem:[#allocation4 + $0x3c8] sm:$0xff]
        %v301 = vld [vmem:[#allocation4 + $0x3d0] sm:$0xff]
        %v302 = vld [vmem:[#allocation4 + $0x3d8] sm:$0xff]
        %v303 = vld [vmem:[#allocation4 + $0x3e0] sm:$0xff]
        %v304 = vld [vmem:[#allocation4 + $0x3e8] sm:$0xff]
        %v305 = vld [vmem:[#allocation4 + $0x3f0] sm:$0xff]
        %v306 = vld [vmem:[#allocation4 + $0x3f8] sm:$0xff]
        %v435 = vunpack.c.l.b16 %v179
        %v436 = vunpack.c.h.b16 %v179
        %v437 = vunpack.c.l.b16 %v180
        %v438 = vunpack.c.h.b16 %v180
        %v439 = vunpack.c.l.b16 %v181
        %v440 = vunpack.c.h.b16 %v181
        %v441 = vunpack.c.l.b16 %v182
        %v442 = vunpack.c.h.b16 %v182
        %v443 = vunpack.c.l.b16 %v183
        %v444 = vunpack.c.h.b16 %v183
        %v445 = vunpack.c.l.b16 %v184
        %v446 = vunpack.c.h.b16 %v184
        %v447 = vunpack.c.l.b16 %v185
        %v448 = vunpack.c.h.b16 %v185
        %v449 = vunpack.c.l.b16 %v186
        %v450 = vunpack.c.h.b16 %v186
        %v451 = vunpack.c.l.b16 %v187
        %v452 = vunpack.c.h.b16 %v187
        %v453 = vunpack.c.l.b16 %v188
        %v454 = vunpack.c.h.b16 %v188
        %v455 = vunpack.c.l.b16 %v189
        %v456 = vunpack.c.h.b16 %v189
        %v457 = vunpack.c.l.b16 %v190
        %v458 = vunpack.c.h.b16 %v190
        %v459 = vunpack.c.l.b16 %v191
        %v460 = vunpack.c.h.b16 %v191
        %v461 = vunpack.c.l.b16 %v192
        %v462 = vunpack.c.h.b16 %v192
        %v463 = vunpack.c.l.b16 %v193
        %v464 = vunpack.c.h.b16 %v193
        %v465 = vunpack.c.l.b16 %v194
        %v466 = vunpack.c.h.b16 %v194
        %v467 = vunpack.c.l.b16 %v195
        %v468 = vunpack.c.h.b16 %v195
        %v469 = vunpack.c.l.b16 %v196
        %v470 = vunpack.c.h.b16 %v196
        %v471 = vunpack.c.l.b16 %v197
        %v472 = vunpack.c.h.b16 %v197
        %v473 = vunpack.c.l.b16 %v198
        %v474 = vunpack.c.h.b16 %v198
        %v475 = vunpack.c.l.b16 %v199
        %v476 = vunpack.c.h.b16 %v199
        %v477 = vunpack.c.l.b16 %v200
        %v478 = vunpack.c.h.b16 %v200
        %v479 = vunpack.c.l.b16 %v201
        %v480 = vunpack.c.h.b16 %v201
        %v481 = vunpack.c.l.b16 %v202
        %v482 = vunpack.c.h.b16 %v202
        %v483 = vunpack.c.l.b16 %v203
        %v484 = vunpack.c.h.b16 %v203
        %v485 = vunpack.c.l.b16 %v204
        %v486 = vunpack.c.h.b16 %v204
        %v487 = vunpack.c.l.b16 %v205
        %v488 = vunpack.c.h.b16 %v205
        %v489 = vunpack.c.l.b16 %v206
        %v490 = vunpack.c.h.b16 %v206
        %v491 = vunpack.c.l.b16 %v207
        %v492 = vunpack.c.h.b16 %v207
        %v493 = vunpack.c.l.b16 %v208
        %v494 = vunpack.c.h.b16 %v208
        %v495 = vunpack.c.l.b16 %v209
        %v496 = vunpack.c.h.b16 %v209
        %v497 = vunpack.c.l.b16 %v210
        %v498 = vunpack.c.h.b16 %v210
        %v499 = vunpack.c.l.b16 %v211
        %v500 = vunpack.c.h.b16 %v211
        %v501 = vunpack.c.l.b16 %v212
        %v502 = vunpack.c.h.b16 %v212
        %v503 = vunpack.c.l.b16 %v213
        %v504 = vunpack.c.h.b16 %v213
        %v505 = vunpack.c.l.b16 %v214
        %v506 = vunpack.c.h.b16 %v214
        %v507 = vunpack.c.l.b16 %v215
        %v508 = vunpack.c.h.b16 %v215
        %v509 = vunpack.c.l.b16 %v216
        %v510 = vunpack.c.h.b16 %v216
        %v511 = vunpack.c.l.b16 %v217
        %v512 = vunpack.c.h.b16 %v217
        %v513 = vunpack.c.l.b16 %v218
        %v514 = vunpack.c.h.b16 %v218
        %v515 = vunpack.c.l.b16 %v219
        %v516 = vunpack.c.h.b16 %v219
        %v517 = vunpack.c.l.b16 %v220
        %v518 = vunpack.c.h.b16 %v220
        %v519 = vunpack.c.l.b16 %v221
        %v520 = vunpack.c.h.b16 %v221
        %v521 = vunpack.c.l.b16 %v222
        %v522 = vunpack.c.h.b16 %v222
        %v523 = vunpack.c.l.b16 %v223
        %v524 = vunpack.c.h.b16 %v223
        %v525 = vunpack.c.l.b16 %v224
        %v526 = vunpack.c.h.b16 %v224
        %v527 = vunpack.c.l.b16 %v225
        %v528 = vunpack.c.h.b16 %v225
        %v529 = vunpack.c.l.b16 %v226
        %v530 = vunpack.c.h.b16 %v226
        %v531 = vunpack.c.l.b16 %v227
        %v532 = vunpack.c.h.b16 %v227
        %v533 = vunpack.c.l.b16 %v228
        %v534 = vunpack.c.h.b16 %v228
        %v535 = vunpack.c.l.b16 %v229
        %v536 = vunpack.c.h.b16 %v229
        %v537 = vunpack.c.l.b16 %v230
        %v538 = vunpack.c.h.b16 %v230
        %v539 = vunpack.c.l.b16 %v231
        %v540 = vunpack.c.h.b16 %v231
        %v541 = vunpack.c.l.b16 %v232
        %v542 = vunpack.c.h.b16 %v232
        %v543 = vunpack.c.l.b16 %v233
        %v544 = vunpack.c.h.b16 %v233
        %v545 = vunpack.c.l.b16 %v234
        %v546 = vunpack.c.h.b16 %v234
        %v547 = vunpack.c.l.b16 %v235
        %v548 = vunpack.c.h.b16 %v235
        %v549 = vunpack.c.l.b16 %v236
        %v550 = vunpack.c.h.b16 %v236
        %v551 = vunpack.c.l.b16 %v237
        %v552 = vunpack.c.h.b16 %v237
        %v553 = vunpack.c.l.b16 %v238
        %v554 = vunpack.c.h.b16 %v238
        %v555 = vunpack.c.l.b16 %v239
        %v556 = vunpack.c.h.b16 %v239
        %v557 = vunpack.c.l.b16 %v240
        %v558 = vunpack.c.h.b16 %v240
        %v559 = vunpack.c.l.b16 %v241
        %v560 = vunpack.c.h.b16 %v241
        %v561 = vunpack.c.l.b16 %v242
        %v562 = vunpack.c.h.b16 %v242
        %v563 = vunpack.c.l.b16 %v243
        %v564 = vunpack.c.h.b16 %v243
        %v565 = vunpack.c.l.b16 %v244
        %v566 = vunpack.c.h.b16 %v244
        %v567 = vunpack.c.l.b16 %v245
        %v568 = vunpack.c.h.b16 %v245
        %v569 = vunpack.c.l.b16 %v246
        %v570 = vunpack.c.h.b16 %v246
        %v571 = vunpack.c.l.b16 %v247
        %v572 = vunpack.c.h.b16 %v247
        %v573 = vunpack.c.l.b16 %v248
        %v574 = vunpack.c.h.b16 %v248
        %v575 = vunpack.c.l.b16 %v249
        %v576 = vunpack.c.h.b16 %v249
        %v577 = vunpack.c.l.b16 %v250
        %v578 = vunpack.c.h.b16 %v250
        %v579 = vunpack.c.l.b16 %v251
        %v580 = vunpack.c.h.b16 %v251
        %v581 = vunpack.c.l.b16 %v252
        %v582 = vunpack.c.h.b16 %v252
        %v583 = vunpack.c.l.b16 %v253
        %v584 = vunpack.c.h.b16 %v253
        %v585 = vunpack.c.l.b16 %v254
        %v586 = vunpack.c.h.b16 %v254
        %v587 = vunpack.c.l.b16 %v255
        %v588 = vunpack.c.h.b16 %v255
        %v589 = vunpack.c.l.b16 %v256
        %v590 = vunpack.c.h.b16 %v256
        %v591 = vunpack.c.l.b16 %v257
        %v592 = vunpack.c.h.b16 %v257
        %v593 = vunpack.c.l.b16 %v258
        %v594 = vunpack.c.h.b16 %v258
        %v595 = vunpack.c.l.b16 %v259
        %v596 = vunpack.c.h.b16 %v259
        %v597 = vunpack.c.l.b16 %v260
        %v598 = vunpack.c.h.b16 %v260
        %v599 = vunpack.c.l.b16 %v261
        %v600 = vunpack.c.h.b16 %v261
        %v601 = vunpack.c.l.b16 %v262
        %v602 = vunpack.c.h.b16 %v262
        %v603 = vunpack.c.l.b16 %v263
        %v604 = vunpack.c.h.b16 %v263
        %v605 = vunpack.c.l.b16 %v264
        %v606 = vunpack.c.h.b16 %v264
        %v607 = vunpack.c.l.b16 %v265
        %v608 = vunpack.c.h.b16 %v265
        %v609 = vunpack.c.l.b16 %v266
        %v610 = vunpack.c.h.b16 %v266
        %v611 = vunpack.c.l.b16 %v267
        %v612 = vunpack.c.h.b16 %v267
        %v613 = vunpack.c.l.b16 %v268
        %v614 = vunpack.c.h.b16 %v268
        %v615 = vunpack.c.l.b16 %v269
        %v616 = vunpack.c.h.b16 %v269
        %v617 = vunpack.c.l.b16 %v270
        %v618 = vunpack.c.h.b16 %v270
        %v619 = vunpack.c.l.b16 %v271
        %v620 = vunpack.c.h.b16 %v271
        %v621 = vunpack.c.l.b16 %v272
        %v622 = vunpack.c.h.b16 %v272
        %v623 = vunpack.c.l.b16 %v273
        %v624 = vunpack.c.h.b16 %v273
        %v625 = vunpack.c.l.b16 %v274
        %v626 = vunpack.c.h.b16 %v274
        %v627 = vunpack.c.l.b16 %v275
        %v628 = vunpack.c.h.b16 %v275
        %v629 = vunpack.c.l.b16 %v276
        %v630 = vunpack.c.h.b16 %v276
        %v631 = vunpack.c.l.b16 %v277
        %v632 = vunpack.c.h.b16 %v277
        %v633 = vunpack.c.l.b16 %v278
        %v634 = vunpack.c.h.b16 %v278
        %v635 = vunpack.c.l.b16 %v279
        %v636 = vunpack.c.h.b16 %v279
        %v637 = vunpack.c.l.b16 %v280
        %v638 = vunpack.c.h.b16 %v280
        %v639 = vunpack.c.l.b16 %v281
        %v640 = vunpack.c.h.b16 %v281
        %v641 = vunpack.c.l.b16 %v282
        %v642 = vunpack.c.h.b16 %v282
        %v643 = vunpack.c.l.b16 %v283
        %v644 = vunpack.c.h.b16 %v283
        %v645 = vunpack.c.l.b16 %v284
        %v646 = vunpack.c.h.b16 %v284
        %v647 = vunpack.c.l.b16 %v285
        %v648 = vunpack.c.h.b16 %v285
        %v649 = vunpack.c.l.b16 %v286
        %v650 = vunpack.c.h.b16 %v286
        %v651 = vunpack.c.l.b16 %v287
        %v652 = vunpack.c.h.b16 %v287
        %v653 = vunpack.c.l.b16 %v288
        %v654 = vunpack.c.h.b16 %v288
        %v655 = vunpack.c.l.b16 %v289
        %v656 = vunpack.c.h.b16 %v289
        %v657 = vunpack.c.l.b16 %v290
        %v658 = vunpack.c.h.b16 %v290
        %v659 = vunpack.c.l.b16 %v291
        %v660 = vunpack.c.h.b16 %v291
        %v661 = vunpack.c.l.b16 %v292
        %v662 = vunpack.c.h.b16 %v292
        %v663 = vunpack.c.l.b16 %v293
        %v664 = vunpack.c.h.b16 %v293
        %v665 = vunpack.c.l.b16 %v294
        %v666 = vunpack.c.h.b16 %v294
        %v667 = vunpack.c.l.b16 %v295
        %v668 = vunpack.c.h.b16 %v295
        %v669 = vunpack.c.l.b16 %v296
        %v670 = vunpack.c.h.b16 %v296
        %v671 = vunpack.c.l.b16 %v297
        %v672 = vunpack.c.h.b16 %v297
        %v673 = vunpack.c.l.b16 %v298
        %v674 = vunpack.c.h.b16 %v298
        %v675 = vunpack.c.l.b16 %v299
        %v676 = vunpack.c.h.b16 %v299
        %v677 = vunpack.c.l.b16 %v300
        %v678 = vunpack.c.h.b16 %v300
        %v679 = vunpack.c.l.b16 %v301
        %v680 = vunpack.c.h.b16 %v301
        %v681 = vunpack.c.l.b16 %v302
        %v682 = vunpack.c.h.b16 %v302
        %v683 = vunpack.c.l.b16 %v303
        %v684 = vunpack.c.h.b16 %v303
        %v685 = vunpack.c.l.b16 %v304
        %v686 = vunpack.c.h.b16 %v304
        %v687 = vunpack.c.l.b16 %v305
        %v688 = vunpack.c.h.b16 %v305
        %v689 = vunpack.c.l.b16 %v306
        %v690 = vunpack.c.h.b16 %v306
        %v691 = vpack.c.b16 %v443, %v435
        %v692 = vpack.c.b16 %v444, %v436
        %v693 = vpack.c.b16 %v445, %v437
        %v694 = vpack.c.b16 %v446, %v438
        %v695 = vpack.c.b16 %v447, %v439
        %v696 = vpack.c.b16 %v448, %v440
        %v697 = vpack.c.b16 %v449, %v441
        %v698 = vpack.c.b16 %v450, %v442
        %v699 = vpack.c.b16 %v459, %v451
        %v700 = vpack.c.b16 %v460, %v452
        %v701 = vpack.c.b16 %v461, %v453
        %v702 = vpack.c.b16 %v462, %v454
        %v703 = vpack.c.b16 %v463, %v455
        %v704 = vpack.c.b16 %v464, %v456
        %v705 = vpack.c.b16 %v465, %v457
        %v706 = vpack.c.b16 %v466, %v458
        %v707 = vpack.c.b16 %v475, %v467
        %v708 = vpack.c.b16 %v476, %v468
        %v709 = vpack.c.b16 %v477, %v469
        %v710 = vpack.c.b16 %v478, %v470
        %v711 = vpack.c.b16 %v479, %v471
        %v712 = vpack.c.b16 %v480, %v472
        %v713 = vpack.c.b16 %v481, %v473
        %v714 = vpack.c.b16 %v482, %v474
        %v715 = vpack.c.b16 %v491, %v483
        %v716 = vpack.c.b16 %v492, %v484
        %v717 = vpack.c.b16 %v493, %v485
        %v718 = vpack.c.b16 %v494, %v486
        %v719 = vpack.c.b16 %v495, %v487
        %v720 = vpack.c.b16 %v496, %v488
        %v721 = vpack.c.b16 %v497, %v489
        %v722 = vpack.c.b16 %v498, %v490
        %v723 = vpack.c.b16 %v507, %v499
        %v724 = vpack.c.b16 %v508, %v500
        %v725 = vpack.c.b16 %v509, %v501
        %v726 = vpack.c.b16 %v510, %v502
        %v727 = vpack.c.b16 %v511, %v503
        %v728 = vpack.c.b16 %v512, %v504
        %v729 = vpack.c.b16 %v513, %v505
        %v730 = vpack.c.b16 %v514, %v506
        %v731 = vpack.c.b16 %v523, %v515
        %v732 = vpack.c.b16 %v524, %v516
        %v733 = vpack.c.b16 %v525, %v517
        %v734 = vpack.c.b16 %v526, %v518
        %v735 = vpack.c.b16 %v527, %v519
        %v736 = vpack.c.b16 %v528, %v520
        %v737 = vpack.c.b16 %v529, %v521
        %v738 = vpack.c.b16 %v530, %v522
        %v739 = vpack.c.b16 %v539, %v531
        %v740 = vpack.c.b16 %v540, %v532
        %v741 = vpack.c.b16 %v541, %v533
        %v742 = vpack.c.b16 %v542, %v534
        %v743 = vpack.c.b16 %v543, %v535
        %v744 = vpack.c.b16 %v544, %v536
        %v745 = vpack.c.b16 %v545, %v537
        %v746 = vpack.c.b16 %v546, %v538
        %v747 = vpack.c.b16 %v555, %v547
        %v748 = vpack.c.b16 %v556, %v548
        %v749 = vpack.c.b16 %v557, %v549
        %v750 = vpack.c.b16 %v558, %v550
        %v751 = vpack.c.b16 %v559, %v551
        %v752 = vpack.c.b16 %v560, %v552
        %v753 = vpack.c.b16 %v561, %v553
        %v754 = vpack.c.b16 %v562, %v554
        %v755 = vpack.c.b16 %v571, %v563
        %v756 = vpack.c.b16 %v572, %v564
        %v757 = vpack.c.b16 %v573, %v565
        %v758 = vpack.c.b16 %v574, %v566
        %v759 = vpack.c.b16 %v575, %v567
        %v760 = vpack.c.b16 %v576, %v568
        %v761 = vpack.c.b16 %v577, %v569
        %v762 = vpack.c.b16 %v578, %v570
        %v763 = vpack.c.b16 %v587, %v579
        %v764 = vpack.c.b16 %v588, %v580
        %v765 = vpack.c.b16 %v589, %v581
        %v766 = vpack.c.b16 %v590, %v582
        %v767 = vpack.c.b16 %v591, %v583
        %v768 = vpack.c.b16 %v592, %v584
        %v769 = vpack.c.b16 %v593, %v585
        %v770 = vpack.c.b16 %v594, %v586
        %v771 = vpack.c.b16 %v603, %v595
        %v772 = vpack.c.b16 %v604, %v596
        %v773 = vpack.c.b16 %v605, %v597
        %v774 = vpack.c.b16 %v606, %v598
        %v775 = vpack.c.b16 %v607, %v599
        %v776 = vpack.c.b16 %v608, %v600
        %v777 = vpack.c.b16 %v609, %v601
        %v778 = vpack.c.b16 %v610, %v602
        %v779 = vpack.c.b16 %v619, %v611
        %v780 = vpack.c.b16 %v620, %v612
        %v781 = vpack.c.b16 %v621, %v613
        %v782 = vpack.c.b16 %v622, %v614
        %v783 = vpack.c.b16 %v623, %v615
        %v784 = vpack.c.b16 %v624, %v616
        %v785 = vpack.c.b16 %v625, %v617
        %v786 = vpack.c.b16 %v626, %v618
        %v787 = vpack.c.b16 %v635, %v627
        %v788 = vpack.c.b16 %v636, %v628
        %v789 = vpack.c.b16 %v637, %v629
        %v790 = vpack.c.b16 %v638, %v630
        %v791 = vpack.c.b16 %v639, %v631
        %v792 = vpack.c.b16 %v640, %v632
        %v793 = vpack.c.b16 %v641, %v633
        %v794 = vpack.c.b16 %v642, %v634
        %v795 = vpack.c.b16 %v651, %v643
        %v796 = vpack.c.b16 %v652, %v644
        %v797 = vpack.c.b16 %v653, %v645
        %v798 = vpack.c.b16 %v654, %v646
        %v799 = vpack.c.b16 %v655, %v647
        %v800 = vpack.c.b16 %v656, %v648
        %v801 = vpack.c.b16 %v657, %v649
        %v802 = vpack.c.b16 %v658, %v650
        %v803 = vpack.c.b16 %v667, %v659
        %v804 = vpack.c.b16 %v668, %v660
        %v805 = vpack.c.b16 %v669, %v661
        %v806 = vpack.c.b16 %v670, %v662
        %v807 = vpack.c.b16 %v671, %v663
        %v808 = vpack.c.b16 %v672, %v664
        %v809 = vpack.c.b16 %v673, %v665
        %v810 = vpack.c.b16 %v674, %v666
        %v811 = vpack.c.b16 %v683, %v675
        %v812 = vpack.c.b16 %v684, %v676
        %v813 = vpack.c.b16 %v685, %v677
        %v814 = vpack.c.b16 %v686, %v678
        %v815 = vpack.c.b16 %v687, %v679
        %v816 = vpack.c.b16 %v688, %v680
        %v817 = vpack.c.b16 %v689, %v681
        %v818 = vpack.c.b16 %v690, %v682
        %947 = vmatprep.subr.bf16.mxu0 %v692
        %948 = vmatpush1.bf16.msra.mxu0 %v691
        %949 = vmatprep.subr.bf16.mxu0 %v700
        %950 = vmatpush1.bf16.msra.mxu0 %v699
        %951 = vmatprep.subr.bf16.mxu0 %v708
        %952 = vmatpush1.bf16.msra.mxu0 %v707
        %953 = vmatprep.subr.bf16.mxu0 %v716
        %954 = vmatpush1.bf16.msra.mxu0 %v715
        %955 = vmatprep.subr.bf16.mxu0 %v724
        %956 = vmatpush1.bf16.msra.mxu0 %v723
        %957 = vmatprep.subr.bf16.mxu0 %v732
        %958 = vmatpush1.bf16.msra.mxu0 %v731
        %959 = vmatprep.subr.bf16.mxu0 %v740
        %960 = vmatpush1.bf16.msra.mxu0 %v739
        %961 = vmatprep.subr.bf16.mxu0 %v748
        %962 = vmatpush1.bf16.msra.mxu0 %v747
        %963 = vmatprep.subr.bf16.mxu0 %v756
        %964 = vmatpush1.bf16.msra.mxu0 %v755
        %965 = vmatprep.subr.bf16.mxu0 %v764
        %966 = vmatpush1.bf16.msra.mxu0 %v763
        %967 = vmatprep.subr.bf16.mxu0 %v772
        %968 = vmatpush1.bf16.msra.mxu0 %v771
        %969 = vmatprep.subr.bf16.mxu0 %v780
        %970 = vmatpush1.bf16.msra.mxu0 %v779
        %971 = vmatprep.subr.bf16.mxu0 %v788
        %972 = vmatpush1.bf16.msra.mxu0 %v787
        %973 = vmatprep.subr.bf16.mxu0 %v796
        %974 = vmatpush1.bf16.msra.mxu0 %v795
        %975 = vmatprep.subr.bf16.mxu0 %v804
        %976 = vmatpush1.bf16.msra.mxu0 %v803
        %977 = vmatprep.subr.bf16.mxu0 %v812
        %978 = vmatpush1.bf16.msra.mxu0 %v811
        %979 = vmatprep.mubr.bf16.mxu0 %v178
        %980 = vmatmul.mubr.bf16.gmra.mrb[0].mxu0 %v177
        %v981 = vpop.f32.mrb[0].mxu0
        %v982 = vadd.f32 0.0, %v981
        %v983 = vpop.f32.mrb[0].mxu0
        %v984 = vadd.f32 0.0, %v983
        %v985 = vpop.f32.mrb[0].mxu0
        %v986 = vpop.f32.mrb[0].mxu0
        %987 = vdwg.mxu0
        %988 = vmatprep.subr.bf16.mxu0 %v694
        %989 = vmatpush1.bf16.msra.mxu0 %v693
        %990 = vmatprep.subr.bf16.mxu0 %v702
        %991 = vmatpush1.bf16.msra.mxu0 %v701
        %992 = vmatprep.subr.bf16.mxu0 %v710
        %993 = vmatpush1.bf16.msra.mxu0 %v709
        %994 = vmatprep.subr.bf16.mxu0 %v718
        %995 = vmatpush1.bf16.msra.mxu0 %v717
        %996 = vmatprep.subr.bf16.mxu0 %v726
        %997 = vmatpush1.bf16.msra.mxu0 %v725
        %998 = vmatprep.subr.bf16.mxu0 %v734
        %999 = vmatpush1.bf16.msra.mxu0 %v733
        %1000 = vmatprep.subr.bf16.mxu0 %v742
        %1001 = vmatpush1.bf16.msra.mxu0 %v741
        %1002 = vmatprep.subr.bf16.mxu0 %v750
        %1003 = vmatpush1.bf16.msra.mxu0 %v749
        %1004 = vmatprep.subr.bf16.mxu0 %v758
        %1005 = vmatpush1.bf16.msra.mxu0 %v757
        %1006 = vmatprep.subr.bf16.mxu0 %v766
        %1007 = vmatpush1.bf16.msra.mxu0 %v765
        %1008 = vmatprep.subr.bf16.mxu0 %v774
        %1009 = vmatpush1.bf16.msra.mxu0 %v773
        %1010 = vmatprep.subr.bf16.mxu0 %v782
        %1011 = vmatpush1.bf16.msra.mxu0 %v781
        %1012 = vmatprep.subr.bf16.mxu0 %v790
        %1013 = vmatpush1.bf16.msra.mxu0 %v789
        %1014 = vmatprep.subr.bf16.mxu0 %v798
        %1015 = vmatpush1.bf16.msra.mxu0 %v797
        %1016 = vmatprep.subr.bf16.mxu0 %v806
        %1017 = vmatpush1.bf16.msra.mxu0 %v805
        %1018 = vmatprep.subr.bf16.mxu0 %v814
        %1019 = vmatpush1.bf16.msra.mxu0 %v813
        %1020 = vmatprep.mubr.bf16.mxu0 %v178
        %1021 = vmatmul.mubr.bf16.gmra.mrb[0].mxu0 %v177
        %v1022 = vpop.f32.mrb[0].mxu0
        %v1023 = vadd.f32 0.0, %v1022
        %v1024 = vpop.f32.mrb[0].mxu0
        %v1025 = vadd.f32 0.0, %v1024
        %v1026 = vpop.f32.mrb[0].mxu0
        %v1027 = vpop.f32.mrb[0].mxu0
        %1028 = vdwg.mxu0
        %1029 = vmatprep.subr.bf16.mxu0 %v696
        %1030 = vmatpush1.bf16.msra.mxu0 %v695
        %1031 = vmatprep.subr.bf16.mxu0 %v704
        %1032 = vmatpush1.bf16.msra.mxu0 %v703
        %1033 = vmatprep.subr.bf16.mxu0 %v712
        %1034 = vmatpush1.bf16.msra.mxu0 %v711
        %1035 = vmatprep.subr.bf16.mxu0 %v720
        %1036 = vmatpush1.bf16.msra.mxu0 %v719
        %1037 = vmatprep.subr.bf16.mxu0 %v728
        %1038 = vmatpush1.bf16.msra.mxu0 %v727
        %1039 = vmatprep.subr.bf16.mxu0 %v736
        %1040 = vmatpush1.bf16.msra.mxu0 %v735
        %1041 = vmatprep.subr.bf16.mxu0 %v744
        %1042 = vmatpush1.bf16.msra.mxu0 %v743
        %1043 = vmatprep.subr.bf16.mxu0 %v752
        %1044 = vmatpush1.bf16.msra.mxu0 %v751
        %1045 = vmatprep.subr.bf16.mxu0 %v760
        %1046 = vmatpush1.bf16.msra.mxu0 %v759
        %1047 = vmatprep.subr.bf16.mxu0 %v768
        %1048 = vmatpush1.bf16.msra.mxu0 %v767
        %1049 = vmatprep.subr.bf16.mxu0 %v776
        %1050 = vmatpush1.bf16.msra.mxu0 %v775
        %1051 = vmatprep.subr.bf16.mxu0 %v784
        %1052 = vmatpush1.bf16.msra.mxu0 %v783
        %1053 = vmatprep.subr.bf16.mxu0 %v792
        %1054 = vmatpush1.bf16.msra.mxu0 %v791
        %1055 = vmatprep.subr.bf16.mxu0 %v800
        %1056 = vmatpush1.bf16.msra.mxu0 %v799
        %1057 = vmatprep.subr.bf16.mxu0 %v808
        %1058 = vmatpush1.bf16.msra.mxu0 %v807
        %1059 = vmatprep.subr.bf16.mxu0 %v816
        %1060 = vmatpush1.bf16.msra.mxu0 %v815
        %1061 = vmatprep.mubr.bf16.mxu0 %v178
        %1062 = vmatmul.mubr.bf16.gmra.mrb[0].mxu0 %v177
        %v1063 = vpop.f32.mrb[0].mxu0
        %v1064 = vadd.f32 0.0, %v1063
        %v1065 = vpop.f32.mrb[0].mxu0
        %v1066 = vadd.f32 0.0, %v1065
        %v1067 = vpop.f32.mrb[0].mxu0
        %v1068 = vpop.f32.mrb[0].mxu0
        %1069 = vdwg.mxu0
        %1070 = vmatprep.subr.bf16.mxu0 %v698
        %1071 = vmatpush1.bf16.msra.mxu0 %v697
        %1072 = vmatprep.subr.bf16.mxu0 %v706
        %1073 = vmatpush1.bf16.msra.mxu0 %v705
        %1074 = vmatprep.subr.bf16.mxu0 %v714
        %1075 = vmatpush1.bf16.msra.mxu0 %v713
        %1076 = vmatprep.subr.bf16.mxu0 %v722
        %1077 = vmatpush1.bf16.msra.mxu0 %v721
        %1078 = vmatprep.subr.bf16.mxu0 %v730
        %1079 = vmatpush1.bf16.msra.mxu0 %v729
        %1080 = vmatprep.subr.bf16.mxu0 %v738
        %1081 = vmatpush1.bf16.msra.mxu0 %v737
        %1082 = vmatprep.subr.bf16.mxu0 %v746
        %1083 = vmatpush1.bf16.msra.mxu0 %v745
        %1084 = vmatprep.subr.bf16.mxu0 %v754
        %1085 = vmatpush1.bf16.msra.mxu0 %v753
        %1086 = vmatprep.subr.bf16.mxu0 %v762
        %1087 = vmatpush1.bf16.msra.mxu0 %v761
        %1088 = vmatprep.subr.bf16.mxu0 %v770
        %1089 = vmatpush1.bf16.msra.mxu0 %v769
        %1090 = vmatprep.subr.bf16.mxu0 %v778
        %1091 = vmatpush1.bf16.msra.mxu0 %v777
        %1092 = vmatprep.subr.bf16.mxu0 %v786
        %1093 = vmatpush1.bf16.msra.mxu0 %v785
        %1094 = vmatprep.subr.bf16.mxu0 %v794
        %1095 = vmatpush1.bf16.msra.mxu0 %v793
        %1096 = vmatprep.subr.bf16.mxu0 %v802
        %1097 = vmatpush1.bf16.msra.mxu0 %v801
        %1098 = vmatprep.subr.bf16.mxu0 %v810
        %1099 = vmatpush1.bf16.msra.mxu0 %v809
        %1100 = vmatprep.subr.bf16.mxu0 %v818
        %1101 = vmatpush1.bf16.msra.mxu0 %v817
        %1102 = vmatprep.mubr.bf16.mxu0 %v178
        %1103 = vmatmul.mubr.bf16.gmra.mrb[0].mxu0 %v177
        %v1104 = vpop.f32.mrb[0].mxu0
        %v1105 = vadd.f32 0.0, %v1104
        %v1106 = vpop.f32.mrb[0].mxu0
        %v1107 = vadd.f32 0.0, %v1106
        %v1108 = vpop.f32.mrb[0].mxu0
        %v1109 = vpop.f32.mrb[0].mxu0
        %1110 = vdwg.mxu0
        %v1111 = vadd.f32 %v169, %v982
        %v1112 = vadd.f32 %v170, %v984
        %v1113 = vadd.f32 %v171, %v1023
        %v1114 = vadd.f32 %v172, %v1025
        %v1115 = vadd.f32 %v173, %v1064
        %v1116 = vadd.f32 %v174, %v1066
        %v1117 = vadd.f32 %v175, %v1105
        %v1118 = vadd.f32 %v176, %v1107
        %v1119 = vxor.u32 %v1111, 2147483648
        %v1120 = vxor.u32 %v1112, 2147483648
        %v1121 = vmul.f32 %v1119, 1.442695
        %v1122 = vpow.pop %v1121
        %v1123 = vmul.f32 %v1120, 1.442695
        %v1124 = vpow.pop %v1123
        %v1125 = vadd.f32 %v1122, 1.0
        %v1126 = vadd.f32 %v1124, 1.0
        %v1127 = vrcp.pop %v1125
        %v1128 = vmul.f32 1.0, %v1127
        %v1129 = vrcp.pop %v1126
        %v1130 = vmul.f32 1.0, %v1129
        %v1131 = vxor.u32 %v1113, 2147483648
        %v1132 = vxor.u32 %v1114, 2147483648
        %v1133 = vmul.f32 %v1131, 1.442695
        %v1134 = vpow.pop %v1133
        %v1135 = vmul.f32 %v1132, 1.442695
        %v1136 = vpow.pop %v1135
        %v1137 = vadd.f32 %v1134, 1.0
        %v1138 = vadd.f32 %v1136, 1.0
        %v1139 = vrcp.pop %v1137
        %v1140 = vmul.f32 1.0, %v1139
        %v1141 = vrcp.pop %v1138
        %v1142 = vmul.f32 1.0, %v1141
        %v1143 = vtanh.pop %v1115
        %v1144 = vtanh.pop %v1116
        %v1145 = vxor.u32 %v1117, 2147483648
        %v1146 = vxor.u32 %v1118, 2147483648
        %v1147 = vmul.f32 %v1145, 1.442695
        %v1148 = vpow.pop %v1147
        %v1149 = vmul.f32 %v1146, 1.442695
        %v1150 = vpow.pop %v1149
        %v1151 = vadd.f32 %v1148, 1.0
        %v1152 = vadd.f32 %v1150, 1.0
        %v1153 = vrcp.pop %v1151
        %v1154 = vmul.f32 1.0, %v1153
        %v1155 = vrcp.pop %v1152
        %v1156 = vmul.f32 1.0, %v1155
        %v1157 = vld [vmem:[#allocation3] sm:$0xff]
        %v1158 = vld [vmem:[#allocation3 + $0x8] sm:$0xff]
        %v1159 = vmul.f32 %v1140, %v1157
        %v1160 = vmul.f32 %v1142, %v1158
        %v1161 = vmul.f32 %v1128, %v1143
        %v1162 = vmul.f32 %v1130, %v1144
        %v1163 = vadd.f32 %v1159, %v1161
        %v1164 = vadd.f32 %v1160, %v1162
        %v1165 = vtanh.pop %v1163
        %v1166 = vtanh.pop %v1164
        %v1167 = vmul.f32 %v1154, %v1165
        %v1168 = vmul.f32 %v1156, %v1166
        %1169 = vst [vmem:[#allocation3] sm:$0xff] %v1163
        %1170 = vst [vmem:[#allocation3 + $0x8] sm:$0xff] %v1164
        %1171 = vst [vmem:[#allocation2] sm:$0xff] %v1167
        %1172 = vst [vmem:[#allocation2 + $0x8] sm:$0xff] %v1168
        %1173 = vst [vmem:[%s158] sm:$0xff] %v1167
        %1174 = vst [vmem:[%s158 + $0x8] sm:$0xff] %v1168
        %p1175 = scmp.lt.s32.totalorder %s14, 7
        %s1176 = scalar_select %p1175, %s14, 7
        %s1177 = smul.addr %s1176, 2
        %s1178 = smul.addr %s1177, 8
        %s1179 = scalar_lea.vmem %s2, %s1178
        // Predicated region
        $region37: #{rnn_modelv2_forward.8} parent=27 // pred_check
          %p1180 = pneg %p79
        $region38: #{rnn_modelv2_forward.8} parent=27 // pred_check_branch
          %1182 = sbr.rel (%p1180) target = $region40
        $region39: #{rnn_modelv2_forward.8} parent=27 // pred_region
          _
        $region40: #{rnn_modelv2_forward.8} parent=27 // pred_fallthru
          _
      $region28: #{rnn_modelv2_forward.8} parent=5 // pred_fallthru
        _
      %p1183 = scmp.le.s32.totalorder 2, %s9
      // Predicated region
      $region41: #{rnn_modelv2_forward.8} parent=5 // pred_check
        %p1184 = pneg %p1183
      $region42: #{rnn_modelv2_forward.8} parent=5 // pred_check_branch
        %1186 = sbr.rel (%p1184) target = $region44
      $region43: #{rnn_modelv2_forward.8} parent=5 // pred_region
        %s1187 = ssub.s32 %s9, 2
        // Predicated region
        $region45: #{rnn_modelv2_forward.8} parent=43 // pred_check
          %p1188 = pneg %p85
        $region46: #{rnn_modelv2_forward.8} parent=43 // pred_check_branch
          %1190 = sbr.rel (%p1188) target = $region48
        $region47: #{rnn_modelv2_forward.8} parent=43 // pred_region
          %p1191 = scmp.lt.s32.totalorder %s15, 7
          %s1192 = scalar_select %p1191, %s15, 7
          %s1193 = smul.addr %s1192, 2
          %s1194 = smul.addr %s1193, 8
          %s1195 = scalar_lea.vmem %s2, %s1194
        $region48: #{rnn_modelv2_forward.8} parent=43 // pred_fallthru
          _
      $region44: #{rnn_modelv2_forward.8} parent=5 // pred_fallthru
        _
    $region6: #{rnn_modelv2_forward.8} parent=1 // loop_footer
      %s13 = sadd.s32 1, %s9
    $region7: #{rnn_modelv2_forward.8} parent=1 // loop_footer_branch
      %8 = sbr.rel target = $region3
    $region8: #{rnn_modelv2_forward.8} parent=1 // loop_exit
      _
    %1196 = vsyncpa [#allocation5], 1
    %s1197 = scalar_lea.sflag [#allocation5], 1
    %1198 = vsyncpa %s1197, 1

// kernel: rnn_modelv2_forward.9
$region0: #{rnn_modelv2_forward.9}
  #allocation0 [shape = 'u32[]', space=smem, size = 0x4, offset = 0x4, fixed_abs, tag = 'smem constant byte address 0x4 - core index']
  #allocation1 [shape = 'u32[144,128]{1,0:T(1,128)}', space=vmem, size = 0x12000, scoped, tag = 'internal scratch']
  %s0 = inlined_call_operand.vmem [shape: f32[64,256], index: 0, kind: input, shape index: {}]
  %s1 = inlined_call_operand.vmem [shape: bf16[256,1024], index: 1, kind: input, shape index: {}]
  %s2 = inlined_call_operand.vmem [shape: f32[1,1024], index: 2, kind: input, shape index: {}]
  %s3 = inlined_call_operand.vmem [shape: f32[64,1024], index: 3, kind: output, shape index: {}]
  %s4 = sld [smem:[#allocation0]]
  $region87: #{rnn_modelv2_forward.9} parent=0
    _
  %s6 = ssub.s32 1, %s4
  %s7 = scalar_select 0, %s6, %s4
  $region1: #{rnn_modelv2_forward.9} parent=0
    #allocation2 [shape = 'u8[524288]{0}', space=vmem, size = 0x80000, scoped, tag = 'input window, operand 1']
    #allocation3 [shape = 'u8[262144]{0}', space=vmem, size = 0x40000, scoped, tag = 'output window, operand 0']
    loop: start=0, step=1, limit=4
    $region2: #{rnn_modelv2_forward.9} parent=1 // loop_pre_header
      _
    $region3: #{rnn_modelv2_forward.9} parent=1 // loop_header
      %s9 = sphi 0, %s13
      %p10 = scmp.ge.s32.totalorder %s9, 4
      %s17 = sphi 0, %s17
      %s19 = sphi 0, %s17
      %s20 = sphi 0, %s19
      %s34 = sphi 0, %s20
      %s40 = sphi 0, %s42
      %s43 = sphi 0, %s40
      %s44 = sphi 0, %s43
      %s60 = sphi 0, %s44
      %s66 = sphi 0, %s68
      %s69 = sphi 0, %s66
      %s70 = sphi 0, %s69
      %s86 = sphi 0, %s70
      %s92 = sphi 0, %s94
      %s95 = sphi 0, %s92
      %s96 = sphi 0, %s95
      %s112 = sphi 0, %s96
    $region4: #{rnn_modelv2_forward.9} parent=1 // loop_header_branch
      %12 = sbr.rel (%p10) target = $region8
    $region5: #{rnn_modelv2_forward.9} parent=1 // loop_body
      %s14 = ssub.s32 %s9, 1
      %s15 = ssub.s32 %s9, 2
      %s16 = sadd.s32 %s9, 1
      %s18 = sadd.s32 %s17, 1
      %p21 = scmp.eq.s32.totalorder %s9, 1
      %p22 = scmp.ne.s32.totalorder %s17, %s19
      %p23 = scmp.eq.s32.totalorder %s9, 0
      %p24 = por %p22, %p23
      %p25 = scmp.ne.s32.totalorder %s17, %s19
      %p26 = scmp.eq.s32.totalorder %s14, 1
      %p27 = por %p25, %p26
      %p28 = scmp.ne.s32.totalorder %s19, %s20
      %p29 = scmp.eq.s32.totalorder %s14, 0
      %p30 = por %p28, %p29
      %p31 = scmp.ne.s32.totalorder %s19, %s20
      %p32 = scmp.eq.s32.totalorder %s15, 1
      %p33 = por %p31, %p32
      %p35 = scmp.ne.s32.totalorder %s20, %s34
      %p36 = scmp.eq.s32.totalorder %s15, 0
      %p37 = por %p35, %p36
      %s38 = ssub.s32 %s9, %s16
      %p39 = scmp.eq.s32.totalorder %s38, 0
      %s41 = sadd.s32 %s40, 1
      %s42 = scalar_select %p39, %s40, %s41
      %p45 = pneg %p39
      %p46 = scmp.eq.s32.totalorder %s9, 1
      %p47 = por %p45, %p46
      %p48 = scmp.ne.s32.totalorder %s40, %s43
      %p49 = scmp.eq.s32.totalorder %s9, 0
      %p50 = por %p48, %p49
      %p51 = scmp.ne.s32.totalorder %s40, %s43
      %p52 = scmp.eq.s32.totalorder %s14, 1
      %p53 = por %p51, %p52
      %p54 = scmp.ne.s32.totalorder %s43, %s44
      %p55 = scmp.eq.s32.totalorder %s14, 0
      %p56 = por %p54, %p55
      %p57 = scmp.ne.s32.totalorder %s43, %s44
      %p58 = scmp.eq.s32.totalorder %s15, 1
      %p59 = por %p57, %p58
      %p61 = scmp.ne.s32.totalorder %s44, %s60
      %p62 = scmp.eq.s32.totalorder %s15, 0
      %p63 = por %p61, %p62
      %s64 = ssub.s32 %s9, %s16
      %p65 = scmp.eq.s32.totalorder %s64, 0
      %s67 = sadd.s32 %s66, 1
      %s68 = scalar_select %p65, %s66, %s67
      %p71 = pneg %p65
      %p72 = scmp.eq.s32.totalorder %s9, 1
      %p73 = por %p71, %p72
      %p74 = scmp.ne.s32.totalorder %s66, %s69
      %p75 = scmp.eq.s32.totalorder %s9, 0
      %p76 = por %p74, %p75
      %p77 = scmp.ne.s32.totalorder %s66, %s69
      %p78 = scmp.eq.s32.totalorder %s14, 1
      %p79 = por %p77, %p78
      %p80 = scmp.ne.s32.totalorder %s69, %s70
      %p81 = scmp.eq.s32.totalorder %s14, 0
      %p82 = por %p80, %p81
      %p83 = scmp.ne.s32.totalorder %s69, %s70
      %p84 = scmp.eq.s32.totalorder %s15, 1
      %p85 = por %p83, %p84
      %p87 = scmp.ne.s32.totalorder %s70, %s86
      %p88 = scmp.eq.s32.totalorder %s15, 0
      %p89 = por %p87, %p88
      %s90 = ssub.s32 %s9, %s16
      %p91 = scmp.eq.s32.totalorder %s90, 0
      %s93 = sadd.s32 %s92, 1
      %s94 = scalar_select %p91, %s92, %s93
      %p97 = pneg %p91
      %p98 = scmp.eq.s32.totalorder %s9, 1
      %p99 = por %p97, %p98
      %p100 = scmp.ne.s32.totalorder %s92, %s95
      %p101 = scmp.eq.s32.totalorder %s9, 0
      %p102 = por %p100, %p101
      %p103 = scmp.ne.s32.totalorder %s92, %s95
      %p104 = scmp.eq.s32.totalorder %s14, 1
      %p105 = por %p103, %p104
      %p106 = scmp.ne.s32.totalorder %s95, %s96
      %p107 = scmp.eq.s32.totalorder %s14, 0
      %p108 = por %p106, %p107
      %p109 = scmp.ne.s32.totalorder %s95, %s96
      %p110 = scmp.eq.s32.totalorder %s15, 1
      %p111 = por %p109, %p110
      %p113 = scmp.ne.s32.totalorder %s96, %s112
      %p114 = scmp.eq.s32.totalorder %s15, 0
      %p115 = por %p113, %p114
      %p116 = scmp.le.s32.totalorder 1, %s9
      %p117 = scmp.lt.s32.totalorder %s9, 3
      %p118 = pnand %p116, %p117
      %p119 = pneg %p118
      // Predicated region
      $region9: #{rnn_modelv2_forward.9} parent=5 // pred_check
        _
      $region10: #{rnn_modelv2_forward.9} parent=5 // pred_check_branch
        %121 = sbr.rel (%p118) target = $region12
      $region11: #{rnn_modelv2_forward.9} parent=5 // pred_region
        %s122 = ssub.s32 %s9, 1
        // Predicated region
        $region13: #{rnn_modelv2_forward.9} parent=11 // pred_check
          %p123 = pneg %p30
        $region14: #{rnn_modelv2_forward.9} parent=11 // pred_check_branch
          %125 = sbr.rel (%p123) target = $region16
        $region15: #{rnn_modelv2_forward.9} parent=11 // pred_region
          _
        $region16: #{rnn_modelv2_forward.9} parent=11 // pred_fallthru
          _
      $region12: #{rnn_modelv2_forward.9} parent=5 // pred_fallthru
        _
      %p126 = scmp.lt.s32.totalorder %s9, 2
      // Predicated region
      $region17: #{rnn_modelv2_forward.9} parent=5 // pred_check
        %p127 = pneg %p126
      $region18: #{rnn_modelv2_forward.9} parent=5 // pred_check_branch
        %129 = sbr.rel (%p127) target = $region20
      $region19: #{rnn_modelv2_forward.9} parent=5 // pred_region
        // Predicated region
        $region21: #{rnn_modelv2_forward.9} parent=19 // pred_check
          %p130 = pneg %p50
        $region22: #{rnn_modelv2_forward.9} parent=19 // pred_check_branch
          %132 = sbr.rel (%p130) target = $region24
        $region23: #{rnn_modelv2_forward.9} parent=19 // pred_region
          %s133 = sand.u32 %s40, 1
          %s134 = sand.u32 %s40, 1
          %s135 = smul.addr %s134, 512
          %s136 = scalar_lea.vmem [#allocation2], %s135
          %s137 = smul.u32 4, %s9
          %s138 = smul.addr %s137, 4
          %s139 = scalar_lea.vmem %s1, %s138
          // Predicated region
          $region25: #{rnn_modelv2_forward.9} parent=23 // pred_check
            _
          $region26: #{rnn_modelv2_forward.9} parent=23 // pred_check_branch
            %141 = sbr.rel (0) target = $region28
          $region27: #{rnn_modelv2_forward.9} parent=23 // pred_region
            // Predicated region
            $region29: #{rnn_modelv2_forward.9} parent=27 // pred_check
              _
            $region30: #{rnn_modelv2_forward.9} parent=27 // pred_check_branch
              %143 = sbr.rel (0) target = $region32
            $region31: #{rnn_modelv2_forward.9} parent=27 // pred_region
              loop: start=0, step=1, limit=1
              $region33: #{rnn_modelv2_forward.9} parent=31 // loop_pre_header
                _
              $region34: #{rnn_modelv2_forward.9} parent=31 // loop_header
                %s145 = sphi 0, %s149
                %p146 = scmp.ge.s32.totalorder %s145, 1
                %s150 = sphi %s139, %s139
                %s151 = sphi %s136, %s136
              $region35: #{rnn_modelv2_forward.9} parent=31 // loop_header_branch
                %148 = sbr.rel (%p146) target = $region39
              $region36: #{rnn_modelv2_forward.9} parent=31 // loop_body
                %v152 = vld [vmem:[%s150] sm:$0xff]
                %153 = vst [vmem:[%s151] sm:$0xff] %v152
                %v154 = vld [vmem:[%s150 + $0x8] sm:$0xff]
                %155 = vst [vmem:[%s151 + $0x8] sm:$0xff] %v154
                %v156 = vld [vmem:[%s150 + $0x20] sm:$0xff]
                %157 = vst [vmem:[%s151 + $0x10] sm:$0xff] %v156
                %v158 = vld [vmem:[%s150 + $0x28] sm:$0xff]
                %159 = vst [vmem:[%s151 + $0x18] sm:$0xff] %v158
                %v160 = vld [vmem:[%s150 + $0x40] sm:$0xff]
                %161 = vst [vmem:[%s151 + $0x20] sm:$0xff] %v160
                %v162 = vld [vmem:[%s150 + $0x48] sm:$0xff]
                %163 = vst [vmem:[%s151 + $0x28] sm:$0xff] %v162
                %v164 = vld [vmem:[%s150 + $0x60] sm:$0xff]
                %165 = vst [vmem:[%s151 + $0x30] sm:$0xff] %v164
                %v166 = vld [vmem:[%s150 + $0x68] sm:$0xff]
                %167 = vst [vmem:[%s151 + $0x38] sm:$0xff] %v166
                %v168 = vld [vmem:[%s150 + $0x80] sm:$0xff]
                %169 = vst [vmem:[%s151 + $0x40] sm:$0xff] %v168
                %v170 = vld [vmem:[%s150 + $0x88] sm:$0xff]
                %171 = vst [vmem:[%s151 + $0x48] sm:$0xff] %v170
                %v172 = vld [vmem:[%s150 + $0xa0] sm:$0xff]
                %173 = vst [vmem:[%s151 + $0x50] sm:$0xff] %v172
                %v174 = vld [vmem:[%s150 + $0xa8] sm:$0xff]
                %175 = vst [vmem:[%s151 + $0x58] sm:$0xff] %v174
                %v176 = vld [vmem:[%s150 + $0xc0] sm:$0xff]
                %177 = vst [vmem:[%s151 + $0x60] sm:$0xff] %v176
                %v178 = vld [vmem:[%s150 + $0xc8] sm:$0xff]
                %179 = vst [vmem:[%s151 + $0x68] sm:$0xff] %v178
                %v180 = vld [vmem:[%s150 + $0xe0] sm:$0xff]
                %181 = vst [vmem:[%s151 + $0x70] sm:$0xff] %v180
                %v182 = vld [vmem:[%s150 + $0xe8] sm:$0xff]
                %183 = vst [vmem:[%s151 + $0x78] sm:$0xff] %v182
                %v184 = vld [vmem:[%s150 + $0x100] sm:$0xff]
                %185 = vst [vmem:[%s151 + $0x80] sm:$0xff] %v184
                %v186 = vld [vmem:[%s150 + $0x108] sm:$0xff]
                %187 = vst [vmem:[%s151 + $0x88] sm:$0xff] %v186
                %v188 = vld [vmem:[%s150 + $0x120] sm:$0xff]
                %189 = vst [vmem:[%s151 + $0x90] sm:$0xff] %v188
                %v190 = vld [vmem:[%s150 + $0x128] sm:$0xff]
                %191 = vst [vmem:[%s151 + $0x98] sm:$0xff] %v190
                %v192 = vld [vmem:[%s150 + $0x140] sm:$0xff]
                %193 = vst [vmem:[%s151 + $0xa0] sm:$0xff] %v192
                %v194 = vld [vmem:[%s150 + $0x148] sm:$0xff]
                %195 = vst [vmem:[%s151 + $0xa8] sm:$0xff] %v194
                %v196 = vld [vmem:[%s150 + $0x160] sm:$0xff]
                %197 = vst [vmem:[%s151 + $0xb0] sm:$0xff] %v196
                %v198 = vld [vmem:[%s150 + $0x168] sm:$0xff]
                %199 = vst [vmem:[%s151 + $0xb8] sm:$0xff] %v198
                %v200 = vld [vmem:[%s150 + $0x180] sm:$0xff]
                %201 = vst [vmem:[%s151 + $0xc0] sm:$0xff] %v200
                %v202 = vld [vmem:[%s150 + $0x188] sm:$0xff]
                %203 = vst [vmem:[%s151 + $0xc8] sm:$0xff] %v202
                %v204 = vld [vmem:[%s150 + $0x1a0] sm:$0xff]
                %205 = vst [vmem:[%s151 + $0xd0] sm:$0xff] %v204
                %v206 = vld [vmem:[%s150 + $0x1a8] sm:$0xff]
                %207 = vst [vmem:[%s151 + $0xd8] sm:$0xff] %v206
                %v208 = vld [vmem:[%s150 + $0x1c0] sm:$0xff]
                %209 = vst [vmem:[%s151 + $0xe0] sm:$0xff] %v208
                %v210 = vld [vmem:[%s150 + $0x1c8] sm:$0xff]
                %211 = vst [vmem:[%s151 + $0xe8] sm:$0xff] %v210
                %v212 = vld [vmem:[%s150 + $0x1e0] sm:$0xff]
                %213 = vst [vmem:[%s151 + $0xf0] sm:$0xff] %v212
                %v214 = vld [vmem:[%s150 + $0x1e8] sm:$0xff]
                %215 = vst [vmem:[%s151 + $0xf8] sm:$0xff] %v214
                %v216 = vld [vmem:[%s150 + $0x200] sm:$0xff]
                %217 = vst [vmem:[%s151 + $0x100] sm:$0xff] %v216
                %v218 = vld [vmem:[%s150 + $0x208] sm:$0xff]
                %219 = vst [vmem:[%s151 + $0x108] sm:$0xff] %v218
                %v220 = vld [vmem:[%s150 + $0x220] sm:$0xff]
                %221 = vst [vmem:[%s151 + $0x110] sm:$0xff] %v220
                %v222 = vld [vmem:[%s150 + $0x228] sm:$0xff]
                %223 = vst [vmem:[%s151 + $0x118] sm:$0xff] %v222
                %v224 = vld [vmem:[%s150 + $0x240] sm:$0xff]
                %225 = vst [vmem:[%s151 + $0x120] sm:$0xff] %v224
                %v226 = vld [vmem:[%s150 + $0x248] sm:$0xff]
                %227 = vst [vmem:[%s151 + $0x128] sm:$0xff] %v226
                %v228 = vld [vmem:[%s150 + $0x260] sm:$0xff]
                %229 = vst [vmem:[%s151 + $0x130] sm:$0xff] %v228
                %v230 = vld [vmem:[%s150 + $0x268] sm:$0xff]
                %231 = vst [vmem:[%s151 + $0x138] sm:$0xff] %v230
                %v232 = vld [vmem:[%s150 + $0x280] sm:$0xff]
                %233 = vst [vmem:[%s151 + $0x140] sm:$0xff] %v232
                %v234 = vld [vmem:[%s150 + $0x288] sm:$0xff]
                %235 = vst [vmem:[%s151 + $0x148] sm:$0xff] %v234
                %v236 = vld [vmem:[%s150 + $0x2a0] sm:$0xff]
                %237 = vst [vmem:[%s151 + $0x150] sm:$0xff] %v236
                %v238 = vld [vmem:[%s150 + $0x2a8] sm:$0xff]
                %239 = vst [vmem:[%s151 + $0x158] sm:$0xff] %v238
                %v240 = vld [vmem:[%s150 + $0x2c0] sm:$0xff]
                %241 = vst [vmem:[%s151 + $0x160] sm:$0xff] %v240
                %v242 = vld [vmem:[%s150 + $0x2c8] sm:$0xff]
                %243 = vst [vmem:[%s151 + $0x168] sm:$0xff] %v242
                %v244 = vld [vmem:[%s150 + $0x2e0] sm:$0xff]
                %245 = vst [vmem:[%s151 + $0x170] sm:$0xff] %v244
                %v246 = vld [vmem:[%s150 + $0x2e8] sm:$0xff]
                %247 = vst [vmem:[%s151 + $0x178] sm:$0xff] %v246
                %v248 = vld [vmem:[%s150 + $0x300] sm:$0xff]
                %249 = vst [vmem:[%s151 + $0x180] sm:$0xff] %v248
                %v250 = vld [vmem:[%s150 + $0x308] sm:$0xff]
                %251 = vst [vmem:[%s151 + $0x188] sm:$0xff] %v250
                %v252 = vld [vmem:[%s150 + $0x320] sm:$0xff]
                %253 = vst [vmem:[%s151 + $0x190] sm:$0xff] %v252
                %v254 = vld [vmem:[%s150 + $0x328] sm:$0xff]
                %255 = vst [vmem:[%s151 + $0x198] sm:$0xff] %v254
                %v256 = vld [vmem:[%s150 + $0x340] sm:$0xff]
                %257 = vst [vmem:[%s151 + $0x1a0] sm:$0xff] %v256
                %v258 = vld [vmem:[%s150 + $0x348] sm:$0xff]
                %259 = vst [vmem:[%s151 + $0x1a8] sm:$0xff] %v258
                %v260 = vld [vmem:[%s150 + $0x360] sm:$0xff]
                %261 = vst [vmem:[%s151 + $0x1b0] sm:$0xff] %v260
                %v262 = vld [vmem:[%s150 + $0x368] sm:$0xff]
                %263 = vst [vmem:[%s151 + $0x1b8] sm:$0xff] %v262
                %v264 = vld [vmem:[%s150 + $0x380] sm:$0xff]
                %265 = vst [vmem:[%s151 + $0x1c0] sm:$0xff] %v264
                %v266 = vld [vmem:[%s150 + $0x388] sm:$0xff]
                %267 = vst [vmem:[%s151 + $0x1c8] sm:$0xff] %v266
                %v268 = vld [vmem:[%s150 + $0x3a0] sm:$0xff]
                %269 = vst [vmem:[%s151 + $0x1d0] sm:$0xff] %v268
                %v270 = vld [vmem:[%s150 + $0x3a8] sm:$0xff]
                %271 = vst [vmem:[%s151 + $0x1d8] sm:$0xff] %v270
                %v272 = vld [vmem:[%s150 + $0x3c0] sm:$0xff]
                %273 = vst [vmem:[%s151 + $0x1e0] sm:$0xff] %v272
                %v274 = vld [vmem:[%s150 + $0x3c8] sm:$0xff]
                %275 = vst [vmem:[%s151 + $0x1e8] sm:$0xff] %v274
                %v276 = vld [vmem:[%s150 + $0x3e0] sm:$0xff]
                %277 = vst [vmem:[%s151 + $0x1f0] sm:$0xff] %v276
                %v278 = vld [vmem:[%s150 + $0x3e8] sm:$0xff]
                %279 = vst [vmem:[%s151 + $0x1f8] sm:$0xff] %v278
              $region37: #{rnn_modelv2_forward.9} parent=31 // loop_footer
                %s149 = sadd.s32 1, %s145
              $region38: #{rnn_modelv2_forward.9} parent=31 // loop_footer_branch
                %144 = sbr.rel target = $region34
              $region39: #{rnn_modelv2_forward.9} parent=31 // loop_exit
                _
            $region32: #{rnn_modelv2_forward.9} parent=27 // pred_fallthru
              _
            // Predicated region
            $region40: #{rnn_modelv2_forward.9} parent=27 // pred_check
              _
            $region41: #{rnn_modelv2_forward.9} parent=27 // pred_check_branch
              %281 = sbr.rel target = $region43
            $region42: #{rnn_modelv2_forward.9} parent=27 // pred_region
              _
            $region43: #{rnn_modelv2_forward.9} parent=27 // pred_fallthru
              _
          $region28: #{rnn_modelv2_forward.9} parent=23 // pred_fallthru
            _
          %282 = vnop
        $region24: #{rnn_modelv2_forward.9} parent=19 // pred_fallthru
          _
        // Predicated region
        $region44: #{rnn_modelv2_forward.9} parent=19 // pred_check
          %p283 = pneg %p76
        $region45: #{rnn_modelv2_forward.9} parent=19 // pred_check_branch
          %285 = sbr.rel (%p283) target = $region47
        $region46: #{rnn_modelv2_forward.9} parent=19 // pred_region
          %s286 = smul.u32 4, %s9
          %p287 = scmp.lt.s32.totalorder %s286, 7
          %s288 = scalar_select %p287, %s286, 7
          %s289 = scalar_lea.vmem %s2, %s288
          %s290 = smul.u32 4, %s9
        $region47: #{rnn_modelv2_forward.9} parent=19 // pred_fallthru
          _
      $region20: #{rnn_modelv2_forward.9} parent=5 // pred_fallthru
        _
      %p291 = scmp.le.s32.totalorder 1, %s9
      %p292 = scmp.lt.s32.totalorder %s9, 3
      %p293 = pnand %p291, %p292
      %p294 = pneg %p293
      // Predicated region
      $region48: #{rnn_modelv2_forward.9} parent=5 // pred_check
        _
      $region49: #{rnn_modelv2_forward.9} parent=5 // pred_check_branch
        %296 = sbr.rel (%p293) target = $region51
      $region50: #{rnn_modelv2_forward.9} parent=5 // pred_region
        %s297 = ssub.s32 %s9, 1
        %s298 = sand.u32 %s43, 1
        %s299 = sand.u32 %s43, 1
        %s300 = smul.addr %s299, 512
        %s301 = scalar_lea.vmem [#allocation2], %s300
        // Predicated region
        $region52: #{rnn_modelv2_forward.9} parent=50 // pred_check
          %p302 = pneg %p56
        $region53: #{rnn_modelv2_forward.9} parent=50 // pred_check_branch
          %304 = sbr.rel (%p302) target = $region55
        $region54: #{rnn_modelv2_forward.9} parent=50 // pred_region
          _
        $region55: #{rnn_modelv2_forward.9} parent=50 // pred_fallthru
          _
        %p305 = pneg %p30
        %p306 = pneg %p27
        %s307 = sand.u32 %s43, 1
        %s308 = sand.u32 %s43, 1
        %s309 = smul.addr %s308, 512
        %s310 = scalar_lea.vmem [#allocation2], %s309
        %p311 = pneg %p56
        %p312 = pneg %p53
        %s313 = smul.u32 4, %s14
        %p314 = scmp.lt.s32.totalorder %s313, 7
        %s315 = scalar_select %p314, %s313, 7
        %s316 = scalar_lea.vmem %s2, %s315
        %p317 = pneg %p82
        %p318 = pneg %p79
        %p319 = pneg %p108
        %p320 = pneg %p105
        %s321 = sand.u32 %s95, 1
        %s322 = sand.u32 %s95, 1
        %s323 = smul.addr %s322, 256
        %s324 = scalar_lea.vmem [#allocation3], %s323
        %s325 = smul.u32 4, %s14
        %s326 = smul.u32 4, %s14
        %p327 = scmp.lt.s32.totalorder %s326, 7
        %s328 = scalar_select %p327, %s326, 7
        %s329 = scalar_lea.vmem %s2, %s328
        %s330 = smul.u32 4, %s14
        %s331 = smul.u32 4, %s14
        %v332 = vld [vmem:[%s0] sm:$0xff]
        %v333 = vld [vmem:[%s0 + $0x8] sm:$0xff]
        %v334 = vld [vmem:[%s0 + $0x10] sm:$0xff]
        %v335 = vld [vmem:[%s0 + $0x18] sm:$0xff]
        %v336 = vld [vmem:[%s0 + $0x20] sm:$0xff]
        %v337 = vld [vmem:[%s0 + $0x28] sm:$0xff]
        %v338 = vld [vmem:[%s0 + $0x30] sm:$0xff]
        %v339 = vld [vmem:[%s0 + $0x38] sm:$0xff]
        %v340 = vld [vmem:[%s0 + $0x40] sm:$0xff]
        %v341 = vld [vmem:[%s0 + $0x48] sm:$0xff]
        %v342 = vld [vmem:[%s0 + $0x50] sm:$0xff]
        %v343 = vld [vmem:[%s0 + $0x58] sm:$0xff]
        %v344 = vld [vmem:[%s0 + $0x60] sm:$0xff]
        %v345 = vld [vmem:[%s0 + $0x68] sm:$0xff]
        %v346 = vld [vmem:[%s0 + $0x70] sm:$0xff]
        %v347 = vld [vmem:[%s0 + $0x78] sm:$0xff]
        %v348 = vpack.c.bf16 %v334, %v332
        %v349 = vpack.c.bf16 %v335, %v333
        %v350 = vpack.c.bf16 %v338, %v336
        %v351 = vpack.c.bf16 %v339, %v337
        %v352 = vpack.c.bf16 %v342, %v340
        %v353 = vpack.c.bf16 %v343, %v341
        %v354 = vpack.c.bf16 %v346, %v344
        %v355 = vpack.c.bf16 %v347, %v345
        %v356 = vld [vmem:[%s301] sm:$0xff]
        %v357 = vld [vmem:[%s301 + $0x8] sm:$0xff]
        %v358 = vld [vmem:[%s301 + $0x10] sm:$0xff]
        %v359 = vld [vmem:[%s301 + $0x18] sm:$0xff]
        %v360 = vld [vmem:[%s301 + $0x20] sm:$0xff]
        %v361 = vld [vmem:[%s301 + $0x28] sm:$0xff]
        %v362 = vld [vmem:[%s301 + $0x30] sm:$0xff]
        %v363 = vld [vmem:[%s301 + $0x38] sm:$0xff]
        %v364 = vld [vmem:[%s301 + $0x40] sm:$0xff]
        %v365 = vld [vmem:[%s301 + $0x48] sm:$0xff]
        %v366 = vld [vmem:[%s301 + $0x50] sm:$0xff]
        %v367 = vld [vmem:[%s301 + $0x58] sm:$0xff]
        %v368 = vld [vmem:[%s301 + $0x60] sm:$0xff]
        %v369 = vld [vmem:[%s301 + $0x68] sm:$0xff]
        %v370 = vld [vmem:[%s301 + $0x70] sm:$0xff]
        %v371 = vld [vmem:[%s301 + $0x78] sm:$0xff]
        %v372 = vld [vmem:[%s301 + $0x80] sm:$0xff]
        %v373 = vld [vmem:[%s301 + $0x88] sm:$0xff]
        %v374 = vld [vmem:[%s301 + $0x90] sm:$0xff]
        %v375 = vld [vmem:[%s301 + $0x98] sm:$0xff]
        %v376 = vld [vmem:[%s301 + $0xa0] sm:$0xff]
        %v377 = vld [vmem:[%s301 + $0xa8] sm:$0xff]
        %v378 = vld [vmem:[%s301 + $0xb0] sm:$0xff]
        %v379 = vld [vmem:[%s301 + $0xb8] sm:$0xff]
        %v380 = vld [vmem:[%s301 + $0xc0] sm:$0xff]
        %v381 = vld [vmem:[%s301 + $0xc8] sm:$0xff]
        %v382 = vld [vmem:[%s301 + $0xd0] sm:$0xff]
        %v383 = vld [vmem:[%s301 + $0xd8] sm:$0xff]
        %v384 = vld [vmem:[%s301 + $0xe0] sm:$0xff]
        %v385 = vld [vmem:[%s301 + $0xe8] sm:$0xff]
        %v386 = vld [vmem:[%s301 + $0xf0] sm:$0xff]
        %v387 = vld [vmem:[%s301 + $0xf8] sm:$0xff]
        %v388 = vld [vmem:[%s301 + $0x100] sm:$0xff]
        %v389 = vld [vmem:[%s301 + $0x108] sm:$0xff]
        %v390 = vld [vmem:[%s301 + $0x110] sm:$0xff]
        %v391 = vld [vmem:[%s301 + $0x118] sm:$0xff]
        %v392 = vld [vmem:[%s301 + $0x120] sm:$0xff]
        %v393 = vld [vmem:[%s301 + $0x128] sm:$0xff]
        %v394 = vld [vmem:[%s301 + $0x130] sm:$0xff]
        %v395 = vld [vmem:[%s301 + $0x138] sm:$0xff]
        %v396 = vld [vmem:[%s301 + $0x140] sm:$0xff]
        %v397 = vld [vmem:[%s301 + $0x148] sm:$0xff]
        %v398 = vld [vmem:[%s301 + $0x150] sm:$0xff]
        %v399 = vld [vmem:[%s301 + $0x158] sm:$0xff]
        %v400 = vld [vmem:[%s301 + $0x160] sm:$0xff]
        %v401 = vld [vmem:[%s301 + $0x168] sm:$0xff]
        %v402 = vld [vmem:[%s301 + $0x170] sm:$0xff]
        %v403 = vld [vmem:[%s301 + $0x178] sm:$0xff]
        %v404 = vld [vmem:[%s301 + $0x180] sm:$0xff]
        %v405 = vld [vmem:[%s301 + $0x188] sm:$0xff]
        %v406 = vld [vmem:[%s301 + $0x190] sm:$0xff]
        %v407 = vld [vmem:[%s301 + $0x198] sm:$0xff]
        %v408 = vld [vmem:[%s301 + $0x1a0] sm:$0xff]
        %v409 = vld [vmem:[%s301 + $0x1a8] sm:$0xff]
        %v410 = vld [vmem:[%s301 + $0x1b0] sm:$0xff]
        %v411 = vld [vmem:[%s301 + $0x1b8] sm:$0xff]
        %v412 = vld [vmem:[%s301 + $0x1c0] sm:$0xff]
        %v413 = vld [vmem:[%s301 + $0x1c8] sm:$0xff]
        %v414 = vld [vmem:[%s301 + $0x1d0] sm:$0xff]
        %v415 = vld [vmem:[%s301 + $0x1d8] sm:$0xff]
        %v416 = vld [vmem:[%s301 + $0x1e0] sm:$0xff]
        %v417 = vld [vmem:[%s301 + $0x1e8] sm:$0xff]
        %v418 = vld [vmem:[%s301 + $0x1f0] sm:$0xff]
        %v419 = vld [vmem:[%s301 + $0x1f8] sm:$0xff]
        %v420 = vld [vmem:[%s329] sm:$0xf]
        %v422 = vlaneseq
        %v423 = vshrl.u32 %v422, 7
        %v424 = vsub.s32 0, %v423
        %v425 = vrot.slane %v420, %v424
        %v426 = vlaneseq
        %v427 = vshrl.u32 %v426, 7
        %v428 = vsub.s32 1, %v427
        %v429 = vrot.slane %v420, %v428
        %v430 = vlaneseq
        %v431 = vshrl.u32 %v430, 7
        %v432 = vsub.s32 2, %v431
        %v433 = vrot.slane %v420, %v432
        %v434 = vlaneseq
        %v435 = vshrl.u32 %v434, 7
        %v436 = vsub.s32 3, %v435
        %v437 = vrot.slane %v420, %v436
        %v506 = vunpack.c.l.b16 %v356
        %v507 = vunpack.c.h.b16 %v356
        %v508 = vunpack.c.l.b16 %v357
        %v509 = vunpack.c.h.b16 %v357
        %v510 = vunpack.c.l.b16 %v358
        %v511 = vunpack.c.h.b16 %v358
        %v512 = vunpack.c.l.b16 %v359
        %v513 = vunpack.c.h.b16 %v359
        %v514 = vunpack.c.l.b16 %v360
        %v515 = vunpack.c.h.b16 %v360
        %v516 = vunpack.c.l.b16 %v361
        %v517 = vunpack.c.h.b16 %v361
        %v518 = vunpack.c.l.b16 %v362
        %v519 = vunpack.c.h.b16 %v362
        %v520 = vunpack.c.l.b16 %v363
        %v521 = vunpack.c.h.b16 %v363
        %v522 = vunpack.c.l.b16 %v364
        %v523 = vunpack.c.h.b16 %v364
        %v524 = vunpack.c.l.b16 %v365
        %v525 = vunpack.c.h.b16 %v365
        %v526 = vunpack.c.l.b16 %v366
        %v527 = vunpack.c.h.b16 %v366
        %v528 = vunpack.c.l.b16 %v367
        %v529 = vunpack.c.h.b16 %v367
        %v530 = vunpack.c.l.b16 %v368
        %v531 = vunpack.c.h.b16 %v368
        %v532 = vunpack.c.l.b16 %v369
        %v533 = vunpack.c.h.b16 %v369
        %v534 = vunpack.c.l.b16 %v370
        %v535 = vunpack.c.h.b16 %v370
        %v536 = vunpack.c.l.b16 %v371
        %v537 = vunpack.c.h.b16 %v371
        %v538 = vunpack.c.l.b16 %v372
        %v539 = vunpack.c.h.b16 %v372
        %v540 = vunpack.c.l.b16 %v373
        %v541 = vunpack.c.h.b16 %v373
        %v542 = vunpack.c.l.b16 %v374
        %v543 = vunpack.c.h.b16 %v374
        %v544 = vunpack.c.l.b16 %v375
        %v545 = vunpack.c.h.b16 %v375
        %v546 = vunpack.c.l.b16 %v376
        %v547 = vunpack.c.h.b16 %v376
        %v548 = vunpack.c.l.b16 %v377
        %v549 = vunpack.c.h.b16 %v377
        %v550 = vunpack.c.l.b16 %v378
        %v551 = vunpack.c.h.b16 %v378
        %v552 = vunpack.c.l.b16 %v379
        %v553 = vunpack.c.h.b16 %v379
        %v554 = vunpack.c.l.b16 %v380
        %v555 = vunpack.c.h.b16 %v380
        %v556 = vunpack.c.l.b16 %v381
        %v557 = vunpack.c.h.b16 %v381
        %v558 = vunpack.c.l.b16 %v382
        %v559 = vunpack.c.h.b16 %v382
        %v560 = vunpack.c.l.b16 %v383
        %v561 = vunpack.c.h.b16 %v383
        %v562 = vunpack.c.l.b16 %v384
        %v563 = vunpack.c.h.b16 %v384
        %v564 = vunpack.c.l.b16 %v385
        %v565 = vunpack.c.h.b16 %v385
        %v566 = vunpack.c.l.b16 %v386
        %v567 = vunpack.c.h.b16 %v386
        %v568 = vunpack.c.l.b16 %v387
        %v569 = vunpack.c.h.b16 %v387
        %v570 = vunpack.c.l.b16 %v388
        %v571 = vunpack.c.h.b16 %v388
        %v572 = vunpack.c.l.b16 %v389
        %v573 = vunpack.c.h.b16 %v389
        %v574 = vunpack.c.l.b16 %v390
        %v575 = vunpack.c.h.b16 %v390
        %v576 = vunpack.c.l.b16 %v391
        %v577 = vunpack.c.h.b16 %v391
        %v578 = vunpack.c.l.b16 %v392
        %v579 = vunpack.c.h.b16 %v392
        %v580 = vunpack.c.l.b16 %v393
        %v581 = vunpack.c.h.b16 %v393
        %v582 = vunpack.c.l.b16 %v394
        %v583 = vunpack.c.h.b16 %v394
        %v584 = vunpack.c.l.b16 %v395
        %v585 = vunpack.c.h.b16 %v395
        %v586 = vunpack.c.l.b16 %v396
        %v587 = vunpack.c.h.b16 %v396
        %v588 = vunpack.c.l.b16 %v397
        %v589 = vunpack.c.h.b16 %v397
        %v590 = vunpack.c.l.b16 %v398
        %v591 = vunpack.c.h.b16 %v398
        %v592 = vunpack.c.l.b16 %v399
        %v593 = vunpack.c.h.b16 %v399
        %v594 = vunpack.c.l.b16 %v400
        %v595 = vunpack.c.h.b16 %v400
        %v596 = vunpack.c.l.b16 %v401
        %v597 = vunpack.c.h.b16 %v401
        %v598 = vunpack.c.l.b16 %v402
        %v599 = vunpack.c.h.b16 %v402
        %v600 = vunpack.c.l.b16 %v403
        %v601 = vunpack.c.h.b16 %v403
        %v602 = vunpack.c.l.b16 %v404
        %v603 = vunpack.c.h.b16 %v404
        %v604 = vunpack.c.l.b16 %v405
        %v605 = vunpack.c.h.b16 %v405
        %v606 = vunpack.c.l.b16 %v406
        %v607 = vunpack.c.h.b16 %v406
        %v608 = vunpack.c.l.b16 %v407
        %v609 = vunpack.c.h.b16 %v407
        %v610 = vunpack.c.l.b16 %v408
        %v611 = vunpack.c.h.b16 %v408
        %v612 = vunpack.c.l.b16 %v409
        %v613 = vunpack.c.h.b16 %v409
        %v614 = vunpack.c.l.b16 %v410
        %v615 = vunpack.c.h.b16 %v410
        %v616 = vunpack.c.l.b16 %v411
        %v617 = vunpack.c.h.b16 %v411
        %v618 = vunpack.c.l.b16 %v412
        %v619 = vunpack.c.h.b16 %v412
        %v620 = vunpack.c.l.b16 %v413
        %v621 = vunpack.c.h.b16 %v413
        %v622 = vunpack.c.l.b16 %v414
        %v623 = vunpack.c.h.b16 %v414
        %v624 = vunpack.c.l.b16 %v415
        %v625 = vunpack.c.h.b16 %v415
        %v626 = vunpack.c.l.b16 %v416
        %v627 = vunpack.c.h.b16 %v416
        %v628 = vunpack.c.l.b16 %v417
        %v629 = vunpack.c.h.b16 %v417
        %v630 = vunpack.c.l.b16 %v418
        %v631 = vunpack.c.h.b16 %v418
        %v632 = vunpack.c.l.b16 %v419
        %v633 = vunpack.c.h.b16 %v419
        %v634 = vpack.c.b16 %v510, %v506
        %v635 = vpack.c.b16 %v511, %v507
        %v636 = vpack.c.b16 %v512, %v508
        %v637 = vpack.c.b16 %v513, %v509
        %v638 = vpack.c.b16 %v518, %v514
        %v639 = vpack.c.b16 %v519, %v515
        %v640 = vpack.c.b16 %v520, %v516
        %v641 = vpack.c.b16 %v521, %v517
        %v642 = vpack.c.b16 %v526, %v522
        %v643 = vpack.c.b16 %v527, %v523
        %v644 = vpack.c.b16 %v528, %v524
        %v645 = vpack.c.b16 %v529, %v525
        %v646 = vpack.c.b16 %v534, %v530
        %v647 = vpack.c.b16 %v535, %v531
        %v648 = vpack.c.b16 %v536, %v532
        %v649 = vpack.c.b16 %v537, %v533
        %v650 = vpack.c.b16 %v542, %v538
        %v651 = vpack.c.b16 %v543, %v539
        %v652 = vpack.c.b16 %v544, %v540
        %v653 = vpack.c.b16 %v545, %v541
        %v654 = vpack.c.b16 %v550, %v546
        %v655 = vpack.c.b16 %v551, %v547
        %v656 = vpack.c.b16 %v552, %v548
        %v657 = vpack.c.b16 %v553, %v549
        %v658 = vpack.c.b16 %v558, %v554
        %v659 = vpack.c.b16 %v559, %v555
        %v660 = vpack.c.b16 %v560, %v556
        %v661 = vpack.c.b16 %v561, %v557
        %v662 = vpack.c.b16 %v566, %v562
        %v663 = vpack.c.b16 %v567, %v563
        %v664 = vpack.c.b16 %v568, %v564
        %v665 = vpack.c.b16 %v569, %v565
        %v666 = vpack.c.b16 %v574, %v570
        %v667 = vpack.c.b16 %v575, %v571
        %v668 = vpack.c.b16 %v576, %v572
        %v669 = vpack.c.b16 %v577, %v573
        %v670 = vpack.c.b16 %v582, %v578
        %v671 = vpack.c.b16 %v583, %v579
        %v672 = vpack.c.b16 %v584, %v580
        %v673 = vpack.c.b16 %v585, %v581
        %v674 = vpack.c.b16 %v590, %v586
        %v675 = vpack.c.b16 %v591, %v587
        %v676 = vpack.c.b16 %v592, %v588
        %v677 = vpack.c.b16 %v593, %v589
        %v678 = vpack.c.b16 %v598, %v594
        %v679 = vpack.c.b16 %v599, %v595
        %v680 = vpack.c.b16 %v600, %v596
        %v681 = vpack.c.b16 %v601, %v597
        %v682 = vpack.c.b16 %v606, %v602
        %v683 = vpack.c.b16 %v607, %v603
        %v684 = vpack.c.b16 %v608, %v604
        %v685 = vpack.c.b16 %v609, %v605
        %v686 = vpack.c.b16 %v614, %v610
        %v687 = vpack.c.b16 %v615, %v611
        %v688 = vpack.c.b16 %v616, %v612
        %v689 = vpack.c.b16 %v617, %v613
        %v690 = vpack.c.b16 %v622, %v618
        %v691 = vpack.c.b16 %v623, %v619
        %v692 = vpack.c.b16 %v624, %v620
        %v693 = vpack.c.b16 %v625, %v621
        %v694 = vpack.c.b16 %v630, %v626
        %v695 = vpack.c.b16 %v631, %v627
        %v696 = vpack.c.b16 %v632, %v628
        %v697 = vpack.c.b16 %v633, %v629
        %762 = vmatprep.subr.bf16.mxu0 %v635
        %763 = vmatpush1.bf16.msra.mxu0 %v634
        %764 = vmatprep.subr.bf16.mxu0 %v639
        %765 = vmatpush1.bf16.msra.mxu0 %v638
        %766 = vmatprep.subr.bf16.mxu0 %v643
        %767 = vmatpush1.bf16.msra.mxu0 %v642
        %768 = vmatprep.subr.bf16.mxu0 %v647
        %769 = vmatpush1.bf16.msra.mxu0 %v646
        %770 = vmatprep.subr.bf16.mxu0 %v651
        %771 = vmatpush1.bf16.msra.mxu0 %v650
        %772 = vmatprep.subr.bf16.mxu0 %v655
        %773 = vmatpush1.bf16.msra.mxu0 %v654
        %774 = vmatprep.subr.bf16.mxu0 %v659
        %775 = vmatpush1.bf16.msra.mxu0 %v658
        %776 = vmatprep.subr.bf16.mxu0 %v663
        %777 = vmatpush1.bf16.msra.mxu0 %v662
        %778 = vmatprep.subr.bf16.mxu0 %v667
        %779 = vmatpush1.bf16.msra.mxu0 %v666
        %780 = vmatprep.subr.bf16.mxu0 %v671
        %781 = vmatpush1.bf16.msra.mxu0 %v670
        %782 = vmatprep.subr.bf16.mxu0 %v675
        %783 = vmatpush1.bf16.msra.mxu0 %v674
        %784 = vmatprep.subr.bf16.mxu0 %v679
        %785 = vmatpush1.bf16.msra.mxu0 %v678
        %786 = vmatprep.subr.bf16.mxu0 %v683
        %787 = vmatpush1.bf16.msra.mxu0 %v682
        %788 = vmatprep.subr.bf16.mxu0 %v687
        %789 = vmatpush1.bf16.msra.mxu0 %v686
        %790 = vmatprep.subr.bf16.mxu0 %v691
        %791 = vmatpush1.bf16.msra.mxu0 %v690
        %792 = vmatprep.subr.bf16.mxu0 %v695
        %793 = vmatpush1.bf16.msra.mxu0 %v694
        %794 = vmatprep.mubr.bf16.mxu0 %v349
        %795 = vmatmul.mubr.bf16.gmra.mrb[0].mxu0 %v348
        %v796 = vpop.f32.mrb[0].mxu0
        %v797 = vadd.f32 %v425, %v796
        %v798 = vpop.f32.mrb[0].mxu0
        %v799 = vadd.f32 %v429, %v798
        %v800 = vpop.f32.mrb[0].mxu0
        %v801 = vadd.f32 %v425, %v800
        %v802 = vpop.f32.mrb[0].mxu0
        %v803 = vadd.f32 %v429, %v802
        %804 = vmatprep.mubr.bf16.mxu0 %v351
        %805 = vmatmul.mubr.bf16.gmra.mrb[0].mxu0 %v350
        %v806 = vpop.f32.mrb[0].mxu0
        %v807 = vadd.f32 %v425, %v806
        %v808 = vpop.f32.mrb[0].mxu0
        %v809 = vadd.f32 %v429, %v808
        %v810 = vpop.f32.mrb[0].mxu0
        %v811 = vadd.f32 %v425, %v810
        %v812 = vpop.f32.mrb[0].mxu0
        %v813 = vadd.f32 %v429, %v812
        %814 = vmatprep.mubr.bf16.mxu0 %v353
        %815 = vmatmul.mubr.bf16.gmra.mrb[0].mxu0 %v352
        %v816 = vpop.f32.mrb[0].mxu0
        %v817 = vadd.f32 %v425, %v816
        %v818 = vpop.f32.mrb[0].mxu0
        %v819 = vadd.f32 %v429, %v818
        %v820 = vpop.f32.mrb[0].mxu0
        %v821 = vadd.f32 %v425, %v820
        %v822 = vpop.f32.mrb[0].mxu0
        %v823 = vadd.f32 %v429, %v822
        %824 = vmatprep.mubr.bf16.mxu0 %v355
        %825 = vmatmul.mubr.bf16.gmra.mrb[0].mxu0 %v354
        %v826 = vpop.f32.mrb[0].mxu0
        %v827 = vadd.f32 %v425, %v826
        %v828 = vpop.f32.mrb[0].mxu0
        %v829 = vadd.f32 %v429, %v828
        %v830 = vpop.f32.mrb[0].mxu0
        %v831 = vadd.f32 %v425, %v830
        %v832 = vpop.f32.mrb[0].mxu0
        %v833 = vadd.f32 %v429, %v832
        %834 = vdwg.mxu0
        %835 = vmatprep.subr.bf16.mxu0 %v637
        %836 = vmatpush1.bf16.msra.mxu0 %v636
        %837 = vmatprep.subr.bf16.mxu0 %v641
        %838 = vmatpush1.bf16.msra.mxu0 %v640
        %839 = vmatprep.subr.bf16.mxu0 %v645
        %840 = vmatpush1.bf16.msra.mxu0 %v644
        %841 = vmatprep.subr.bf16.mxu0 %v649
        %842 = vmatpush1.bf16.msra.mxu0 %v648
        %843 = vmatprep.subr.bf16.mxu0 %v653
        %844 = vmatpush1.bf16.msra.mxu0 %v652
        %845 = vmatprep.subr.bf16.mxu0 %v657
        %846 = vmatpush1.bf16.msra.mxu0 %v656
        %847 = vmatprep.subr.bf16.mxu0 %v661
        %848 = vmatpush1.bf16.msra.mxu0 %v660
        %849 = vmatprep.subr.bf16.mxu0 %v665
        %850 = vmatpush1.bf16.msra.mxu0 %v664
        %851 = vmatprep.subr.bf16.mxu0 %v669
        %852 = vmatpush1.bf16.msra.mxu0 %v668
        %853 = vmatprep.subr.bf16.mxu0 %v673
        %854 = vmatpush1.bf16.msra.mxu0 %v672
        %855 = vmatprep.subr.bf16.mxu0 %v677
        %856 = vmatpush1.bf16.msra.mxu0 %v676
        %857 = vmatprep.subr.bf16.mxu0 %v681
        %858 = vmatpush1.bf16.msra.mxu0 %v680
        %859 = vmatprep.subr.bf16.mxu0 %v685
        %860 = vmatpush1.bf16.msra.mxu0 %v684
        %861 = vmatprep.subr.bf16.mxu0 %v689
        %862 = vmatpush1.bf16.msra.mxu0 %v688
        %863 = vmatprep.subr.bf16.mxu0 %v693
        %864 = vmatpush1.bf16.msra.mxu0 %v692
        %865 = vmatprep.subr.bf16.mxu0 %v697
        %866 = vmatpush1.bf16.msra.mxu0 %v696
        %867 = vmatprep.mubr.bf16.mxu0 %v349
        %868 = vmatmul.mubr.bf16.gmra.mrb[0].mxu0 %v348
        %v869 = vpop.f32.mrb[0].mxu0
        %v870 = vadd.f32 %v433, %v869
        %v871 = vpop.f32.mrb[0].mxu0
        %v872 = vadd.f32 %v437, %v871
        %v873 = vpop.f32.mrb[0].mxu0
        %v874 = vadd.f32 %v433, %v873
        %v875 = vpop.f32.mrb[0].mxu0
        %v876 = vadd.f32 %v437, %v875
        %877 = vmatprep.mubr.bf16.mxu0 %v351
        %878 = vmatmul.mubr.bf16.gmra.mrb[0].mxu0 %v350
        %v879 = vpop.f32.mrb[0].mxu0
        %v880 = vadd.f32 %v433, %v879
        %v881 = vpop.f32.mrb[0].mxu0
        %v882 = vadd.f32 %v437, %v881
        %v883 = vpop.f32.mrb[0].mxu0
        %v884 = vadd.f32 %v433, %v883
        %v885 = vpop.f32.mrb[0].mxu0
        %v886 = vadd.f32 %v437, %v885
        %887 = vmatprep.mubr.bf16.mxu0 %v353
        %888 = vmatmul.mubr.bf16.gmra.mrb[0].mxu0 %v352
        %v889 = vpop.f32.mrb[0].mxu0
        %v890 = vadd.f32 %v433, %v889
        %v891 = vpop.f32.mrb[0].mxu0
        %v892 = vadd.f32 %v437, %v891
        %v893 = vpop.f32.mrb[0].mxu0
        %v894 = vadd.f32 %v433, %v893
        %v895 = vpop.f32.mrb[0].mxu0
        %v896 = vadd.f32 %v437, %v895
        %897 = vmatprep.mubr.bf16.mxu0 %v355
        %898 = vmatmul.mubr.bf16.gmra.mrb[0].mxu0 %v354
        %v899 = vpop.f32.mrb[0].mxu0
        %v900 = vadd.f32 %v433, %v899
        %v901 = vpop.f32.mrb[0].mxu0
        %v902 = vadd.f32 %v437, %v901
        %v903 = vpop.f32.mrb[0].mxu0
        %v904 = vadd.f32 %v433, %v903
        %v905 = vpop.f32.mrb[0].mxu0
        %v906 = vadd.f32 %v437, %v905
        %907 = vdwg.mxu0
        %908 = vst [vmem:[%s324] sm:$0xff] %v797
        %909 = vst [vmem:[%s324 + $0x8] sm:$0xff] %v799
        %910 = vst [vmem:[%s324 + $0x10] sm:$0xff] %v870
        %911 = vst [vmem:[%s324 + $0x18] sm:$0xff] %v872
        %912 = vst [vmem:[%s324 + $0x20] sm:$0xff] %v801
        %913 = vst [vmem:[%s324 + $0x28] sm:$0xff] %v803
        %914 = vst [vmem:[%s324 + $0x30] sm:$0xff] %v874
        %915 = vst [vmem:[%s324 + $0x38] sm:$0xff] %v876
        %916 = vst [vmem:[%s324 + $0x40] sm:$0xff] %v807
        %917 = vst [vmem:[%s324 + $0x48] sm:$0xff] %v809
        %918 = vst [vmem:[%s324 + $0x50] sm:$0xff] %v880
        %919 = vst [vmem:[%s324 + $0x58] sm:$0xff] %v882
        %920 = vst [vmem:[%s324 + $0x60] sm:$0xff] %v811
        %921 = vst [vmem:[%s324 + $0x68] sm:$0xff] %v813
        %922 = vst [vmem:[%s324 + $0x70] sm:$0xff] %v884
        %923 = vst [vmem:[%s324 + $0x78] sm:$0xff] %v886
        %924 = vst [vmem:[%s324 + $0x80] sm:$0xff] %v817
        %925 = vst [vmem:[%s324 + $0x88] sm:$0xff] %v819
        %926 = vst [vmem:[%s324 + $0x90] sm:$0xff] %v890
        %927 = vst [vmem:[%s324 + $0x98] sm:$0xff] %v892
        %928 = vst [vmem:[%s324 + $0xa0] sm:$0xff] %v821
        %929 = vst [vmem:[%s324 + $0xa8] sm:$0xff] %v823
        %930 = vst [vmem:[%s324 + $0xb0] sm:$0xff] %v894
        %931 = vst [vmem:[%s324 + $0xb8] sm:$0xff] %v896
        %932 = vst [vmem:[%s324 + $0xc0] sm:$0xff] %v827
        %933 = vst [vmem:[%s324 + $0xc8] sm:$0xff] %v829
        %934 = vst [vmem:[%s324 + $0xd0] sm:$0xff] %v900
        %935 = vst [vmem:[%s324 + $0xd8] sm:$0xff] %v902
        %936 = vst [vmem:[%s324 + $0xe0] sm:$0xff] %v831
        %937 = vst [vmem:[%s324 + $0xe8] sm:$0xff] %v833
        %938 = vst [vmem:[%s324 + $0xf0] sm:$0xff] %v904
        %939 = vst [vmem:[%s324 + $0xf8] sm:$0xff] %v906
        %s940 = sand.u32 %s95, 1
        %s941 = sand.u32 %s95, 1
        %s942 = smul.addr %s941, 256
        %s943 = scalar_lea.vmem [#allocation3], %s942
        // Predicated region
        $region56: #{rnn_modelv2_forward.9} parent=50 // pred_check
          %p944 = pneg %p105
        $region57: #{rnn_modelv2_forward.9} parent=50 // pred_check_branch
          %946 = sbr.rel (%p944) target = $region59
        $region58: #{rnn_modelv2_forward.9} parent=50 // pred_region
          %s947 = smul.u32 4, %s14
          %s948 = smul.addr %s947, 8
          %s949 = scalar_lea.vmem %s3, %s948
          // Predicated region
          $region60: #{rnn_modelv2_forward.9} parent=58 // pred_check
            _
          $region61: #{rnn_modelv2_forward.9} parent=58 // pred_check_branch
            %951 = sbr.rel (0) target = $region63
          $region62: #{rnn_modelv2_forward.9} parent=58 // pred_region
            // Predicated region
            $region64: #{rnn_modelv2_forward.9} parent=62 // pred_check
              _
            $region65: #{rnn_modelv2_forward.9} parent=62 // pred_check_branch
              %953 = sbr.rel (0) target = $region67
            $region66: #{rnn_modelv2_forward.9} parent=62 // pred_region
              loop: start=0, step=1, limit=1
              $region68: #{rnn_modelv2_forward.9} parent=66 // loop_pre_header
                _
              $region69: #{rnn_modelv2_forward.9} parent=66 // loop_header
                %s955 = sphi 0, %s959
                %p956 = scmp.ge.s32.totalorder %s955, 1
                %s960 = sphi %s943, %s943
                %s961 = sphi %s949, %s949
              $region70: #{rnn_modelv2_forward.9} parent=66 // loop_header_branch
                %958 = sbr.rel (%p956) target = $region74
              $region71: #{rnn_modelv2_forward.9} parent=66 // loop_body
                %v962 = vld [vmem:[%s960] sm:$0xff]
                %963 = vst [vmem:[%s961] sm:$0xff] %v962
                %v964 = vld [vmem:[%s960 + $0x8] sm:$0xff]
                %965 = vst [vmem:[%s961 + $0x8] sm:$0xff] %v964
                %v966 = vld [vmem:[%s960 + $0x10] sm:$0xff]
                %967 = vst [vmem:[%s961 + $0x10] sm:$0xff] %v966
                %v968 = vld [vmem:[%s960 + $0x18] sm:$0xff]
                %969 = vst [vmem:[%s961 + $0x18] sm:$0xff] %v968
                %v970 = vld [vmem:[%s960 + $0x20] sm:$0xff]
                %971 = vst [vmem:[%s961 + $0x40] sm:$0xff] %v970
                %v972 = vld [vmem:[%s960 + $0x28] sm:$0xff]
                %973 = vst [vmem:[%s961 + $0x48] sm:$0xff] %v972
                %v974 = vld [vmem:[%s960 + $0x30] sm:$0xff]
                %975 = vst [vmem:[%s961 + $0x50] sm:$0xff] %v974
                %v976 = vld [vmem:[%s960 + $0x38] sm:$0xff]
                %977 = vst [vmem:[%s961 + $0x58] sm:$0xff] %v976
                %v978 = vld [vmem:[%s960 + $0x40] sm:$0xff]
                %979 = vst [vmem:[%s961 + $0x80] sm:$0xff] %v978
                %v980 = vld [vmem:[%s960 + $0x48] sm:$0xff]
                %981 = vst [vmem:[%s961 + $0x88] sm:$0xff] %v980
                %v982 = vld [vmem:[%s960 + $0x50] sm:$0xff]
                %983 = vst [vmem:[%s961 + $0x90] sm:$0xff] %v982
                %v984 = vld [vmem:[%s960 + $0x58] sm:$0xff]
                %985 = vst [vmem:[%s961 + $0x98] sm:$0xff] %v984
                %v986 = vld [vmem:[%s960 + $0x60] sm:$0xff]
                %987 = vst [vmem:[%s961 + $0xc0] sm:$0xff] %v986
                %v988 = vld [vmem:[%s960 + $0x68] sm:$0xff]
                %989 = vst [vmem:[%s961 + $0xc8] sm:$0xff] %v988
                %v990 = vld [vmem:[%s960 + $0x70] sm:$0xff]
                %991 = vst [vmem:[%s961 + $0xd0] sm:$0xff] %v990
                %v992 = vld [vmem:[%s960 + $0x78] sm:$0xff]
                %993 = vst [vmem:[%s961 + $0xd8] sm:$0xff] %v992
                %v994 = vld [vmem:[%s960 + $0x80] sm:$0xff]
                %995 = vst [vmem:[%s961 + $0x100] sm:$0xff] %v994
                %v996 = vld [vmem:[%s960 + $0x88] sm:$0xff]
                %997 = vst [vmem:[%s961 + $0x108] sm:$0xff] %v996
                %v998 = vld [vmem:[%s960 + $0x90] sm:$0xff]
                %999 = vst [vmem:[%s961 + $0x110] sm:$0xff] %v998
                %v1000 = vld [vmem:[%s960 + $0x98] sm:$0xff]
                %1001 = vst [vmem:[%s961 + $0x118] sm:$0xff] %v1000
                %v1002 = vld [vmem:[%s960 + $0xa0] sm:$0xff]
                %1003 = vst [vmem:[%s961 + $0x140] sm:$0xff] %v1002
                %v1004 = vld [vmem:[%s960 + $0xa8] sm:$0xff]
                %1005 = vst [vmem:[%s961 + $0x148] sm:$0xff] %v1004
                %v1006 = vld [vmem:[%s960 + $0xb0] sm:$0xff]
                %1007 = vst [vmem:[%s961 + $0x150] sm:$0xff] %v1006
                %v1008 = vld [vmem:[%s960 + $0xb8] sm:$0xff]
                %1009 = vst [vmem:[%s961 + $0x158] sm:$0xff] %v1008
                %v1010 = vld [vmem:[%s960 + $0xc0] sm:$0xff]
                %1011 = vst [vmem:[%s961 + $0x180] sm:$0xff] %v1010
                %v1012 = vld [vmem:[%s960 + $0xc8] sm:$0xff]
                %1013 = vst [vmem:[%s961 + $0x188] sm:$0xff] %v1012
                %v1014 = vld [vmem:[%s960 + $0xd0] sm:$0xff]
                %1015 = vst [vmem:[%s961 + $0x190] sm:$0xff] %v1014
                %v1016 = vld [vmem:[%s960 + $0xd8] sm:$0xff]
                %1017 = vst [vmem:[%s961 + $0x198] sm:$0xff] %v1016
                %v1018 = vld [vmem:[%s960 + $0xe0] sm:$0xff]
                %1019 = vst [vmem:[%s961 + $0x1c0] sm:$0xff] %v1018
                %v1020 = vld [vmem:[%s960 + $0xe8] sm:$0xff]
                %1021 = vst [vmem:[%s961 + $0x1c8] sm:$0xff] %v1020
                %v1022 = vld [vmem:[%s960 + $0xf0] sm:$0xff]
                %1023 = vst [vmem:[%s961 + $0x1d0] sm:$0xff] %v1022
                %v1024 = vld [vmem:[%s960 + $0xf8] sm:$0xff]
                %1025 = vst [vmem:[%s961 + $0x1d8] sm:$0xff] %v1024
              $region72: #{rnn_modelv2_forward.9} parent=66 // loop_footer
                %s959 = sadd.s32 1, %s955
              $region73: #{rnn_modelv2_forward.9} parent=66 // loop_footer_branch
                %954 = sbr.rel target = $region69
              $region74: #{rnn_modelv2_forward.9} parent=66 // loop_exit
                _
            $region67: #{rnn_modelv2_forward.9} parent=62 // pred_fallthru
              _
            // Predicated region
            $region75: #{rnn_modelv2_forward.9} parent=62 // pred_check
              _
            $region76: #{rnn_modelv2_forward.9} parent=62 // pred_check_branch
              %1027 = sbr.rel target = $region78
            $region77: #{rnn_modelv2_forward.9} parent=62 // pred_region
              _
            $region78: #{rnn_modelv2_forward.9} parent=62 // pred_fallthru
              _
          $region63: #{rnn_modelv2_forward.9} parent=58 // pred_fallthru
            _
          %1028 = vnop
        $region59: #{rnn_modelv2_forward.9} parent=50 // pred_fallthru
          _
      $region51: #{rnn_modelv2_forward.9} parent=5 // pred_fallthru
        _
      %p1029 = scmp.le.s32.totalorder 2, %s9
      // Predicated region
      $region79: #{rnn_modelv2_forward.9} parent=5 // pred_check
        %p1030 = pneg %p1029
      $region80: #{rnn_modelv2_forward.9} parent=5 // pred_check_branch
        %1032 = sbr.rel (%p1030) target = $region82
      $region81: #{rnn_modelv2_forward.9} parent=5 // pred_region
        %s1033 = ssub.s32 %s9, 2
        // Predicated region
        $region83: #{rnn_modelv2_forward.9} parent=81 // pred_check
          %p1034 = pneg %p111
        $region84: #{rnn_modelv2_forward.9} parent=81 // pred_check_branch
          %1036 = sbr.rel (%p1034) target = $region86
        $region85: #{rnn_modelv2_forward.9} parent=81 // pred_region
          %s1037 = sand.u32 %s96, 1
          %s1038 = sand.u32 %s96, 1
          %s1039 = smul.addr %s1038, 256
          %s1040 = scalar_lea.vmem [#allocation3], %s1039
        $region86: #{rnn_modelv2_forward.9} parent=81 // pred_fallthru
          _
      $region82: #{rnn_modelv2_forward.9} parent=5 // pred_fallthru
        _
    $region6: #{rnn_modelv2_forward.9} parent=1 // loop_footer
      %s13 = sadd.s32 1, %s9
    $region7: #{rnn_modelv2_forward.9} parent=1 // loop_footer_branch
      %8 = sbr.rel target = $region3
    $region8: #{rnn_modelv2_forward.9} parent=1 // loop_exit
      _

// kernel: rnn_modelv2_forward.10
$region0: #{rnn_modelv2_forward.10}
  #allocation0 [shape = 'u32[]', space=smem, size = 0x4, offset = 0x4, fixed_abs, tag = 'smem constant byte address 0x4 - core index']
  #allocation1 [shape = 'u32[144,128]{1,0:T(1,128)}', space=vmem, size = 0x12000, scoped, tag = 'internal scratch']
  #allocation2 [shape = 'f32[8,256]{1,0:T(8,128)}', space=vmem, size = 0x2000, scoped, tag = 'scratch operand']
  #allocation3 [shape = 'f32[8,256]{1,0:T(8,128)}', space=vmem, size = 0x2000, scoped, tag = 'scratch operand']
  %s0 = inlined_call_operand.vmem [shape: f32[8,8,1024], index: 0, kind: input, shape index: {}]
  %s1 = inlined_call_operand.vmem [shape: bf16[256,1024], index: 1, kind: input, shape index: {}]
  %s2 = inlined_call_operand.vmem [shape: f32[8,8,256], index: 2, kind: output, shape index: {}]
  %s3 = sld [smem:[#allocation0]]
  $region45: #{rnn_modelv2_forward.10} parent=0
    _
  %s5 = ssub.s32 1, %s3
  %s6 = scalar_select 0, %s5, %s3
  loop: start=0, step=1, limit=10
  $region2: #{rnn_modelv2_forward.10} parent=0 // loop_pre_header
    _
  $region3: #{rnn_modelv2_forward.10} parent=0 // loop_header
    %s8 = sphi 0, %s12
    %p9 = scmp.ge.s32.totalorder %s8, 10
    %s18 = sphi 0, %s20
    %s21 = sphi 0, %s18
    %s22 = sphi 0, %s21
    %s38 = sphi 0, %s22
    %s42 = sphi 0, %s42
    %s44 = sphi 0, %s42
    %s45 = sphi 0, %s44
    %s59 = sphi 0, %s45
    %s65 = sphi 0, %s67
    %s68 = sphi 0, %s65
    %s69 = sphi 0, %s68
    %s85 = sphi 0, %s69
  $region4: #{rnn_modelv2_forward.10} parent=0 // loop_header_branch
    %11 = sbr.rel (%p9) target = $region8
  $region5: #{rnn_modelv2_forward.10} parent=0 // loop_body
    %s13 = ssub.s32 %s8, 1
    %s14 = ssub.s32 %s8, 2
    %s15 = sadd.s32 %s8, 1
    %s16 = ssub.s32 %s8, %s15
    %p17 = scmp.eq.s32.totalorder %s16, 0
    %s19 = sadd.s32 %s18, 1
    %s20 = scalar_select %p17, %s18, %s19
    %p23 = pneg %p17
    %p24 = scmp.eq.s32.totalorder %s8, 7
    %p25 = por %p23, %p24
    %p26 = scmp.ne.s32.totalorder %s18, %s21
    %p27 = scmp.eq.s32.totalorder %s8, 0
    %p28 = por %p26, %p27
    %p29 = scmp.ne.s32.totalorder %s18, %s21
    %p30 = scmp.eq.s32.totalorder %s13, 7
    %p31 = por %p29, %p30
    %p32 = scmp.ne.s32.totalorder %s21, %s22
    %p33 = scmp.eq.s32.totalorder %s13, 0
    %p34 = por %p32, %p33
    %p35 = scmp.ne.s32.totalorder %s21, %s22
    %p36 = scmp.eq.s32.totalorder %s14, 7
    %p37 = por %p35, %p36
    %p39 = scmp.ne.s32.totalorder %s22, %s38
    %p40 = scmp.eq.s32.totalorder %s14, 0
    %p41 = por %p39, %p40
    %s43 = sadd.s32 %s42, 1
    %p46 = scmp.eq.s32.totalorder %s8, 7
    %p47 = scmp.ne.s32.totalorder %s42, %s44
    %p48 = scmp.eq.s32.totalorder %s8, 0
    %p49 = por %p47, %p48
    %p50 = scmp.ne.s32.totalorder %s42, %s44
    %p51 = scmp.eq.s32.totalorder %s13, 7
    %p52 = por %p50, %p51
    %p53 = scmp.ne.s32.totalorder %s44, %s45
    %p54 = scmp.eq.s32.totalorder %s13, 0
    %p55 = por %p53, %p54
    %p56 = scmp.ne.s32.totalorder %s44, %s45
    %p57 = scmp.eq.s32.totalorder %s14, 7
    %p58 = por %p56, %p57
    %p60 = scmp.ne.s32.totalorder %s45, %s59
    %p61 = scmp.eq.s32.totalorder %s14, 0
    %p62 = por %p60, %p61
    %s63 = ssub.s32 %s8, %s15
    %p64 = scmp.eq.s32.totalorder %s63, 0
    %s66 = sadd.s32 %s65, 1
    %s67 = scalar_select %p64, %s65, %s66
    %p70 = pneg %p64
    %p71 = scmp.eq.s32.totalorder %s8, 7
    %p72 = por %p70, %p71
    %p73 = scmp.ne.s32.totalorder %s65, %s68
    %p74 = scmp.eq.s32.totalorder %s8, 0
    %p75 = por %p73, %p74
    %p76 = scmp.ne.s32.totalorder %s65, %s68
    %p77 = scmp.eq.s32.totalorder %s13, 7
    %p78 = por %p76, %p77
    %p79 = scmp.ne.s32.totalorder %s68, %s69
    %p80 = scmp.eq.s32.totalorder %s13, 0
    %p81 = por %p79, %p80
    %p82 = scmp.ne.s32.totalorder %s68, %s69
    %p83 = scmp.eq.s32.totalorder %s14, 7
    %p84 = por %p82, %p83
    %p86 = scmp.ne.s32.totalorder %s69, %s85
    %p87 = scmp.eq.s32.totalorder %s14, 0
    %p88 = por %p86, %p87
    %p89 = scmp.le.s32.totalorder 1, %s8
    %p90 = scmp.lt.s32.totalorder %s8, 9
    %p91 = pnand %p89, %p90
    %p92 = pneg %p91
    // Predicated region
    $region9: #{rnn_modelv2_forward.10} parent=5 // pred_check
      _
    $region10: #{rnn_modelv2_forward.10} parent=5 // pred_check_branch
      %94 = sbr.rel (%p91) target = $region12
    $region11: #{rnn_modelv2_forward.10} parent=5 // pred_region
      %s95 = ssub.s32 %s8, 1
      // Predicated region
      $region13: #{rnn_modelv2_forward.10} parent=11 // pred_check
        %p96 = pneg %p55
      $region14: #{rnn_modelv2_forward.10} parent=11 // pred_check_branch
        %98 = sbr.rel (%p96) target = $region16
      $region15: #{rnn_modelv2_forward.10} parent=11 // pred_region
        _
      $region16: #{rnn_modelv2_forward.10} parent=11 // pred_fallthru
        _
    $region12: #{rnn_modelv2_forward.10} parent=5 // pred_fallthru
      _
    %p99 = scmp.lt.s32.totalorder %s8, 8
    // Predicated region
    $region17: #{rnn_modelv2_forward.10} parent=5 // pred_check
      %p100 = pneg %p99
    $region18: #{rnn_modelv2_forward.10} parent=5 // pred_check_branch
      %102 = sbr.rel (%p100) target = $region20
    $region19: #{rnn_modelv2_forward.10} parent=5 // pred_region
      // Predicated region
      $region21: #{rnn_modelv2_forward.10} parent=19 // pred_check
        %p103 = pneg %p28
      $region22: #{rnn_modelv2_forward.10} parent=19 // pred_check_branch
        %105 = sbr.rel (%p103) target = $region24
      $region23: #{rnn_modelv2_forward.10} parent=19 // pred_region
        %p106 = scmp.lt.s32.totalorder %s8, 7
        %s107 = scalar_select %p106, %s8, 7
        %s108 = smul.addr %s107, 8
        %s109 = smul.addr %s108, 8
        %s110 = scalar_lea.vmem %s0, %s109
      $region24: #{rnn_modelv2_forward.10} parent=19 // pred_fallthru
        _
    $region20: #{rnn_modelv2_forward.10} parent=5 // pred_fallthru
      _
    %p111 = scmp.le.s32.totalorder 1, %s8
    %p112 = scmp.lt.s32.totalorder %s8, 9
    %p113 = pnand %p111, %p112
    %p114 = pneg %p113
    // Predicated region
    $region25: #{rnn_modelv2_forward.10} parent=5 // pred_check
      _
    $region26: #{rnn_modelv2_forward.10} parent=5 // pred_check_branch
      %116 = sbr.rel (%p113) target = $region28
    $region27: #{rnn_modelv2_forward.10} parent=5 // pred_region
      %s117 = ssub.s32 %s8, 1
      %p118 = scmp.lt.s32.totalorder %s13, 7
      %s119 = scalar_select %p118, %s13, 7
      %s120 = smul.addr %s119, 8
      %s121 = smul.addr %s120, 8
      %s122 = scalar_lea.vmem %s0, %s121
      %p123 = pneg %p34
      %p124 = pneg %p31
      %p125 = pneg %p55
      %p126 = pneg %p52
      %p127 = pneg %p81
      %p128 = pneg %p78
      %p129 = scmp.lt.s32.totalorder %s13, 7
      %s130 = scalar_select %p129, %s13, 7
      %s131 = smul.addr %s130, 2
      %s132 = smul.addr %s131, 8
      %s133 = scalar_lea.vmem %s2, %s132
      %p134 = scmp.lt.s32.totalorder %s13, 7
      %s135 = scalar_select %p134, %s13, 7
      %s136 = smul.addr %s135, 8
      %s137 = smul.addr %s136, 8
      %s138 = scalar_lea.vmem %s0, %s137
      %p139 = scmp.lt.s32.totalorder %s13, 7
      %s140 = scalar_select %p139, %s13, 7
      %s141 = smul.addr %s140, 2
      %s142 = smul.addr %s141, 8
      %s143 = scalar_lea.vmem %s2, %s142
      %p144 = scmp.eq.s32.totalorder %s13, 0
      // Predicated region
      $region29: #{rnn_modelv2_forward.10} parent=27 // pred_check
        %p145 = pneg %p144
      $region30: #{rnn_modelv2_forward.10} parent=27 // pred_check_branch
        %147 = sbr.rel (%p145) target = $region32
      $region31: #{rnn_modelv2_forward.10} parent=27 // pred_region
        %148 = vst [vmem:[#allocation2] sm:$0xff] 0.0
        %149 = vst [vmem:[#allocation2 + $0x8] sm:$0xff] 0.0
        %150 = vst [vmem:[#allocation3] sm:$0xff] 0.0
        %151 = vst [vmem:[#allocation3 + $0x8] sm:$0xff] 0.0
      $region32: #{rnn_modelv2_forward.10} parent=27 // pred_fallthru
        _
      %v152 = vld [vmem:[#allocation2] sm:$0xff]
      %v153 = vld [vmem:[#allocation2 + $0x8] sm:$0xff]
      %v154 = vld [vmem:[%s138] sm:$0xff]
      %v155 = vld [vmem:[%s138 + $0x8] sm:$0xff]
      %v156 = vld [vmem:[%s138 + $0x10] sm:$0xff]
      %v157 = vld [vmem:[%s138 + $0x18] sm:$0xff]
      %v158 = vld [vmem:[%s138 + $0x20] sm:$0xff]
      %v159 = vld [vmem:[%s138 + $0x28] sm:$0xff]
      %v160 = vld [vmem:[%s138 + $0x30] sm:$0xff]
      %v161 = vld [vmem:[%s138 + $0x38] sm:$0xff]
      %v162 = vpack.c.bf16 %v152, %v152
      %v163 = vpack.c.bf16 %v153, %v153
      %v164 = vld [vmem:[%s1] sm:$0xff]
      %v165 = vld [vmem:[%s1 + $0x8] sm:$0xff]
      %v166 = vld [vmem:[%s1 + $0x10] sm:$0xff]
      %v167 = vld [vmem:[%s1 + $0x18] sm:$0xff]
      %v168 = vld [vmem:[%s1 + $0x20] sm:$0xff]
      %v169 = vld [vmem:[%s1 + $0x28] sm:$0xff]
      %v170 = vld [vmem:[%s1 + $0x30] sm:$0xff]
      %v171 = vld [vmem:[%s1 + $0x38] sm:$0xff]
      %v172 = vld [vmem:[%s1 + $0x40] sm:$0xff]
      %v173 = vld [vmem:[%s1 + $0x48] sm:$0xff]
      %v174 = vld [vmem:[%s1 + $0x50] sm:$0xff]
      %v175 = vld [vmem:[%s1 + $0x58] sm:$0xff]
      %v176 = vld [vmem:[%s1 + $0x60] sm:$0xff]
      %v177 = vld [vmem:[%s1 + $0x68] sm:$0xff]
      %v178 = vld [vmem:[%s1 + $0x70] sm:$0xff]
      %v179 = vld [vmem:[%s1 + $0x78] sm:$0xff]
      %v180 = vld [vmem:[%s1 + $0x80] sm:$0xff]
      %v181 = vld [vmem:[%s1 + $0x88] sm:$0xff]
      %v182 = vld [vmem:[%s1 + $0x90] sm:$0xff]
      %v183 = vld [vmem:[%s1 + $0x98] sm:$0xff]
      %v184 = vld [vmem:[%s1 + $0xa0] sm:$0xff]
      %v185 = vld [vmem:[%s1 + $0xa8] sm:$0xff]
      %v186 = vld [vmem:[%s1 + $0xb0] sm:$0xff]
      %v187 = vld [vmem:[%s1 + $0xb8] sm:$0xff]
      %v188 = vld [vmem:[%s1 + $0xc0] sm:$0xff]
      %v189 = vld [vmem:[%s1 + $0xc8] sm:$0xff]
      %v190 = vld [vmem:[%s1 + $0xd0] sm:$0xff]
      %v191 = vld [vmem:[%s1 + $0xd8] sm:$0xff]
      %v192 = vld [vmem:[%s1 + $0xe0] sm:$0xff]
      %v193 = vld [vmem:[%s1 + $0xe8] sm:$0xff]
      %v194 = vld [vmem:[%s1 + $0xf0] sm:$0xff]
      %v195 = vld [vmem:[%s1 + $0xf8] sm:$0xff]
      %v196 = vld [vmem:[%s1 + $0x100] sm:$0xff]
      %v197 = vld [vmem:[%s1 + $0x108] sm:$0xff]
      %v198 = vld [vmem:[%s1 + $0x110] sm:$0xff]
      %v199 = vld [vmem:[%s1 + $0x118] sm:$0xff]
      %v200 = vld [vmem:[%s1 + $0x120] sm:$0xff]
      %v201 = vld [vmem:[%s1 + $0x128] sm:$0xff]
      %v202 = vld [vmem:[%s1 + $0x130] sm:$0xff]
      %v203 = vld [vmem:[%s1 + $0x138] sm:$0xff]
      %v204 = vld [vmem:[%s1 + $0x140] sm:$0xff]
      %v205 = vld [vmem:[%s1 + $0x148] sm:$0xff]
      %v206 = vld [vmem:[%s1 + $0x150] sm:$0xff]
      %v207 = vld [vmem:[%s1 + $0x158] sm:$0xff]
      %v208 = vld [vmem:[%s1 + $0x160] sm:$0xff]
      %v209 = vld [vmem:[%s1 + $0x168] sm:$0xff]
      %v210 = vld [vmem:[%s1 + $0x170] sm:$0xff]
      %v211 = vld [vmem:[%s1 + $0x178] sm:$0xff]
      %v212 = vld [vmem:[%s1 + $0x180] sm:$0xff]
      %v213 = vld [vmem:[%s1 + $0x188] sm:$0xff]
      %v214 = vld [vmem:[%s1 + $0x190] sm:$0xff]
      %v215 = vld [vmem:[%s1 + $0x198] sm:$0xff]
      %v216 = vld [vmem:[%s1 + $0x1a0] sm:$0xff]
      %v217 = vld [vmem:[%s1 + $0x1a8] sm:$0xff]
      %v218 = vld [vmem:[%s1 + $0x1b0] sm:$0xff]
      %v219 = vld [vmem:[%s1 + $0x1b8] sm:$0xff]
      %v220 = vld [vmem:[%s1 + $0x1c0] sm:$0xff]
      %v221 = vld [vmem:[%s1 + $0x1c8] sm:$0xff]
      %v222 = vld [vmem:[%s1 + $0x1d0] sm:$0xff]
      %v223 = vld [vmem:[%s1 + $0x1d8] sm:$0xff]
      %v224 = vld [vmem:[%s1 + $0x1e0] sm:$0xff]
      %v225 = vld [vmem:[%s1 + $0x1e8] sm:$0xff]
      %v226 = vld [vmem:[%s1 + $0x1f0] sm:$0xff]
      %v227 = vld [vmem:[%s1 + $0x1f8] sm:$0xff]
      %v228 = vld [vmem:[%s1 + $0x200] sm:$0xff]
      %v229 = vld [vmem:[%s1 + $0x208] sm:$0xff]
      %v230 = vld [vmem:[%s1 + $0x210] sm:$0xff]
      %v231 = vld [vmem:[%s1 + $0x218] sm:$0xff]
      %v232 = vld [vmem:[%s1 + $0x220] sm:$0xff]
      %v233 = vld [vmem:[%s1 + $0x228] sm:$0xff]
      %v234 = vld [vmem:[%s1 + $0x230] sm:$0xff]
      %v235 = vld [vmem:[%s1 + $0x238] sm:$0xff]
      %v236 = vld [vmem:[%s1 + $0x240] sm:$0xff]
      %v237 = vld [vmem:[%s1 + $0x248] sm:$0xff]
      %v238 = vld [vmem:[%s1 + $0x250] sm:$0xff]
      %v239 = vld [vmem:[%s1 + $0x258] sm:$0xff]
      %v240 = vld [vmem:[%s1 + $0x260] sm:$0xff]
      %v241 = vld [vmem:[%s1 + $0x268] sm:$0xff]
      %v242 = vld [vmem:[%s1 + $0x270] sm:$0xff]
      %v243 = vld [vmem:[%s1 + $0x278] sm:$0xff]
      %v244 = vld [vmem:[%s1 + $0x280] sm:$0xff]
      %v245 = vld [vmem:[%s1 + $0x288] sm:$0xff]
      %v246 = vld [vmem:[%s1 + $0x290] sm:$0xff]
      %v247 = vld [vmem:[%s1 + $0x298] sm:$0xff]
      %v248 = vld [vmem:[%s1 + $0x2a0] sm:$0xff]
      %v249 = vld [vmem:[%s1 + $0x2a8] sm:$0xff]
      %v250 = vld [vmem:[%s1 + $0x2b0] sm:$0xff]
      %v251 = vld [vmem:[%s1 + $0x2b8] sm:$0xff]
      %v252 = vld [vmem:[%s1 + $0x2c0] sm:$0xff]
      %v253 = vld [vmem:[%s1 + $0x2c8] sm:$0xff]
      %v254 = vld [vmem:[%s1 + $0x2d0] sm:$0xff]
      %v255 = vld [vmem:[%s1 + $0x2d8] sm:$0xff]
      %v256 = vld [vmem:[%s1 + $0x2e0] sm:$0xff]
      %v257 = vld [vmem:[%s1 + $0x2e8] sm:$0xff]
      %v258 = vld [vmem:[%s1 + $0x2f0] sm:$0xff]
      %v259 = vld [vmem:[%s1 + $0x2f8] sm:$0xff]
      %v260 = vld [vmem:[%s1 + $0x300] sm:$0xff]
      %v261 = vld [vmem:[%s1 + $0x308] sm:$0xff]
      %v262 = vld [vmem:[%s1 + $0x310] sm:$0xff]
      %v263 = vld [vmem:[%s1 + $0x318] sm:$0xff]
      %v264 = vld [vmem:[%s1 + $0x320] sm:$0xff]
      %v265 = vld [vmem:[%s1 + $0x328] sm:$0xff]
      %v266 = vld [vmem:[%s1 + $0x330] sm:$0xff]
      %v267 = vld [vmem:[%s1 + $0x338] sm:$0xff]
      %v268 = vld [vmem:[%s1 + $0x340] sm:$0xff]
      %v269 = vld [vmem:[%s1 + $0x348] sm:$0xff]
      %v270 = vld [vmem:[%s1 + $0x350] sm:$0xff]
      %v271 = vld [vmem:[%s1 + $0x358] sm:$0xff]
      %v272 = vld [vmem:[%s1 + $0x360] sm:$0xff]
      %v273 = vld [vmem:[%s1 + $0x368] sm:$0xff]
      %v274 = vld [vmem:[%s1 + $0x370] sm:$0xff]
      %v275 = vld [vmem:[%s1 + $0x378] sm:$0xff]
      %v276 = vld [vmem:[%s1 + $0x380] sm:$0xff]
      %v277 = vld [vmem:[%s1 + $0x388] sm:$0xff]
      %v278 = vld [vmem:[%s1 + $0x390] sm:$0xff]
      %v279 = vld [vmem:[%s1 + $0x398] sm:$0xff]
      %v280 = vld [vmem:[%s1 + $0x3a0] sm:$0xff]
      %v281 = vld [vmem:[%s1 + $0x3a8] sm:$0xff]
      %v282 = vld [vmem:[%s1 + $0x3b0] sm:$0xff]
      %v283 = vld [vmem:[%s1 + $0x3b8] sm:$0xff]
      %v284 = vld [vmem:[%s1 + $0x3c0] sm:$0xff]
      %v285 = vld [vmem:[%s1 + $0x3c8] sm:$0xff]
      %v286 = vld [vmem:[%s1 + $0x3d0] sm:$0xff]
      %v287 = vld [vmem:[%s1 + $0x3d8] sm:$0xff]
      %v288 = vld [vmem:[%s1 + $0x3e0] sm:$0xff]
      %v289 = vld [vmem:[%s1 + $0x3e8] sm:$0xff]
      %v290 = vld [vmem:[%s1 + $0x3f0] sm:$0xff]
      %v291 = vld [vmem:[%s1 + $0x3f8] sm:$0xff]
      %v420 = vunpack.c.l.b16 %v164
      %v421 = vunpack.c.h.b16 %v164
      %v422 = vunpack.c.l.b16 %v165
      %v423 = vunpack.c.h.b16 %v165
      %v424 = vunpack.c.l.b16 %v166
      %v425 = vunpack.c.h.b16 %v166
      %v426 = vunpack.c.l.b16 %v167
      %v427 = vunpack.c.h.b16 %v167
      %v428 = vunpack.c.l.b16 %v168
      %v429 = vunpack.c.h.b16 %v168
      %v430 = vunpack.c.l.b16 %v169
      %v431 = vunpack.c.h.b16 %v169
      %v432 = vunpack.c.l.b16 %v170
      %v433 = vunpack.c.h.b16 %v170
      %v434 = vunpack.c.l.b16 %v171
      %v435 = vunpack.c.h.b16 %v171
      %v436 = vunpack.c.l.b16 %v172
      %v437 = vunpack.c.h.b16 %v172
      %v438 = vunpack.c.l.b16 %v173
      %v439 = vunpack.c.h.b16 %v173
      %v440 = vunpack.c.l.b16 %v174
      %v441 = vunpack.c.h.b16 %v174
      %v442 = vunpack.c.l.b16 %v175
      %v443 = vunpack.c.h.b16 %v175
      %v444 = vunpack.c.l.b16 %v176
      %v445 = vunpack.c.h.b16 %v176
      %v446 = vunpack.c.l.b16 %v177
      %v447 = vunpack.c.h.b16 %v177
      %v448 = vunpack.c.l.b16 %v178
      %v449 = vunpack.c.h.b16 %v178
      %v450 = vunpack.c.l.b16 %v179
      %v451 = vunpack.c.h.b16 %v179
      %v452 = vunpack.c.l.b16 %v180
      %v453 = vunpack.c.h.b16 %v180
      %v454 = vunpack.c.l.b16 %v181
      %v455 = vunpack.c.h.b16 %v181
      %v456 = vunpack.c.l.b16 %v182
      %v457 = vunpack.c.h.b16 %v182
      %v458 = vunpack.c.l.b16 %v183
      %v459 = vunpack.c.h.b16 %v183
      %v460 = vunpack.c.l.b16 %v184
      %v461 = vunpack.c.h.b16 %v184
      %v462 = vunpack.c.l.b16 %v185
      %v463 = vunpack.c.h.b16 %v185
      %v464 = vunpack.c.l.b16 %v186
      %v465 = vunpack.c.h.b16 %v186
      %v466 = vunpack.c.l.b16 %v187
      %v467 = vunpack.c.h.b16 %v187
      %v468 = vunpack.c.l.b16 %v188
      %v469 = vunpack.c.h.b16 %v188
      %v470 = vunpack.c.l.b16 %v189
      %v471 = vunpack.c.h.b16 %v189
      %v472 = vunpack.c.l.b16 %v190
      %v473 = vunpack.c.h.b16 %v190
      %v474 = vunpack.c.l.b16 %v191
      %v475 = vunpack.c.h.b16 %v191
      %v476 = vunpack.c.l.b16 %v192
      %v477 = vunpack.c.h.b16 %v192
      %v478 = vunpack.c.l.b16 %v193
      %v479 = vunpack.c.h.b16 %v193
      %v480 = vunpack.c.l.b16 %v194
      %v481 = vunpack.c.h.b16 %v194
      %v482 = vunpack.c.l.b16 %v195
      %v483 = vunpack.c.h.b16 %v195
      %v484 = vunpack.c.l.b16 %v196
      %v485 = vunpack.c.h.b16 %v196
      %v486 = vunpack.c.l.b16 %v197
      %v487 = vunpack.c.h.b16 %v197
      %v488 = vunpack.c.l.b16 %v198
      %v489 = vunpack.c.h.b16 %v198
      %v490 = vunpack.c.l.b16 %v199
      %v491 = vunpack.c.h.b16 %v199
      %v492 = vunpack.c.l.b16 %v200
      %v493 = vunpack.c.h.b16 %v200
      %v494 = vunpack.c.l.b16 %v201
      %v495 = vunpack.c.h.b16 %v201
      %v496 = vunpack.c.l.b16 %v202
      %v497 = vunpack.c.h.b16 %v202
      %v498 = vunpack.c.l.b16 %v203
      %v499 = vunpack.c.h.b16 %v203
      %v500 = vunpack.c.l.b16 %v204
      %v501 = vunpack.c.h.b16 %v204
      %v502 = vunpack.c.l.b16 %v205
      %v503 = vunpack.c.h.b16 %v205
      %v504 = vunpack.c.l.b16 %v206
      %v505 = vunpack.c.h.b16 %v206
      %v506 = vunpack.c.l.b16 %v207
      %v507 = vunpack.c.h.b16 %v207
      %v508 = vunpack.c.l.b16 %v208
      %v509 = vunpack.c.h.b16 %v208
      %v510 = vunpack.c.l.b16 %v209
      %v511 = vunpack.c.h.b16 %v209
      %v512 = vunpack.c.l.b16 %v210
      %v513 = vunpack.c.h.b16 %v210
      %v514 = vunpack.c.l.b16 %v211
      %v515 = vunpack.c.h.b16 %v211
      %v516 = vunpack.c.l.b16 %v212
      %v517 = vunpack.c.h.b16 %v212
      %v518 = vunpack.c.l.b16 %v213
      %v519 = vunpack.c.h.b16 %v213
      %v520 = vunpack.c.l.b16 %v214
      %v521 = vunpack.c.h.b16 %v214
      %v522 = vunpack.c.l.b16 %v215
      %v523 = vunpack.c.h.b16 %v215
      %v524 = vunpack.c.l.b16 %v216
      %v525 = vunpack.c.h.b16 %v216
      %v526 = vunpack.c.l.b16 %v217
      %v527 = vunpack.c.h.b16 %v217
      %v528 = vunpack.c.l.b16 %v218
      %v529 = vunpack.c.h.b16 %v218
      %v530 = vunpack.c.l.b16 %v219
      %v531 = vunpack.c.h.b16 %v219
      %v532 = vunpack.c.l.b16 %v220
      %v533 = vunpack.c.h.b16 %v220
      %v534 = vunpack.c.l.b16 %v221
      %v535 = vunpack.c.h.b16 %v221
      %v536 = vunpack.c.l.b16 %v222
      %v537 = vunpack.c.h.b16 %v222
      %v538 = vunpack.c.l.b16 %v223
      %v539 = vunpack.c.h.b16 %v223
      %v540 = vunpack.c.l.b16 %v224
      %v541 = vunpack.c.h.b16 %v224
      %v542 = vunpack.c.l.b16 %v225
      %v543 = vunpack.c.h.b16 %v225
      %v544 = vunpack.c.l.b16 %v226
      %v545 = vunpack.c.h.b16 %v226
      %v546 = vunpack.c.l.b16 %v227
      %v547 = vunpack.c.h.b16 %v227
      %v548 = vunpack.c.l.b16 %v228
      %v549 = vunpack.c.h.b16 %v228
      %v550 = vunpack.c.l.b16 %v229
      %v551 = vunpack.c.h.b16 %v229
      %v552 = vunpack.c.l.b16 %v230
      %v553 = vunpack.c.h.b16 %v230
      %v554 = vunpack.c.l.b16 %v231
      %v555 = vunpack.c.h.b16 %v231
      %v556 = vunpack.c.l.b16 %v232
      %v557 = vunpack.c.h.b16 %v232
      %v558 = vunpack.c.l.b16 %v233
      %v559 = vunpack.c.h.b16 %v233
      %v560 = vunpack.c.l.b16 %v234
      %v561 = vunpack.c.h.b16 %v234
      %v562 = vunpack.c.l.b16 %v235
      %v563 = vunpack.c.h.b16 %v235
      %v564 = vunpack.c.l.b16 %v236
      %v565 = vunpack.c.h.b16 %v236
      %v566 = vunpack.c.l.b16 %v237
      %v567 = vunpack.c.h.b16 %v237
      %v568 = vunpack.c.l.b16 %v238
      %v569 = vunpack.c.h.b16 %v238
      %v570 = vunpack.c.l.b16 %v239
      %v571 = vunpack.c.h.b16 %v239
      %v572 = vunpack.c.l.b16 %v240
      %v573 = vunpack.c.h.b16 %v240
      %v574 = vunpack.c.l.b16 %v241
      %v575 = vunpack.c.h.b16 %v241
      %v576 = vunpack.c.l.b16 %v242
      %v577 = vunpack.c.h.b16 %v242
      %v578 = vunpack.c.l.b16 %v243
      %v579 = vunpack.c.h.b16 %v243
      %v580 = vunpack.c.l.b16 %v244
      %v581 = vunpack.c.h.b16 %v244
      %v582 = vunpack.c.l.b16 %v245
      %v583 = vunpack.c.h.b16 %v245
      %v584 = vunpack.c.l.b16 %v246
      %v585 = vunpack.c.h.b16 %v246
      %v586 = vunpack.c.l.b16 %v247
      %v587 = vunpack.c.h.b16 %v247
      %v588 = vunpack.c.l.b16 %v248
      %v589 = vunpack.c.h.b16 %v248
      %v590 = vunpack.c.l.b16 %v249
      %v591 = vunpack.c.h.b16 %v249
      %v592 = vunpack.c.l.b16 %v250
      %v593 = vunpack.c.h.b16 %v250
      %v594 = vunpack.c.l.b16 %v251
      %v595 = vunpack.c.h.b16 %v251
      %v596 = vunpack.c.l.b16 %v252
      %v597 = vunpack.c.h.b16 %v252
      %v598 = vunpack.c.l.b16 %v253
      %v599 = vunpack.c.h.b16 %v253
      %v600 = vunpack.c.l.b16 %v254
      %v601 = vunpack.c.h.b16 %v254
      %v602 = vunpack.c.l.b16 %v255
      %v603 = vunpack.c.h.b16 %v255
      %v604 = vunpack.c.l.b16 %v256
      %v605 = vunpack.c.h.b16 %v256
      %v606 = vunpack.c.l.b16 %v257
      %v607 = vunpack.c.h.b16 %v257
      %v608 = vunpack.c.l.b16 %v258
      %v609 = vunpack.c.h.b16 %v258
      %v610 = vunpack.c.l.b16 %v259
      %v611 = vunpack.c.h.b16 %v259
      %v612 = vunpack.c.l.b16 %v260
      %v613 = vunpack.c.h.b16 %v260
      %v614 = vunpack.c.l.b16 %v261
      %v615 = vunpack.c.h.b16 %v261
      %v616 = vunpack.c.l.b16 %v262
      %v617 = vunpack.c.h.b16 %v262
      %v618 = vunpack.c.l.b16 %v263
      %v619 = vunpack.c.h.b16 %v263
      %v620 = vunpack.c.l.b16 %v264
      %v621 = vunpack.c.h.b16 %v264
      %v622 = vunpack.c.l.b16 %v265
      %v623 = vunpack.c.h.b16 %v265
      %v624 = vunpack.c.l.b16 %v266
      %v625 = vunpack.c.h.b16 %v266
      %v626 = vunpack.c.l.b16 %v267
      %v627 = vunpack.c.h.b16 %v267
      %v628 = vunpack.c.l.b16 %v268
      %v629 = vunpack.c.h.b16 %v268
      %v630 = vunpack.c.l.b16 %v269
      %v631 = vunpack.c.h.b16 %v269
      %v632 = vunpack.c.l.b16 %v270
      %v633 = vunpack.c.h.b16 %v270
      %v634 = vunpack.c.l.b16 %v271
      %v635 = vunpack.c.h.b16 %v271
      %v636 = vunpack.c.l.b16 %v272
      %v637 = vunpack.c.h.b16 %v272
      %v638 = vunpack.c.l.b16 %v273
      %v639 = vunpack.c.h.b16 %v273
      %v640 = vunpack.c.l.b16 %v274
      %v641 = vunpack.c.h.b16 %v274
      %v642 = vunpack.c.l.b16 %v275
      %v643 = vunpack.c.h.b16 %v275
      %v644 = vunpack.c.l.b16 %v276
      %v645 = vunpack.c.h.b16 %v276
      %v646 = vunpack.c.l.b16 %v277
      %v647 = vunpack.c.h.b16 %v277
      %v648 = vunpack.c.l.b16 %v278
      %v649 = vunpack.c.h.b16 %v278
      %v650 = vunpack.c.l.b16 %v279
      %v651 = vunpack.c.h.b16 %v279
      %v652 = vunpack.c.l.b16 %v280
      %v653 = vunpack.c.h.b16 %v280
      %v654 = vunpack.c.l.b16 %v281
      %v655 = vunpack.c.h.b16 %v281
      %v656 = vunpack.c.l.b16 %v282
      %v657 = vunpack.c.h.b16 %v282
      %v658 = vunpack.c.l.b16 %v283
      %v659 = vunpack.c.h.b16 %v283
      %v660 = vunpack.c.l.b16 %v284
      %v661 = vunpack.c.h.b16 %v284
      %v662 = vunpack.c.l.b16 %v285
      %v663 = vunpack.c.h.b16 %v285
      %v664 = vunpack.c.l.b16 %v286
      %v665 = vunpack.c.h.b16 %v286
      %v666 = vunpack.c.l.b16 %v287
      %v667 = vunpack.c.h.b16 %v287
      %v668 = vunpack.c.l.b16 %v288
      %v669 = vunpack.c.h.b16 %v288
      %v670 = vunpack.c.l.b16 %v289
      %v671 = vunpack.c.h.b16 %v289
      %v672 = vunpack.c.l.b16 %v290
      %v673 = vunpack.c.h.b16 %v290
      %v674 = vunpack.c.l.b16 %v291
      %v675 = vunpack.c.h.b16 %v291
      %v676 = vpack.c.b16 %v428, %v420
      %v677 = vpack.c.b16 %v429, %v421
      %v678 = vpack.c.b16 %v430, %v422
      %v679 = vpack.c.b16 %v431, %v423
      %v680 = vpack.c.b16 %v432, %v424
      %v681 = vpack.c.b16 %v433, %v425
      %v682 = vpack.c.b16 %v434, %v426
      %v683 = vpack.c.b16 %v435, %v427
      %v684 = vpack.c.b16 %v444, %v436
      %v685 = vpack.c.b16 %v445, %v437
      %v686 = vpack.c.b16 %v446, %v438
      %v687 = vpack.c.b16 %v447, %v439
      %v688 = vpack.c.b16 %v448, %v440
      %v689 = vpack.c.b16 %v449, %v441
      %v690 = vpack.c.b16 %v450, %v442
      %v691 = vpack.c.b16 %v451, %v443
      %v692 = vpack.c.b16 %v460, %v452
      %v693 = vpack.c.b16 %v461, %v453
      %v694 = vpack.c.b16 %v462, %v454
      %v695 = vpack.c.b16 %v463, %v455
      %v696 = vpack.c.b16 %v464, %v456
      %v697 = vpack.c.b16 %v465, %v457
      %v698 = vpack.c.b16 %v466, %v458
      %v699 = vpack.c.b16 %v467, %v459
      %v700 = vpack.c.b16 %v476, %v468
      %v701 = vpack.c.b16 %v477, %v469
      %v702 = vpack.c.b16 %v478, %v470
      %v703 = vpack.c.b16 %v479, %v471
      %v704 = vpack.c.b16 %v480, %v472
      %v705 = vpack.c.b16 %v481, %v473
      %v706 = vpack.c.b16 %v482, %v474
      %v707 = vpack.c.b16 %v483, %v475
      %v708 = vpack.c.b16 %v492, %v484
      %v709 = vpack.c.b16 %v493, %v485
      %v710 = vpack.c.b16 %v494, %v486
      %v711 = vpack.c.b16 %v495, %v487
      %v712 = vpack.c.b16 %v496, %v488
      %v713 = vpack.c.b16 %v497, %v489
      %v714 = vpack.c.b16 %v498, %v490
      %v715 = vpack.c.b16 %v499, %v491
      %v716 = vpack.c.b16 %v508, %v500
      %v717 = vpack.c.b16 %v509, %v501
      %v718 = vpack.c.b16 %v510, %v502
      %v719 = vpack.c.b16 %v511, %v503
      %v720 = vpack.c.b16 %v512, %v504
      %v721 = vpack.c.b16 %v513, %v505
      %v722 = vpack.c.b16 %v514, %v506
      %v723 = vpack.c.b16 %v515, %v507
      %v724 = vpack.c.b16 %v524, %v516
      %v725 = vpack.c.b16 %v525, %v517
      %v726 = vpack.c.b16 %v526, %v518
      %v727 = vpack.c.b16 %v527, %v519
      %v728 = vpack.c.b16 %v528, %v520
      %v729 = vpack.c.b16 %v529, %v521
      %v730 = vpack.c.b16 %v530, %v522
      %v731 = vpack.c.b16 %v531, %v523
      %v732 = vpack.c.b16 %v540, %v532
      %v733 = vpack.c.b16 %v541, %v533
      %v734 = vpack.c.b16 %v542, %v534
      %v735 = vpack.c.b16 %v543, %v535
      %v736 = vpack.c.b16 %v544, %v536
      %v737 = vpack.c.b16 %v545, %v537
      %v738 = vpack.c.b16 %v546, %v538
      %v739 = vpack.c.b16 %v547, %v539
      %v740 = vpack.c.b16 %v556, %v548
      %v741 = vpack.c.b16 %v557, %v549
      %v742 = vpack.c.b16 %v558, %v550
      %v743 = vpack.c.b16 %v559, %v551
      %v744 = vpack.c.b16 %v560, %v552
      %v745 = vpack.c.b16 %v561, %v553
      %v746 = vpack.c.b16 %v562, %v554
      %v747 = vpack.c.b16 %v563, %v555
      %v748 = vpack.c.b16 %v572, %v564
      %v749 = vpack.c.b16 %v573, %v565
      %v750 = vpack.c.b16 %v574, %v566
      %v751 = vpack.c.b16 %v575, %v567
      %v752 = vpack.c.b16 %v576, %v568
      %v753 = vpack.c.b16 %v577, %v569
      %v754 = vpack.c.b16 %v578, %v570
      %v755 = vpack.c.b16 %v579, %v571
      %v756 = vpack.c.b16 %v588, %v580
      %v757 = vpack.c.b16 %v589, %v581
      %v758 = vpack.c.b16 %v590, %v582
      %v759 = vpack.c.b16 %v591, %v583
      %v760 = vpack.c.b16 %v592, %v584
      %v761 = vpack.c.b16 %v593, %v585
      %v762 = vpack.c.b16 %v594, %v586
      %v763 = vpack.c.b16 %v595, %v587
      %v764 = vpack.c.b16 %v604, %v596
      %v765 = vpack.c.b16 %v605, %v597
      %v766 = vpack.c.b16 %v606, %v598
      %v767 = vpack.c.b16 %v607, %v599
      %v768 = vpack.c.b16 %v608, %v600
      %v769 = vpack.c.b16 %v609, %v601
      %v770 = vpack.c.b16 %v610, %v602
      %v771 = vpack.c.b16 %v611, %v603
      %v772 = vpack.c.b16 %v620, %v612
      %v773 = vpack.c.b16 %v621, %v613
      %v774 = vpack.c.b16 %v622, %v614
      %v775 = vpack.c.b16 %v623, %v615
      %v776 = vpack.c.b16 %v624, %v616
      %v777 = vpack.c.b16 %v625, %v617
      %v778 = vpack.c.b16 %v626, %v618
      %v779 = vpack.c.b16 %v627, %v619
      %v780 = vpack.c.b16 %v636, %v628
      %v781 = vpack.c.b16 %v637, %v629
      %v782 = vpack.c.b16 %v638, %v630
      %v783 = vpack.c.b16 %v639, %v631
      %v784 = vpack.c.b16 %v640, %v632
      %v785 = vpack.c.b16 %v641, %v633
      %v786 = vpack.c.b16 %v642, %v634
      %v787 = vpack.c.b16 %v643, %v635
      %v788 = vpack.c.b16 %v652, %v644
      %v789 = vpack.c.b16 %v653, %v645
      %v790 = vpack.c.b16 %v654, %v646
      %v791 = vpack.c.b16 %v655, %v647
      %v792 = vpack.c.b16 %v656, %v648
      %v793 = vpack.c.b16 %v657, %v649
      %v794 = vpack.c.b16 %v658, %v650
      %v795 = vpack.c.b16 %v659, %v651
      %v796 = vpack.c.b16 %v668, %v660
      %v797 = vpack.c.b16 %v669, %v661
      %v798 = vpack.c.b16 %v670, %v662
      %v799 = vpack.c.b16 %v671, %v663
      %v800 = vpack.c.b16 %v672, %v664
      %v801 = vpack.c.b16 %v673, %v665
      %v802 = vpack.c.b16 %v674, %v666
      %v803 = vpack.c.b16 %v675, %v667
      %932 = vmatprep.subr.bf16.mxu0 %v677
      %933 = vmatpush1.bf16.msra.mxu0 %v676
      %934 = vmatprep.subr.bf16.mxu0 %v685
      %935 = vmatpush1.bf16.msra.mxu0 %v684
      %936 = vmatprep.subr.bf16.mxu0 %v693
      %937 = vmatpush1.bf16.msra.mxu0 %v692
      %938 = vmatprep.subr.bf16.mxu0 %v701
      %939 = vmatpush1.bf16.msra.mxu0 %v700
      %940 = vmatprep.subr.bf16.mxu0 %v709
      %941 = vmatpush1.bf16.msra.mxu0 %v708
      %942 = vmatprep.subr.bf16.mxu0 %v717
      %943 = vmatpush1.bf16.msra.mxu0 %v716
      %944 = vmatprep.subr.bf16.mxu0 %v725
      %945 = vmatpush1.bf16.msra.mxu0 %v724
      %946 = vmatprep.subr.bf16.mxu0 %v733
      %947 = vmatpush1.bf16.msra.mxu0 %v732
      %948 = vmatprep.subr.bf16.mxu0 %v741
      %949 = vmatpush1.bf16.msra.mxu0 %v740
      %950 = vmatprep.subr.bf16.mxu0 %v749
      %951 = vmatpush1.bf16.msra.mxu0 %v748
      %952 = vmatprep.subr.bf16.mxu0 %v757
      %953 = vmatpush1.bf16.msra.mxu0 %v756
      %954 = vmatprep.subr.bf16.mxu0 %v765
      %955 = vmatpush1.bf16.msra.mxu0 %v764
      %956 = vmatprep.subr.bf16.mxu0 %v773
      %957 = vmatpush1.bf16.msra.mxu0 %v772
      %958 = vmatprep.subr.bf16.mxu0 %v781
      %959 = vmatpush1.bf16.msra.mxu0 %v780
      %960 = vmatprep.subr.bf16.mxu0 %v789
      %961 = vmatpush1.bf16.msra.mxu0 %v788
      %962 = vmatprep.subr.bf16.mxu0 %v797
      %963 = vmatpush1.bf16.msra.mxu0 %v796
      %964 = vmatprep.mubr.bf16.mxu0 %v163
      %965 = vmatmul.mubr.bf16.gmra.mrb[0].mxu0 %v162
      %v966 = vpop.f32.mrb[0].mxu0
      %v967 = vadd.f32 0.0, %v966
      %v968 = vpop.f32.mrb[0].mxu0
      %v969 = vadd.f32 0.0, %v968
      %v970 = vpop.f32.mrb[0].mxu0
      %v971 = vpop.f32.mrb[0].mxu0
      %972 = vdwg.mxu0
      %973 = vmatprep.subr.bf16.mxu0 %v679
      %974 = vmatpush1.bf16.msra.mxu0 %v678
      %975 = vmatprep.subr.bf16.mxu0 %v687
      %976 = vmatpush1.bf16.msra.mxu0 %v686
      %977 = vmatprep.subr.bf16.mxu0 %v695
      %978 = vmatpush1.bf16.msra.mxu0 %v694
      %979 = vmatprep.subr.bf16.mxu0 %v703
      %980 = vmatpush1.bf16.msra.mxu0 %v702
      %981 = vmatprep.subr.bf16.mxu0 %v711
      %982 = vmatpush1.bf16.msra.mxu0 %v710
      %983 = vmatprep.subr.bf16.mxu0 %v719
      %984 = vmatpush1.bf16.msra.mxu0 %v718
      %985 = vmatprep.subr.bf16.mxu0 %v727
      %986 = vmatpush1.bf16.msra.mxu0 %v726
      %987 = vmatprep.subr.bf16.mxu0 %v735
      %988 = vmatpush1.bf16.msra.mxu0 %v734
      %989 = vmatprep.subr.bf16.mxu0 %v743
      %990 = vmatpush1.bf16.msra.mxu0 %v742
      %991 = vmatprep.subr.bf16.mxu0 %v751
      %992 = vmatpush1.bf16.msra.mxu0 %v750
      %993 = vmatprep.subr.bf16.mxu0 %v759
      %994 = vmatpush1.bf16.msra.mxu0 %v758
      %995 = vmatprep.subr.bf16.mxu0 %v767
      %996 = vmatpush1.bf16.msra.mxu0 %v766
      %997 = vmatprep.subr.bf16.mxu0 %v775
      %998 = vmatpush1.bf16.msra.mxu0 %v774
      %999 = vmatprep.subr.bf16.mxu0 %v783
      %1000 = vmatpush1.bf16.msra.mxu0 %v782
      %1001 = vmatprep.subr.bf16.mxu0 %v791
      %1002 = vmatpush1.bf16.msra.mxu0 %v790
      %1003 = vmatprep.subr.bf16.mxu0 %v799
      %1004 = vmatpush1.bf16.msra.mxu0 %v798
      %1005 = vmatprep.mubr.bf16.mxu0 %v163
      %1006 = vmatmul.mubr.bf16.gmra.mrb[0].mxu0 %v162
      %v1007 = vpop.f32.mrb[0].mxu0
      %v1008 = vadd.f32 0.0, %v1007
      %v1009 = vpop.f32.mrb[0].mxu0
      %v1010 = vadd.f32 0.0, %v1009
      %v1011 = vpop.f32.mrb[0].mxu0
      %v1012 = vpop.f32.mrb[0].mxu0
      %1013 = vdwg.mxu0
      %1014 = vmatprep.subr.bf16.mxu0 %v681
      %1015 = vmatpush1.bf16.msra.mxu0 %v680
      %1016 = vmatprep.subr.bf16.mxu0 %v689
      %1017 = vmatpush1.bf16.msra.mxu0 %v688
      %1018 = vmatprep.subr.bf16.mxu0 %v697
      %1019 = vmatpush1.bf16.msra.mxu0 %v696
      %1020 = vmatprep.subr.bf16.mxu0 %v705
      %1021 = vmatpush1.bf16.msra.mxu0 %v704
      %1022 = vmatprep.subr.bf16.mxu0 %v713
      %1023 = vmatpush1.bf16.msra.mxu0 %v712
      %1024 = vmatprep.subr.bf16.mxu0 %v721
      %1025 = vmatpush1.bf16.msra.mxu0 %v720
      %1026 = vmatprep.subr.bf16.mxu0 %v729
      %1027 = vmatpush1.bf16.msra.mxu0 %v728
      %1028 = vmatprep.subr.bf16.mxu0 %v737
      %1029 = vmatpush1.bf16.msra.mxu0 %v736
      %1030 = vmatprep.subr.bf16.mxu0 %v745
      %1031 = vmatpush1.bf16.msra.mxu0 %v744
      %1032 = vmatprep.subr.bf16.mxu0 %v753
      %1033 = vmatpush1.bf16.msra.mxu0 %v752
      %1034 = vmatprep.subr.bf16.mxu0 %v761
      %1035 = vmatpush1.bf16.msra.mxu0 %v760
      %1036 = vmatprep.subr.bf16.mxu0 %v769
      %1037 = vmatpush1.bf16.msra.mxu0 %v768
      %1038 = vmatprep.subr.bf16.mxu0 %v777
      %1039 = vmatpush1.bf16.msra.mxu0 %v776
      %1040 = vmatprep.subr.bf16.mxu0 %v785
      %1041 = vmatpush1.bf16.msra.mxu0 %v784
      %1042 = vmatprep.subr.bf16.mxu0 %v793
      %1043 = vmatpush1.bf16.msra.mxu0 %v792
      %1044 = vmatprep.subr.bf16.mxu0 %v801
      %1045 = vmatpush1.bf16.msra.mxu0 %v800
      %1046 = vmatprep.mubr.bf16.mxu0 %v163
      %1047 = vmatmul.mubr.bf16.gmra.mrb[0].mxu0 %v162
      %v1048 = vpop.f32.mrb[0].mxu0
      %v1049 = vadd.f32 0.0, %v1048
      %v1050 = vpop.f32.mrb[0].mxu0
      %v1051 = vadd.f32 0.0, %v1050
      %v1052 = vpop.f32.mrb[0].mxu0
      %v1053 = vpop.f32.mrb[0].mxu0
      %1054 = vdwg.mxu0
      %1055 = vmatprep.subr.bf16.mxu0 %v683
      %1056 = vmatpush1.bf16.msra.mxu0 %v682
      %1057 = vmatprep.subr.bf16.mxu0 %v691
      %1058 = vmatpush1.bf16.msra.mxu0 %v690
      %1059 = vmatprep.subr.bf16.mxu0 %v699
      %1060 = vmatpush1.bf16.msra.mxu0 %v698
      %1061 = vmatprep.subr.bf16.mxu0 %v707
      %1062 = vmatpush1.bf16.msra.mxu0 %v706
      %1063 = vmatprep.subr.bf16.mxu0 %v715
      %1064 = vmatpush1.bf16.msra.mxu0 %v714
      %1065 = vmatprep.subr.bf16.mxu0 %v723
      %1066 = vmatpush1.bf16.msra.mxu0 %v722
      %1067 = vmatprep.subr.bf16.mxu0 %v731
      %1068 = vmatpush1.bf16.msra.mxu0 %v730
      %1069 = vmatprep.subr.bf16.mxu0 %v739
      %1070 = vmatpush1.bf16.msra.mxu0 %v738
      %1071 = vmatprep.subr.bf16.mxu0 %v747
      %1072 = vmatpush1.bf16.msra.mxu0 %v746
      %1073 = vmatprep.subr.bf16.mxu0 %v755
      %1074 = vmatpush1.bf16.msra.mxu0 %v754
      %1075 = vmatprep.subr.bf16.mxu0 %v763
      %1076 = vmatpush1.bf16.msra.mxu0 %v762
      %1077 = vmatprep.subr.bf16.mxu0 %v771
      %1078 = vmatpush1.bf16.msra.mxu0 %v770
      %1079 = vmatprep.subr.bf16.mxu0 %v779
      %1080 = vmatpush1.bf16.msra.mxu0 %v778
      %1081 = vmatprep.subr.bf16.mxu0 %v787
      %1082 = vmatpush1.bf16.msra.mxu0 %v786
      %1083 = vmatprep.subr.bf16.mxu0 %v795
      %1084 = vmatpush1.bf16.msra.mxu0 %v794
      %1085 = vmatprep.subr.bf16.mxu0 %v803
      %1086 = vmatpush1.bf16.msra.mxu0 %v802
      %1087 = vmatprep.mubr.bf16.mxu0 %v163
      %1088 = vmatmul.mubr.bf16.gmra.mrb[0].mxu0 %v162
      %v1089 = vpop.f32.mrb[0].mxu0
      %v1090 = vadd.f32 0.0, %v1089
      %v1091 = vpop.f32.mrb[0].mxu0
      %v1092 = vadd.f32 0.0, %v1091
      %v1093 = vpop.f32.mrb[0].mxu0
      %v1094 = vpop.f32.mrb[0].mxu0
      %1095 = vdwg.mxu0
      %v1096 = vadd.f32 %v154, %v967
      %v1097 = vadd.f32 %v155, %v969
      %v1098 = vadd.f32 %v156, %v1008
      %v1099 = vadd.f32 %v157, %v1010
      %v1100 = vadd.f32 %v158, %v1049
      %v1101 = vadd.f32 %v159, %v1051
      %v1102 = vadd.f32 %v160, %v1090
      %v1103 = vadd.f32 %v161, %v1092
      %v1104 = vxor.u32 %v1096, 2147483648
      %v1105 = vxor.u32 %v1097, 2147483648
      %v1106 = vmul.f32 %v1104, 1.442695
      %v1107 = vpow.pop %v1106
      %v1108 = vmul.f32 %v1105, 1.442695
      %v1109 = vpow.pop %v1108
      %v1110 = vadd.f32 %v1107, 1.0
      %v1111 = vadd.f32 %v1109, 1.0
      %v1112 = vrcp.pop %v1110
      %v1113 = vmul.f32 1.0, %v1112
      %v1114 = vrcp.pop %v1111
      %v1115 = vmul.f32 1.0, %v1114
      %v1116 = vxor.u32 %v1098, 2147483648
      %v1117 = vxor.u32 %v1099, 2147483648
      %v1118 = vmul.f32 %v1116, 1.442695
      %v1119 = vpow.pop %v1118
      %v1120 = vmul.f32 %v1117, 1.442695
      %v1121 = vpow.pop %v1120
      %v1122 = vadd.f32 %v1119, 1.0
      %v1123 = vadd.f32 %v1121, 1.0
      %v1124 = vrcp.pop %v1122
      %v1125 = vmul.f32 1.0, %v1124
      %v1126 = vrcp.pop %v1123
      %v1127 = vmul.f32 1.0, %v1126
      %v1128 = vtanh.pop %v1100
      %v1129 = vtanh.pop %v1101
      %v1130 = vxor.u32 %v1102, 2147483648
      %v1131 = vxor.u32 %v1103, 2147483648
      %v1132 = vmul.f32 %v1130, 1.442695
      %v1133 = vpow.pop %v1132
      %v1134 = vmul.f32 %v1131, 1.442695
      %v1135 = vpow.pop %v1134
      %v1136 = vadd.f32 %v1133, 1.0
      %v1137 = vadd.f32 %v1135, 1.0
      %v1138 = vrcp.pop %v1136
      %v1139 = vmul.f32 1.0, %v1138
      %v1140 = vrcp.pop %v1137
      %v1141 = vmul.f32 1.0, %v1140
      %v1142 = vld [vmem:[#allocation3] sm:$0xff]
      %v1143 = vld [vmem:[#allocation3 + $0x8] sm:$0xff]
      %v1144 = vmul.f32 %v1125, %v1142
      %v1145 = vmul.f32 %v1127, %v1143
      %v1146 = vmul.f32 %v1113, %v1128
      %v1147 = vmul.f32 %v1115, %v1129
      %v1148 = vadd.f32 %v1144, %v1146
      %v1149 = vadd.f32 %v1145, %v1147
      %v1150 = vtanh.pop %v1148
      %v1151 = vtanh.pop %v1149
      %v1152 = vmul.f32 %v1139, %v1150
      %v1153 = vmul.f32 %v1141, %v1151
      %1154 = vst [vmem:[#allocation3] sm:$0xff] %v1148
      %1155 = vst [vmem:[#allocation3 + $0x8] sm:$0xff] %v1149
      %1156 = vst [vmem:[#allocation2] sm:$0xff] %v1152
      %1157 = vst [vmem:[#allocation2 + $0x8] sm:$0xff] %v1153
      %1158 = vst [vmem:[%s143] sm:$0xff] %v1152
      %1159 = vst [vmem:[%s143 + $0x8] sm:$0xff] %v1153
      %p1160 = scmp.lt.s32.totalorder %s13, 7
      %s1161 = scalar_select %p1160, %s13, 7
      %s1162 = smul.addr %s1161, 2
      %s1163 = smul.addr %s1162, 8
      %s1164 = scalar_lea.vmem %s2, %s1163
      // Predicated region
      $region33: #{rnn_modelv2_forward.10} parent=27 // pred_check
        %p1165 = pneg %p78
      $region34: #{rnn_modelv2_forward.10} parent=27 // pred_check_branch
        %1167 = sbr.rel (%p1165) target = $region36
      $region35: #{rnn_modelv2_forward.10} parent=27 // pred_region
        _
      $region36: #{rnn_modelv2_forward.10} parent=27 // pred_fallthru
        _
    $region28: #{rnn_modelv2_forward.10} parent=5 // pred_fallthru
      _
    %p1168 = scmp.le.s32.totalorder 2, %s8
    // Predicated region
    $region37: #{rnn_modelv2_forward.10} parent=5 // pred_check
      %p1169 = pneg %p1168
    $region38: #{rnn_modelv2_forward.10} parent=5 // pred_check_branch
      %1171 = sbr.rel (%p1169) target = $region40
    $region39: #{rnn_modelv2_forward.10} parent=5 // pred_region
      %s1172 = ssub.s32 %s8, 2
      // Predicated region
      $region41: #{rnn_modelv2_forward.10} parent=39 // pred_check
        %p1173 = pneg %p84
      $region42: #{rnn_modelv2_forward.10} parent=39 // pred_check_branch
        %1175 = sbr.rel (%p1173) target = $region44
      $region43: #{rnn_modelv2_forward.10} parent=39 // pred_region
        %p1176 = scmp.lt.s32.totalorder %s14, 7
        %s1177 = scalar_select %p1176, %s14, 7
        %s1178 = smul.addr %s1177, 2
        %s1179 = smul.addr %s1178, 8
        %s1180 = scalar_lea.vmem %s2, %s1179
      $region44: #{rnn_modelv2_forward.10} parent=39 // pred_fallthru
        _
    $region40: #{rnn_modelv2_forward.10} parent=5 // pred_fallthru
      _
  $region6: #{rnn_modelv2_forward.10} parent=0 // loop_footer
    %s12 = sadd.s32 1, %s8
  $region7: #{rnn_modelv2_forward.10} parent=0 // loop_footer_branch
    %7 = sbr.rel target = $region3
  $region8: #{rnn_modelv2_forward.10} parent=0 // loop_exit
    _

// kernel: rnn_modelv2_forward.13
$region0: #{rnn_modelv2_forward.13}
  #allocation0 [shape = 'u32[]', space=smem, size = 0x4, offset = 0x4, fixed_abs, tag = 'smem constant byte address 0x4 - core index']
  #allocation1 [shape = 'u32[144,128]{1,0:T(1,128)}', space=vmem, size = 0x12000, scoped, tag = 'internal scratch']
  %s0 = inlined_call_operand.vmem [shape: f32[64,256], index: 0, kind: input, shape index: {}]
  %s1 = inlined_call_operand.vmem [shape: bf16[256,128], index: 1, kind: input, shape index: {}]
  %s2 = inlined_call_operand.vmem [shape: f32[1,128], index: 2, kind: input, shape index: {}]
  %s3 = inlined_call_operand.vmem [shape: f32[64,128], index: 3, kind: output, shape index: {}]
  %s4 = sld [smem:[#allocation0]]
  $region22: #{rnn_modelv2_forward.13} parent=0
    _
  %s6 = ssub.s32 1, %s4
  %s7 = scalar_select 0, %s6, %s4
  // Predicated region
  $region2: #{rnn_modelv2_forward.13} parent=0 // pred_check
    _
  $region3: #{rnn_modelv2_forward.13} parent=0 // pred_check_branch
    %9 = sbr.rel (0) target = $region5
  $region4: #{rnn_modelv2_forward.13} parent=0 // pred_region
    _
  $region5: #{rnn_modelv2_forward.13} parent=0 // pred_fallthru
    _
  // Predicated region
  $region6: #{rnn_modelv2_forward.13} parent=0 // pred_check
    _
  $region7: #{rnn_modelv2_forward.13} parent=0 // pred_check_branch
    %11 = sbr.rel (0) target = $region9
  $region8: #{rnn_modelv2_forward.13} parent=0 // pred_region
    _
  $region9: #{rnn_modelv2_forward.13} parent=0 // pred_fallthru
    _
  // Predicated region
  $region10: #{rnn_modelv2_forward.13} parent=0 // pred_check
    _
  $region11: #{rnn_modelv2_forward.13} parent=0 // pred_check_branch
    %13 = sbr.rel (0) target = $region13
  $region12: #{rnn_modelv2_forward.13} parent=0 // pred_region
    _
  $region13: #{rnn_modelv2_forward.13} parent=0 // pred_fallthru
    _
  %v15 = vld [vmem:[%s0] sm:$0xff]
  %v16 = vld [vmem:[%s0 + $0x8] sm:$0xff]
  %v17 = vld [vmem:[%s0 + $0x10] sm:$0xff]
  %v18 = vld [vmem:[%s0 + $0x18] sm:$0xff]
  %v19 = vld [vmem:[%s0 + $0x20] sm:$0xff]
  %v20 = vld [vmem:[%s0 + $0x28] sm:$0xff]
  %v21 = vld [vmem:[%s0 + $0x30] sm:$0xff]
  %v22 = vld [vmem:[%s0 + $0x38] sm:$0xff]
  %v23 = vld [vmem:[%s0 + $0x40] sm:$0xff]
  %v24 = vld [vmem:[%s0 + $0x48] sm:$0xff]
  %v25 = vld [vmem:[%s0 + $0x50] sm:$0xff]
  %v26 = vld [vmem:[%s0 + $0x58] sm:$0xff]
  %v27 = vld [vmem:[%s0 + $0x60] sm:$0xff]
  %v28 = vld [vmem:[%s0 + $0x68] sm:$0xff]
  %v29 = vld [vmem:[%s0 + $0x70] sm:$0xff]
  %v30 = vld [vmem:[%s0 + $0x78] sm:$0xff]
  %v31 = vpack.c.bf16 %v17, %v15
  %v32 = vpack.c.bf16 %v18, %v16
  %v33 = vpack.c.bf16 %v21, %v19
  %v34 = vpack.c.bf16 %v22, %v20
  %v35 = vpack.c.bf16 %v25, %v23
  %v36 = vpack.c.bf16 %v26, %v24
  %v37 = vpack.c.bf16 %v29, %v27
  %v38 = vpack.c.bf16 %v30, %v28
  %v39 = vld [vmem:[%s1] sm:$0xf]
  %v40 = vld [vmem:[%s1 + $0x4] sm:$0xf]
  %v41 = vld [vmem:[%s1 + $0x8] sm:$0xf]
  %v42 = vld [vmem:[%s1 + $0xc] sm:$0xf]
  %v43 = vld [vmem:[%s1 + $0x10] sm:$0xf]
  %v44 = vld [vmem:[%s1 + $0x14] sm:$0xf]
  %v45 = vld [vmem:[%s1 + $0x18] sm:$0xf]
  %v46 = vld [vmem:[%s1 + $0x1c] sm:$0xf]
  %v47 = vld [vmem:[%s1 + $0x20] sm:$0xf]
  %v48 = vld [vmem:[%s1 + $0x24] sm:$0xf]
  %v49 = vld [vmem:[%s1 + $0x28] sm:$0xf]
  %v50 = vld [vmem:[%s1 + $0x2c] sm:$0xf]
  %v51 = vld [vmem:[%s1 + $0x30] sm:$0xf]
  %v52 = vld [vmem:[%s1 + $0x34] sm:$0xf]
  %v53 = vld [vmem:[%s1 + $0x38] sm:$0xf]
  %v54 = vld [vmem:[%s1 + $0x3c] sm:$0xf]
  %v55 = vld [vmem:[%s1 + $0x40] sm:$0xf]
  %v56 = vld [vmem:[%s1 + $0x44] sm:$0xf]
  %v57 = vld [vmem:[%s1 + $0x48] sm:$0xf]
  %v58 = vld [vmem:[%s1 + $0x4c] sm:$0xf]
  %v59 = vld [vmem:[%s1 + $0x50] sm:$0xf]
  %v60 = vld [vmem:[%s1 + $0x54] sm:$0xf]
  %v61 = vld [vmem:[%s1 + $0x58] sm:$0xf]
  %v62 = vld [vmem:[%s1 + $0x5c] sm:$0xf]
  %v63 = vld [vmem:[%s1 + $0x60] sm:$0xf]
  %v64 = vld [vmem:[%s1 + $0x64] sm:$0xf]
  %v65 = vld [vmem:[%s1 + $0x68] sm:$0xf]
  %v66 = vld [vmem:[%s1 + $0x6c] sm:$0xf]
  %v67 = vld [vmem:[%s1 + $0x70] sm:$0xf]
  %v68 = vld [vmem:[%s1 + $0x74] sm:$0xf]
  %v69 = vld [vmem:[%s1 + $0x78] sm:$0xf]
  %v70 = vld [vmem:[%s1 + $0x7c] sm:$0xf]
  %v71 = vld [vmem:[%s2] sm:$0x1]
  %v73 = vlaneseq
  %v74 = vshrl.u32 %v73, 7
  %v75 = vsub.s32 0, %v74
  %v76 = vrot.slane %v71, %v75
  %v110 = vunpack.c.l.b16 %v39
  %v111 = vunpack.c.l.b16 %v40
  %v112 = vunpack.c.l.b16 %v41
  %v113 = vunpack.c.l.b16 %v42
  %v114 = vunpack.c.l.b16 %v43
  %v115 = vunpack.c.l.b16 %v44
  %v116 = vunpack.c.l.b16 %v45
  %v117 = vunpack.c.l.b16 %v46
  %v118 = vunpack.c.l.b16 %v47
  %v119 = vunpack.c.l.b16 %v48
  %v120 = vunpack.c.l.b16 %v49
  %v121 = vunpack.c.l.b16 %v50
  %v122 = vunpack.c.l.b16 %v51
  %v123 = vunpack.c.l.b16 %v52
  %v124 = vunpack.c.l.b16 %v53
  %v125 = vunpack.c.l.b16 %v54
  %v126 = vunpack.c.l.b16 %v55
  %v127 = vunpack.c.l.b16 %v56
  %v128 = vunpack.c.l.b16 %v57
  %v129 = vunpack.c.l.b16 %v58
  %v130 = vunpack.c.l.b16 %v59
  %v131 = vunpack.c.l.b16 %v60
  %v132 = vunpack.c.l.b16 %v61
  %v133 = vunpack.c.l.b16 %v62
  %v134 = vunpack.c.l.b16 %v63
  %v135 = vunpack.c.l.b16 %v64
  %v136 = vunpack.c.l.b16 %v65
  %v137 = vunpack.c.l.b16 %v66
  %v138 = vunpack.c.l.b16 %v67
  %v139 = vunpack.c.l.b16 %v68
  %v140 = vunpack.c.l.b16 %v69
  %v141 = vunpack.c.l.b16 %v70
  %v142 = vpack.c.b16 %v111, %v110
  %v143 = vpack.c.b16 %v113, %v112
  %v144 = vpack.c.b16 %v115, %v114
  %v145 = vpack.c.b16 %v117, %v116
  %v146 = vpack.c.b16 %v119, %v118
  %v147 = vpack.c.b16 %v121, %v120
  %v148 = vpack.c.b16 %v123, %v122
  %v149 = vpack.c.b16 %v125, %v124
  %v150 = vpack.c.b16 %v127, %v126
  %v151 = vpack.c.b16 %v129, %v128
  %v152 = vpack.c.b16 %v131, %v130
  %v153 = vpack.c.b16 %v133, %v132
  %v154 = vpack.c.b16 %v135, %v134
  %v155 = vpack.c.b16 %v137, %v136
  %v156 = vpack.c.b16 %v139, %v138
  %v157 = vpack.c.b16 %v141, %v140
  %174 = vmatprep.subr.bf16.mxu0 0
  %175 = vmatpush1.bf16.msra.mxu0 %v142
  %176 = vmatprep.subr.bf16.mxu0 0
  %177 = vmatpush1.bf16.msra.mxu0 %v143
  %178 = vmatprep.subr.bf16.mxu0 0
  %179 = vmatpush1.bf16.msra.mxu0 %v144
  %180 = vmatprep.subr.bf16.mxu0 0
  %181 = vmatpush1.bf16.msra.mxu0 %v145
  %182 = vmatprep.subr.bf16.mxu0 0
  %183 = vmatpush1.bf16.msra.mxu0 %v146
  %184 = vmatprep.subr.bf16.mxu0 0
  %185 = vmatpush1.bf16.msra.mxu0 %v147
  %186 = vmatprep.subr.bf16.mxu0 0
  %187 = vmatpush1.bf16.msra.mxu0 %v148
  %188 = vmatprep.subr.bf16.mxu0 0
  %189 = vmatpush1.bf16.msra.mxu0 %v149
  %190 = vmatprep.subr.bf16.mxu0 0
  %191 = vmatpush1.bf16.msra.mxu0 %v150
  %192 = vmatprep.subr.bf16.mxu0 0
  %193 = vmatpush1.bf16.msra.mxu0 %v151
  %194 = vmatprep.subr.bf16.mxu0 0
  %195 = vmatpush1.bf16.msra.mxu0 %v152
  %196 = vmatprep.subr.bf16.mxu0 0
  %197 = vmatpush1.bf16.msra.mxu0 %v153
  %198 = vmatprep.subr.bf16.mxu0 0
  %199 = vmatpush1.bf16.msra.mxu0 %v154
  %200 = vmatprep.subr.bf16.mxu0 0
  %201 = vmatpush1.bf16.msra.mxu0 %v155
  %202 = vmatprep.subr.bf16.mxu0 0
  %203 = vmatpush1.bf16.msra.mxu0 %v156
  %204 = vmatprep.subr.bf16.mxu0 0
  %205 = vmatpush1.bf16.msra.mxu0 %v157
  %206 = vmatprep.mubr.bf16.mxu0 %v32
  %207 = vmatmul.mubr.bf16.gmra.mrb[0].mxu0 %v31
  %v208 = vpop.f32.mrb[0].mxu0
  %v209 = vadd.f32 %v76, %v208
  %v210 = vpop.f32.mrb[0].mxu0
  %v211 = vpop.f32.mrb[0].mxu0
  %v212 = vadd.f32 %v76, %v211
  %v213 = vpop.f32.mrb[0].mxu0
  %214 = vmatprep.mubr.bf16.mxu0 %v34
  %215 = vmatmul.mubr.bf16.gmra.mrb[0].mxu0 %v33
  %v216 = vpop.f32.mrb[0].mxu0
  %v217 = vadd.f32 %v76, %v216
  %v218 = vpop.f32.mrb[0].mxu0
  %v219 = vpop.f32.mrb[0].mxu0
  %v220 = vadd.f32 %v76, %v219
  %v221 = vpop.f32.mrb[0].mxu0
  %222 = vmatprep.mubr.bf16.mxu0 %v36
  %223 = vmatmul.mubr.bf16.gmra.mrb[0].mxu0 %v35
  %v224 = vpop.f32.mrb[0].mxu0
  %v225 = vadd.f32 %v76, %v224
  %v226 = vpop.f32.mrb[0].mxu0
  %v227 = vpop.f32.mrb[0].mxu0
  %v228 = vadd.f32 %v76, %v227
  %v229 = vpop.f32.mrb[0].mxu0
  %230 = vmatprep.mubr.bf16.mxu0 %v38
  %231 = vmatmul.mubr.bf16.gmra.mrb[0].mxu0 %v37
  %v232 = vpop.f32.mrb[0].mxu0
  %v233 = vadd.f32 %v76, %v232
  %v234 = vpop.f32.mrb[0].mxu0
  %v235 = vpop.f32.mrb[0].mxu0
  %v236 = vadd.f32 %v76, %v235
  %v237 = vpop.f32.mrb[0].mxu0
  %238 = vdwg.mxu0
  %239 = vst [vmem:[%s3] sm:$0xff] %v209
  %240 = vst [vmem:[%s3 + $0x8] sm:$0xff] %v212
  %241 = vst [vmem:[%s3 + $0x10] sm:$0xff] %v217
  %242 = vst [vmem:[%s3 + $0x18] sm:$0xff] %v220
  %243 = vst [vmem:[%s3 + $0x20] sm:$0xff] %v225
  %244 = vst [vmem:[%s3 + $0x28] sm:$0xff] %v228
  %245 = vst [vmem:[%s3 + $0x30] sm:$0xff] %v233
  %246 = vst [vmem:[%s3 + $0x38] sm:$0xff] %v236
  // Predicated region
  $region14: #{rnn_modelv2_forward.13} parent=0 // pred_check
    _
  $region15: #{rnn_modelv2_forward.13} parent=0 // pred_check_branch
    %248 = sbr.rel (0) target = $region17
  $region16: #{rnn_modelv2_forward.13} parent=0 // pred_region
    _
  $region17: #{rnn_modelv2_forward.13} parent=0 // pred_fallthru
    _
  // Predicated region
  $region18: #{rnn_modelv2_forward.13} parent=0 // pred_check
    _
  $region19: #{rnn_modelv2_forward.13} parent=0 // pred_check_branch
    %250 = sbr.rel (0) target = $region21
  $region20: #{rnn_modelv2_forward.13} parent=0 // pred_region
    _
  $region21: #{rnn_modelv2_forward.13} parent=0 // pred_fallthru
    _

</llo_original>
